<compile_context>
chip_gen: v7x
topology: tpu7x:2x2x1
jax: 0.10.0
libtpu: 0.0.40
codegen_flags: <defaults>
</compile_context>

<pallas_src>
import math

import jax
import jax.numpy as jnp
from jax import lax
from jax.experimental import pallas as pl
from jax.experimental.pallas import tpu as pltpu


def _layer_norm(y, gamma, beta, eps=1e-5):
    mu = jnp.mean(y, axis=-1, keepdims=True)
    var = jnp.mean((y - mu) ** 2, axis=-1, keepdims=True)
    return (y - mu) * lax.rsqrt(var + eps) * gamma + beta


def _gelu(x, approximate):
    if approximate:
        # tanh variant -> EUP slot; tiny deviation from PyTorch's exact-erf nn.GELU().
        return jax.nn.gelu(x, approximate=True)
    return 0.5 * x * (1.0 + lax.erf(x * (1.0 / math.sqrt(2.0))))


def _make_kernel(*, num_heads, head_dim, hidden, tile_s, emit_attn, gelu_approx):
    f32 = jnp.float32
    bf16 = jnp.bfloat16

    def kernel(x_ref,
               wq_ref, bq_ref, wk_ref, bk_ref, wv_ref, bv_ref,
               wso_ref, bso_ref, g1_ref, be1_ref,
               wi_ref, bi_ref, wo_ref, bo_ref, g2_ref, be2_ref,
               *outs_and_scratch):
        if emit_attn:
            out_ref, attn_ref, k_scr, v_scr = outs_and_scratch
        else:
            out_ref, k_scr, v_scr = outs_and_scratch
            attn_ref = None

        t = pl.program_id(1)
        seq_len = x_ref.shape[1]

        # --- K/V for the whole sequence: computed once per batch element (t == 0),
        #     stored head-major [nh, S, dh] bf16 and reused by every Q tile. --------
        @pl.when(t == 0)
        def _():
            xf = x_ref[0].astype(bf16)                                       # [S, H]
            k = jnp.dot(xf, wk_ref[...], preferred_element_type=f32) + bk_ref[...]
            v = jnp.dot(xf, wv_ref[...], preferred_element_type=f32) + bv_ref[...]
            # one relayout per tensor (XLU) instead of per-head masked stores
            k_scr[...] = jnp.transpose(
                k.astype(bf16).reshape(seq_len, num_heads, head_dim), (1, 0, 2))
            v_scr[...] = jnp.transpose(
                v.astype(bf16).reshape(seq_len, num_heads, head_dim), (1, 0, 2))
            # TODO(synk): chunk this projection over S on v7x to bound [S, H] f32 transients.

        # --- Q tile + residual sliced from the resident full-sequence block --------
        off = pl.multiple_of(t * tile_s, tile_s)
        xt = x_ref[0, pl.ds(off, tile_s), :]                                 # [ts, H] f32
        # 1/sqrt(dh) is folded into wq/bq on the host.
        q = jnp.dot(xt.astype(bf16), wq_ref[...],
                    preferred_element_type=f32) + bq_ref[...]                # [ts, H]
        q3 = jnp.transpose(q.astype(bf16).reshape(tile_s, num_heads, head_dim),
                           (1, 0, 2))                                        # [nh, ts, dh]

        # --- attention (softmax math in f32) ----------------------------------------
        s = jnp.einsum("hqd,hkd->hqk", q3, k_scr[...],
                       preferred_element_type=f32)                           # [nh, ts, S]
        s = s - jnp.max(s, axis=-1, keepdims=True)
        p = jnp.exp(s)
        denom = jnp.sum(p, axis=-1, keepdims=True)
        # exact reciprocal when the attention weights are emitted (rows sum to 1);
        # EUP-approx when they are a purely internal quantity.
        attn = p * pl.reciprocal(denom, approx=not emit_attn)
        if emit_attn:
            attn_ref[0] = attn.astype(attn_ref.dtype)
        ctx = jnp.einsum("hqk,hkd->hqd", attn.astype(bf16), v_scr[...],
                         preferred_element_type=f32)                         # [nh, ts, dh]

        # --- self-output projection: head merge folded into ONE matmul (contraction H)
        ctx2d = jnp.transpose(ctx.astype(bf16), (1, 0, 2)).reshape(tile_s, hidden)
        so = jnp.dot(ctx2d, wso_ref[...], preferred_element_type=f32) + bso_ref[...]
        attn_out = _layer_norm(xt + so, g1_ref[...], be1_ref[...])           # [ts, H] f32

        # --- FFN: bf16 MXU operands, f32 accumulation -------------------------------
        inter = jnp.dot(attn_out.astype(bf16), wi_ref[...],
                        preferred_element_type=f32) + bi_ref[...]            # [ts, I]
        inter = _gelu(inter, gelu_approx)
        ffn = jnp.dot(inter.astype(bf16), wo_ref[...],
                      preferred_element_type=f32) + bo_ref[...]              # [ts, H]
        out_ref[0] = _layer_norm(attn_out + ffn, g2_ref[...],
                                 be2_ref[...]).astype(out_ref.dtype)

    return kernel


def _default_tile_s(seq_len, max_tile):
    """Largest multiple-of-8 divisor of S that is <= max_tile (or S itself)."""
    if seq_len <= max_tile or seq_len % 8 != 0:
        return seq_len
    for cand in range(max_tile, 7, -8):
        if seq_len % cand == 0:
            return cand
    return seq_len


def _vmem_capacity():
    try:
        return int(pltpu.get_tpu_info().vmem_capacity_bytes)
    except Exception:  # pragma: no cover - older jax / no device info
        return 64 * 1024 * 1024


def _max_tile_s():
    # 256 on 128 MiB-VMEM parts (v5e/v6e); 128 on v7x's 64 MiB.
    return 256 if _vmem_capacity() >= 96 * 1024 * 1024 else 128


def _default_vmem_limit():
    return _vmem_capacity() * 7 // 8


def bert_layer(x, params, *, num_heads, return_attention=True,
               attn_dtype=jnp.bfloat16, gelu_approximate=True,
               weight_buffers=1, tile_s=None, vmem_limit_bytes=None):
    B, S, H = x.shape
    I = params["wi"].shape[1]
    assert H % num_heads == 0
    head_dim = H // num_heads
    if tile_s is None:
        tile_s = _default_tile_s(S, _max_tile_s())
    assert S % tile_s == 0
    n_t = S // tile_s

    f32 = jnp.float32
    bf16 = jnp.bfloat16
    x = x.astype(f32)

    # Fold the softmax scale 1/sqrt(dh) into the Q projection (exact for power-of-two dh).
    scale = 1.0 / math.sqrt(head_dim)
    wq = (params["wq"].astype(f32) * scale).astype(bf16)
    bq = params["bq"].astype(f32) * scale
    wk = params["wk"].astype(bf16)
    wv = params["wv"].astype(bf16)
    wso = params["wso"].astype(bf16)
    wi = params["wi"].astype(bf16)
    wo = params["wo"].astype(bf16)

    if vmem_limit_bytes is None:
        vmem_limit_bytes = _default_vmem_limit()

    # Advisory cost estimate for XLA scheduling around the custom call.
    flops = int(B * (8 * S * H * H + 4 * S * S * H + 4 * S * H * I))
    transcendentals = int(B * (num_heads * S * S + S * I + 4 * S))
    attn_itemsize = 2 if attn_dtype == bf16 else 4
    weight_bytes = sum(int(v.size) * v.dtype.itemsize for v in params.values())
    bytes_accessed = int(x.size * 4 + weight_bytes + B * S * H * 4
                         + (B * num_heads * S * S * attn_itemsize if return_attention else 0))

    kernel = _make_kernel(num_heads=num_heads, head_dim=head_dim, hidden=H,
                          tile_s=tile_s, emit_attn=return_attention,
                          gelu_approx=gelu_approximate)

    def _run(weight_pipeline):
        def wspec(shape):
            idx = lambda b, t, _n=len(shape): (0,) * _n   # constant index => fetched once
            if weight_pipeline is None:
                return pl.BlockSpec(shape, idx)
            return pl.BlockSpec(shape, idx, pipeline_mode=weight_pipeline)

        in_specs = [
            pl.BlockSpec((1, S, H), lambda b, t: (b, 0, 0)),   # x f32, full sequence
            wspec((H, H)), wspec((1, H)),                      # wq, bq (pre-scaled)
            wspec((H, H)), wspec((1, H)),                      # wk, bk
            wspec((H, H)), wspec((1, H)),                      # wv, bv
            wspec((H, H)), wspec((1, H)),                      # wso, bso
            wspec((1, H)), wspec((1, H)),                      # ln1 gamma / beta
            wspec((H, I)), wspec((1, I)),                      # wi, bi
            wspec((I, H)), wspec((1, H)),                      # wo, bo
            wspec((1, H)), wspec((1, H)),                      # ln2 gamma / beta
        ]
        out_shape = [jax.ShapeDtypeStruct((B, S, H), f32)]
        out_specs = [pl.BlockSpec((1, tile_s, H), lambda b, t: (b, t, 0))]
        if return_attention:
            out_shape.append(jax.ShapeDtypeStruct((B, num_heads, S, S), attn_dtype))
            out_specs.append(
                pl.BlockSpec((1, num_heads, tile_s, S), lambda b, t: (b, 0, t, 0)))

        return pl.pallas_call(
            kernel,
            out_shape=tuple(out_shape),
            grid_spec=pltpu.PrefetchScalarGridSpec(
                num_scalar_prefetch=0,
                grid=(B, n_t),
                in_specs=in_specs,
                out_specs=tuple(out_specs),
                scratch_shapes=[
                    pltpu.VMEM((num_heads, S, head_dim), bf16),   # K heads (per batch elem)
                    pltpu.VMEM((num_heads, S, head_dim), bf16),   # V heads (per batch elem)
                ],
            ),
            compiler_params=pltpu.CompilerParams(
                # batch axis is megacore-parallel; the seq-tile axis must stay 'arbitrary'
                # because K/V scratch is filled at tile 0 and reused by later tiles.
                dimension_semantics=("parallel", "arbitrary"),
                vmem_limit_bytes=vmem_limit_bytes,
            ),
            cost_estimate=pl.CostEstimate(flops=flops, transcendentals=transcendentals,
                                          bytes_accessed=bytes_accessed),
        )(x,
          wq, bq, wk, params["bk"].astype(f32), wv, params["bv"].astype(f32),
          wso, params["bso"].astype(f32), params["g1"].astype(f32), params["be1"].astype(f32),
          wi, params["bi"].astype(f32), wo, params["bo"].astype(f32),
          params["g2"].astype(f32), params["be2"].astype(f32))

    if weight_buffers is None:
        result = _run(None)
    else:
        try:
            result = _run(pl.Buffered(weight_buffers))
        except Exception as e:  # explicit (non-silent) fallback for builds without Buffered(1)
            print(f"bert_layer: pl.Buffered({weight_buffers}) weight windows rejected "
                  f"({type(e).__name__}); falling back to default double-buffered weights.")
            # TODO(synk): instead of double-buffering, tile wi/wo over an inner 'arbitrary'
            # I grid axis to bound weight residency for BERT-large on v7x (64 MiB VMEM).
            result = _run(None)

    if return_attention:
        return result[0], result[1]
    return result[0]


def init_params(key, hidden, intermediate):
    ks = jax.random.split(key, 12)
    std = 0.02
    f32 = jnp.float32

    def w(k, din, dout):
        # Linear weight stored pre-transposed (in, out), bf16 for the MXU.
        return (jax.random.normal(k, (din, dout), f32) * std).astype(jnp.bfloat16)

    def b(k, dim):
        return jax.random.normal(k, (1, dim), f32) * std

    return {
        "wq": w(ks[0], hidden, hidden),        "bq": b(ks[6], hidden),
        "wk": w(ks[1], hidden, hidden),        "bk": b(ks[7], hidden),
        "wv": w(ks[2], hidden, hidden),        "bv": b(ks[8], hidden),
        "wso": w(ks[3], hidden, hidden),       "bso": b(ks[9], hidden),
        "g1": jnp.ones((1, hidden), f32),      "be1": jnp.zeros((1, hidden), f32),
        "wi": w(ks[4], hidden, intermediate),  "bi": b(ks[10], intermediate),
        "wo": w(ks[5], intermediate, hidden),  "bo": b(ks[11], hidden),
        "g2": jnp.ones((1, hidden), f32),      "be2": jnp.zeros((1, hidden), f32),
    }


def bert_layer_ref(x, p, *, num_heads):
    """Pure-JAX reference of the PyTorch forward (eval mode), f32 math, exact-erf GELU."""
    B, S, H = x.shape
    dh = H // num_heads
    f32 = jnp.float32

    def heads(t):  # [B,S,H] -> [B,nh,S,dh]
        return t.reshape(B, S, num_heads, dh).transpose(0, 2, 1, 3)

    wq = p["wq"].astype(f32); wk = p["wk"].astype(f32); wv = p["wv"].astype(f32)
    wso = p["wso"].astype(f32); wi = p["wi"].astype(f32); wo = p["wo"].astype(f32)

    q = heads(x @ wq + p["bq"][0])
    k = heads(x @ wk + p["bk"][0])
    v = heads(x @ wv + p["bv"][0])
    scores = jnp.einsum("bhqd,bhkd->bhqk", q, k) / math.sqrt(dh)
    attn = jax.nn.softmax(scores, axis=-1)
    ctx = jnp.einsum("bhqk,bhkd->bhqd", attn, v).transpose(0, 2, 1, 3).reshape(B, S, H)

    def ln(y, g, b):
        mu = y.mean(-1, keepdims=True)
        var = ((y - mu) ** 2).mean(-1, keepdims=True)
        return (y - mu) / jnp.sqrt(var + 1e-5) * g[0] + b[0]

    attn_out = ln(x + (ctx @ wso + p["bso"][0]), p["g1"], p["be1"])
    inter = attn_out @ wi + p["bi"][0]
    inter = 0.5 * inter * (1.0 + lax.erf(inter * (1.0 / math.sqrt(2.0))))
    out = ln(attn_out + (inter @ wo + p["bo"][0]), p["g2"], p["be2"])
    return out, attn


if __name__ == "__main__":
    B, S, H, NH, INTER = 2, 8, 32, 4, 64
    key = jax.random.PRNGKey(0)
    kx, kp = jax.random.split(key)
    x = jax.random.normal(kx, (B, S, H), jnp.float32)
    params = init_params(kp, H, INTER)

    # Default fast configuration: tanh GELU, bf16 attention-weight output.
    layer_out, attn_w = bert_layer(x, params, num_heads=NH)
    jax.block_until_ready((layer_out, attn_w))

    # Fastest path: skip the B*nh*S^2 attention-weights writeback entirely.
    out_only = bert_layer(x, params, num_heads=NH, return_attention=False)
    jax.block_until_ready(out_only)

    ref_out, ref_attn = bert_layer_ref(x, params, num_heads=NH)
    assert layer_out.shape == (B, S, H)
    assert attn_w.shape == (B, NH, S, S)
    # bf16 MXU operands, bf16 attention output and tanh GELU => compare against the
    # f32 exact-erf reference with a correspondingly relaxed tolerance.
    assert jnp.allclose(layer_out, ref_out, atol=2e-2, rtol=2e-2), \
        float(jnp.max(jnp.abs(layer_out - ref_out)))
    assert jnp.allclose(attn_w.astype(jnp.float32), ref_attn, atol=2e-2, rtol=2e-2), \
        float(jnp.max(jnp.abs(attn_w.astype(jnp.float32) - ref_attn)))
    assert jnp.allclose(out_only, ref_out, atol=2e-2, rtol=2e-2), \
        float(jnp.max(jnp.abs(out_only - ref_out)))

    print("KERNEL_OK")
</pallas_src>

<mosaic_0001>
module attributes {stable_mosaic.version = 11 : i64} {
  func.func @kernel(%arg0: i32, %arg1: i32, %arg2: memref<1x8x32xf32, #tpu.memory_space<vmem>>, %arg3: memref<32x32xbf16, #tpu.memory_space<vmem>>, %arg4: memref<1x32xf32, #tpu.memory_space<vmem>>, %arg5: memref<32x32xbf16, #tpu.memory_space<vmem>>, %arg6: memref<1x32xf32, #tpu.memory_space<vmem>>, %arg7: memref<32x32xbf16, #tpu.memory_space<vmem>>, %arg8: memref<1x32xf32, #tpu.memory_space<vmem>>, %arg9: memref<32x32xbf16, #tpu.memory_space<vmem>>, %arg10: memref<1x32xf32, #tpu.memory_space<vmem>>, %arg11: memref<1x32xf32, #tpu.memory_space<vmem>>, %arg12: memref<1x32xf32, #tpu.memory_space<vmem>>, %arg13: memref<32x64xbf16, #tpu.memory_space<vmem>>, %arg14: memref<1x64xf32, #tpu.memory_space<vmem>>, %arg15: memref<64x32xbf16, #tpu.memory_space<vmem>>, %arg16: memref<1x32xf32, #tpu.memory_space<vmem>>, %arg17: memref<1x32xf32, #tpu.memory_space<vmem>>, %arg18: memref<1x32xf32, #tpu.memory_space<vmem>>, %arg19: memref<1x8x32xf32, #tpu.memory_space<vmem>>, %arg20: memref<1x4x8x8xbf16, #tpu.memory_space<vmem>>, %arg21: memref<4x8x8xbf16, #tpu.memory_space<vmem>>, %arg22: memref<4x8x8xbf16, #tpu.memory_space<vmem>>) attributes {dimension_semantics = [#tpu.dimension_semantics<parallel>, #tpu.dimension_semantics<arbitrary>], iteration_bounds = array<i64: 2, 1>, scalar_prefetch = 0 : i64, scratch_operands = 2 : i64, tpu.core_type = #tpu.core_type<tc>, window_params = [{transform_indices = @transform_0, window_bounds = array<i64: 1, 8, 32>}, {pipeline_mode = #tpu.pipeline_mode<synchronous>, transform_indices = @transform_1, window_bounds = array<i64: 32, 32>}, {pipeline_mode = #tpu.pipeline_mode<synchronous>, transform_indices = @transform_2, window_bounds = array<i64: 1, 32>}, {pipeline_mode = #tpu.pipeline_mode<synchronous>, transform_indices = @transform_3, window_bounds = array<i64: 32, 32>}, {pipeline_mode = #tpu.pipeline_mode<synchronous>, transform_indices = @transform_4, window_bounds = array<i64: 1, 32>}, {pipeline_mode = #tpu.pipeline_mode<synchronous>, transform_indices = @transform_5, window_bounds = array<i64: 32, 32>}, {pipeline_mode = #tpu.pipeline_mode<synchronous>, transform_indices = @transform_6, window_bounds = array<i64: 1, 32>}, {pipeline_mode = #tpu.pipeline_mode<synchronous>, transform_indices = @transform_7, window_bounds = array<i64: 32, 32>}, {pipeline_mode = #tpu.pipeline_mode<synchronous>, transform_indices = @transform_8, window_bounds = array<i64: 1, 32>}, {pipeline_mode = #tpu.pipeline_mode<synchronous>, transform_indices = @transform_9, window_bounds = array<i64: 1, 32>}, {pipeline_mode = #tpu.pipeline_mode<synchronous>, transform_indices = @transform_10, window_bounds = array<i64: 1, 32>}, {pipeline_mode = #tpu.pipeline_mode<synchronous>, transform_indices = @transform_11, window_bounds = array<i64: 32, 64>}, {pipeline_mode = #tpu.pipeline_mode<synchronous>, transform_indices = @transform_12, window_bounds = array<i64: 1, 64>}, {pipeline_mode = #tpu.pipeline_mode<synchronous>, transform_indices = @transform_13, window_bounds = array<i64: 64, 32>}, {pipeline_mode = #tpu.pipeline_mode<synchronous>, transform_indices = @transform_14, window_bounds = array<i64: 1, 32>}, {pipeline_mode = #tpu.pipeline_mode<synchronous>, transform_indices = @transform_15, window_bounds = array<i64: 1, 32>}, {pipeline_mode = #tpu.pipeline_mode<synchronous>, transform_indices = @transform_16, window_bounds = array<i64: 1, 32>}, {transform_indices = @transform_17, window_bounds = array<i64: 1, 8, 32>}, {transform_indices = @transform_18, window_bounds = array<i64: 1, 4, 8, 8>}]} {
    %c0_i32 = arith.constant 0 : i32
    %0 = arith.cmpi eq, %arg1, %c0_i32 : i32
    %1 = arith.extui %0 : i1 to i32
    %c0_i32_0 = arith.constant 0 : i32
    %2 = arith.cmpi ne, %1, %c0_i32_0 : i32
    scf.if %2 {
      %c0_60 = arith.constant 0 : index
      %c0_61 = arith.constant 0 : index
      %c0_62 = arith.constant 0 : index
      %122 = vector.load %arg2[%c0_60, %c0_61, %c0_62] : memref<1x8x32xf32, #tpu.memory_space<vmem>>, vector<1x8x32xf32>
      %123 = vector.shape_cast %122 : vector<1x8x32xf32> to vector<8x32xf32>
      %124 = arith.truncf %123 : vector<8x32xf32> to vector<8x32xbf16>
      %c0_63 = arith.constant 0 : index
      %c0_64 = arith.constant 0 : index
      %125 = vector.load %arg5[%c0_63, %c0_64] : memref<32x32xbf16, #tpu.memory_space<vmem>>, vector<32x32xbf16>
      %cst_65 = arith.constant dense<0.000000e+00> : vector<8x32xf32>
      %126 = tpu.matmul %124, %125, %cst_65 {dimension_numbers = #tpu.dot_dimension_numbers<[1], [0], [0], [1], [0, 0, 1, 1], [], []>} : vector<8x32xbf16>, vector<32x32xbf16>, vector<8x32xf32> -> vector<8x32xf32>
      %c0_66 = arith.constant 0 : index
      %c0_67 = arith.constant 0 : index
      %127 = vector.load %arg6[%c0_66, %c0_67] : memref<1x32xf32, #tpu.memory_space<vmem>>, vector<1x32xf32>
      %128 = vector.broadcast %127 : vector<1x32xf32> to vector<8x32xf32>
      %129 = arith.addf %126, %128 : vector<8x32xf32>
      %c0_68 = arith.constant 0 : index
      %c0_69 = arith.constant 0 : index
      %130 = vector.load %arg7[%c0_68, %c0_69] : memref<32x32xbf16, #tpu.memory_space<vmem>>, vector<32x32xbf16>
      %cst_70 = arith.constant dense<0.000000e+00> : vector<8x32xf32>
      %131 = tpu.matmul %124, %130, %cst_70 {dimension_numbers = #tpu.dot_dimension_numbers<[1], [0], [0], [1], [0, 0, 1, 1], [], []>} : vector<8x32xbf16>, vector<32x32xbf16>, vector<8x32xf32> -> vector<8x32xf32>
      %c0_71 = arith.constant 0 : index
      %c0_72 = arith.constant 0 : index
      %132 = vector.load %arg8[%c0_71, %c0_72] : memref<1x32xf32, #tpu.memory_space<vmem>>, vector<1x32xf32>
      %133 = vector.broadcast %132 : vector<1x32xf32> to vector<8x32xf32>
      %134 = arith.addf %131, %133 : vector<8x32xf32>
      %135 = arith.truncf %129 : vector<8x32xf32> to vector<8x32xbf16>
      %136 = vector.shape_cast %135 : vector<8x32xbf16> to vector<8x4x8xbf16>
      %137 = tpu.transpose %136, [1, 0, 2] : vector<8x4x8xbf16> -> vector<4x8x8xbf16>
      %c0_73 = arith.constant 0 : index
      %c0_74 = arith.constant 0 : index
      %c0_75 = arith.constant 0 : index
      %138 = vector.load %arg21[%c0_73, %c0_74, %c0_75] : memref<4x8x8xbf16, #tpu.memory_space<vmem>>, vector<4x8x8xbf16>
      tpu.vector_store %arg21[%c0_73, %c0_74, %c0_75], %137 {strides = array<i32>} : memref<4x8x8xbf16, #tpu.memory_space<vmem>>, vector<4x8x8xbf16>,
      %139 = arith.truncf %134 : vector<8x32xf32> to vector<8x32xbf16>
      %140 = vector.shape_cast %139 : vector<8x32xbf16> to vector<8x4x8xbf16>
      %141 = tpu.transpose %140, [1, 0, 2] : vector<8x4x8xbf16> -> vector<4x8x8xbf16>
      %c0_76 = arith.constant 0 : index
      %c0_77 = arith.constant 0 : index
      %c0_78 = arith.constant 0 : index
      %142 = vector.load %arg22[%c0_76, %c0_77, %c0_78] : memref<4x8x8xbf16, #tpu.memory_space<vmem>>, vector<4x8x8xbf16>
      tpu.vector_store %arg22[%c0_76, %c0_77, %c0_78], %141 {strides = array<i32>} : memref<4x8x8xbf16, #tpu.memory_space<vmem>>, vector<4x8x8xbf16>,
    } else {
    }
    %c8_i32 = arith.constant 8 : i32
    %3 = arith.muli %arg1, %c8_i32 : i32
    %4 = tpu.assume_multiple %3, 8 : i32
    %c0 = arith.constant 0 : index
    %5 = arith.index_cast %4 : i32 to index
    %c0_1 = arith.constant 0 : index
    %6 = vector.load %arg2[%c0, %5, %c0_1] : memref<1x8x32xf32, #tpu.memory_space<vmem>>, vector<1x8x32xf32>
    %7 = vector.shape_cast %6 : vector<1x8x32xf32> to vector<8x32xf32>
    %8 = arith.truncf %7 : vector<8x32xf32> to vector<8x32xbf16>
    %c0_2 = arith.constant 0 : index
    %c0_3 = arith.constant 0 : index
    %9 = vector.load %arg3[%c0_2, %c0_3] : memref<32x32xbf16, #tpu.memory_space<vmem>>, vector<32x32xbf16>
    %cst = arith.constant dense<0.000000e+00> : vector<8x32xf32>
    %10 = tpu.matmul %8, %9, %cst {dimension_numbers = #tpu.dot_dimension_numbers<[1], [0], [0], [1], [0, 0, 1, 1], [], []>} : vector<8x32xbf16>, vector<32x32xbf16>, vector<8x32xf32> -> vector<8x32xf32>
    %c0_4 = arith.constant 0 : index
    %c0_5 = arith.constant 0 : index
    %11 = vector.load %arg4[%c0_4, %c0_5] : memref<1x32xf32, #tpu.memory_space<vmem>>, vector<1x32xf32>
    %12 = vector.broadcast %11 : vector<1x32xf32> to vector<8x32xf32>
    %13 = arith.addf %10, %12 : vector<8x32xf32>
    %14 = arith.truncf %13 : vector<8x32xf32> to vector<8x32xbf16>
    %15 = vector.shape_cast %14 : vector<8x32xbf16> to vector<8x4x8xbf16>
    %16 = tpu.transpose %15, [1, 0, 2] : vector<8x4x8xbf16> -> vector<4x8x8xbf16>
    %c0_6 = arith.constant 0 : index
    %c0_7 = arith.constant 0 : index
    %c0_8 = arith.constant 0 : index
    %17 = vector.load %arg21[%c0_6, %c0_7, %c0_8] : memref<4x8x8xbf16, #tpu.memory_space<vmem>>, vector<4x8x8xbf16>
    "tpu.trace_start"() <{level = 10 : i32, message = "hqd,hkd->hqk"}> : () -> ()
    %cst_9 = arith.constant dense<0.000000e+00> : vector<4x8x8xf32>
    %18 = tpu.matmul %16, %17, %cst_9 {dimension_numbers = #tpu.dot_dimension_numbers<[2], [2], [1], [1], [0, 0, 0, 1, 1, 1], [0], [0]>} : vector<4x8x8xbf16>, vector<4x8x8xbf16>, vector<4x8x8xf32> -> vector<4x8x8xf32>
    "tpu.trace_stop"() : () -> ()
    %cst_10 = arith.constant dense<0xFF800000> : vector<4x8xf32>
    %19 = vector.multi_reduction <maximumf>, %18, %cst_10 [2] : vector<4x8x8xf32> to vector<4x8xf32>
    %20 = vector.shape_cast %19 : vector<4x8xf32> to vector<4x8x1xf32>
    %21 = vector.broadcast %20 : vector<4x8x1xf32> to vector<4x8x8xf32>
    %22 = arith.subf %18, %21 : vector<4x8x8xf32>
    %23 = math.exp %22 : vector<4x8x8xf32>
    %cst_11 = arith.constant dense<0.000000e+00> : vector<4x8xf32>
    %24 = vector.multi_reduction <add>, %23, %cst_11 [2] : vector<4x8x8xf32> to vector<4x8xf32>
    %25 = vector.shape_cast %24 : vector<4x8xf32> to vector<4x8x1xf32>
    %26 = tpu.reciprocal %25 : vector<4x8x1xf32> -> vector<4x8x1xf32>
    %27 = vector.broadcast %26 : vector<4x8x1xf32> to vector<4x8x8xf32>
    %28 = arith.mulf %23, %27 : vector<4x8x8xf32>
    %29 = arith.truncf %28 : vector<4x8x8xf32> to vector<4x8x8xbf16>
    %c0_12 = arith.constant 0 : index
    %c0_13 = arith.constant 0 : index
    %c0_14 = arith.constant 0 : index
    %c0_15 = arith.constant 0 : index
    %30 = vector.load %arg20[%c0_12, %c0_13, %c0_14, %c0_15] : memref<1x4x8x8xbf16, #tpu.memory_space<vmem>>, vector<1x4x8x8xbf16>
    %31 = vector.shape_cast %30 : vector<1x4x8x8xbf16> to vector<4x8x8xbf16>
    %32 = vector.shape_cast %29 : vector<4x8x8xbf16> to vector<1x4x8x8xbf16>
    tpu.vector_store %arg20[%c0_12, %c0_13, %c0_14, %c0_15], %32 {strides = array<i32>} : memref<1x4x8x8xbf16, #tpu.memory_space<vmem>>, vector<1x4x8x8xbf16>,
    %33 = arith.truncf %28 : vector<4x8x8xf32> to vector<4x8x8xbf16>
    %c0_16 = arith.constant 0 : index
    %c0_17 = arith.constant 0 : index
    %c0_18 = arith.constant 0 : index
    %34 = vector.load %arg22[%c0_16, %c0_17, %c0_18] : memref<4x8x8xbf16, #tpu.memory_space<vmem>>, vector<4x8x8xbf16>
    "tpu.trace_start"() <{level = 10 : i32, message = "hqk,hkd->hqd"}> : () -> ()
    %cst_19 = arith.constant dense<0.000000e+00> : vector<4x8x8xf32>
    %35 = tpu.matmul %33, %34, %cst_19 {dimension_numbers = #tpu.dot_dimension_numbers<[2], [1], [1], [2], [0, 0, 0, 1, 1, 2], [0], [0]>} : vector<4x8x8xbf16>, vector<4x8x8xbf16>, vector<4x8x8xf32> -> vector<4x8x8xf32>
    "tpu.trace_stop"() : () -> ()
    %36 = arith.truncf %35 : vector<4x8x8xf32> to vector<4x8x8xbf16>
    %37 = tpu.transpose %36, [1, 0, 2] : vector<4x8x8xbf16> -> vector<8x4x8xbf16>
    %38 = vector.shape_cast %37 : vector<8x4x8xbf16> to vector<8x32xbf16>
    %c0_20 = arith.constant 0 : index
    %c0_21 = arith.constant 0 : index
    %39 = vector.load %arg9[%c0_20, %c0_21] : memref<32x32xbf16, #tpu.memory_space<vmem>>, vector<32x32xbf16>
    %cst_22 = arith.constant dense<0.000000e+00> : vector<8x32xf32>
    %40 = tpu.matmul %38, %39, %cst_22 {dimension_numbers = #tpu.dot_dimension_numbers<[1], [0], [0], [1], [0, 0, 1, 1], [], []>} : vector<8x32xbf16>, vector<32x32xbf16>, vector<8x32xf32> -> vector<8x32xf32>
    %c0_23 = arith.constant 0 : index
    %c0_24 = arith.constant 0 : index
    %41 = vector.load %arg10[%c0_23, %c0_24] : memref<1x32xf32, #tpu.memory_space<vmem>>, vector<1x32xf32>
    %42 = vector.broadcast %41 : vector<1x32xf32> to vector<8x32xf32>
    %43 = arith.addf %40, %42 : vector<8x32xf32>
    %44 = arith.addf %7, %43 : vector<8x32xf32>
    %c0_25 = arith.constant 0 : index
    %c0_26 = arith.constant 0 : index
    %45 = vector.load %arg11[%c0_25, %c0_26] : memref<1x32xf32, #tpu.memory_space<vmem>>, vector<1x32xf32>
    %c0_27 = arith.constant 0 : index
    %c0_28 = arith.constant 0 : index
    %46 = vector.load %arg12[%c0_27, %c0_28] : memref<1x32xf32, #tpu.memory_space<vmem>>, vector<1x32xf32>
    %cst_29 = arith.constant dense<0.000000e+00> : vector<8xf32>
    %47 = vector.multi_reduction <add>, %44, %cst_29 [1] : vector<8x32xf32> to vector<8xf32>
    %48 = vector.shape_cast %47 : vector<8xf32> to vector<8x1xf32>
    %cst_30 = arith.constant 3.200000e+01 : f32
    %49 = vector.broadcast %cst_30 : f32 to vector<8x1xf32>
    %50 = arith.divf %48, %49 : vector<8x1xf32>
    %51 = vector.broadcast %50 : vector<8x1xf32> to vector<8x32xf32>
    %52 = arith.subf %44, %51 : vector<8x32xf32>
    %53 = arith.mulf %52, %52 : vector<8x32xf32>
    %cst_31 = arith.constant dense<0.000000e+00> : vector<8xf32>
    %54 = vector.multi_reduction <add>, %53, %cst_31 [1] : vector<8x32xf32> to vector<8xf32>
    %55 = vector.shape_cast %54 : vector<8xf32> to vector<8x1xf32>
    %cst_32 = arith.constant 3.200000e+01 : f32
    %56 = vector.broadcast %cst_32 : f32 to vector<8x1xf32>
    %57 = arith.divf %55, %56 : vector<8x1xf32>
    %58 = vector.broadcast %50 : vector<8x1xf32> to vector<8x32xf32>
    %59 = arith.subf %44, %58 : vector<8x32xf32>
    %cst_33 = arith.constant 9.99999974E-6 : f32
    %60 = vector.broadcast %cst_33 : f32 to vector<8x1xf32>
    %61 = arith.addf %57, %60 : vector<8x1xf32>
    %62 = math.rsqrt %61 : vector<8x1xf32>
    %63 = vector.broadcast %62 : vector<8x1xf32> to vector<8x32xf32>
    %64 = arith.mulf %59, %63 : vector<8x32xf32>
    %65 = vector.broadcast %45 : vector<1x32xf32> to vector<8x32xf32>
    %66 = arith.mulf %64, %65 : vector<8x32xf32>
    %67 = vector.broadcast %46 : vector<1x32xf32> to vector<8x32xf32>
    %68 = arith.addf %66, %67 : vector<8x32xf32>
    %69 = arith.truncf %68 : vector<8x32xf32> to vector<8x32xbf16>
    %c0_34 = arith.constant 0 : index
    %c0_35 = arith.constant 0 : index
    %70 = vector.load %arg13[%c0_34, %c0_35] : memref<32x64xbf16, #tpu.memory_space<vmem>>, vector<32x64xbf16>
    %cst_36 = arith.constant dense<0.000000e+00> : vector<8x64xf32>
    %71 = tpu.matmul %69, %70, %cst_36 {dimension_numbers = #tpu.dot_dimension_numbers<[1], [0], [0], [1], [0, 0, 1, 1], [], []>} : vector<8x32xbf16>, vector<32x64xbf16>, vector<8x64xf32> -> vector<8x64xf32>
    %c0_37 = arith.constant 0 : index
    %c0_38 = arith.constant 0 : index
    %72 = vector.load %arg14[%c0_37, %c0_38] : memref<1x64xf32, #tpu.memory_space<vmem>>, vector<1x64xf32>
    %73 = vector.broadcast %72 : vector<1x64xf32> to vector<8x64xf32>
    %74 = arith.addf %71, %73 : vector<8x64xf32>
    %75 = arith.mulf %74, %74 : vector<8x64xf32>
    %76 = arith.mulf %74, %75 : vector<8x64xf32>
    %cst_39 = arith.constant 4.471500e-02 : f32
    %77 = vector.broadcast %cst_39 : f32 to vector<8x64xf32>
    %78 = arith.mulf %77, %76 : vector<8x64xf32>
    %79 = arith.addf %74, %78 : vector<8x64xf32>
    %cst_40 = arith.constant 0.797884583 : f32
    %80 = vector.broadcast %cst_40 : f32 to vector<8x64xf32>
    %81 = arith.mulf %80, %79 : vector<8x64xf32>
    %82 = math.tanh %81 : vector<8x64xf32>
    %cst_41 = arith.constant 1.000000e+00 : f32
    %83 = vector.broadcast %cst_41 : f32 to vector<8x64xf32>
    %84 = arith.addf %83, %82 : vector<8x64xf32>
    %cst_42 = arith.constant 5.000000e-01 : f32
    %85 = vector.broadcast %cst_42 : f32 to vector<8x64xf32>
    %86 = arith.mulf %85, %84 : vector<8x64xf32>
    %87 = arith.mulf %74, %86 : vector<8x64xf32>
    %88 = arith.truncf %87 : vector<8x64xf32> to vector<8x64xbf16>
    %c0_43 = arith.constant 0 : index
    %c0_44 = arith.constant 0 : index
    %89 = vector.load %arg15[%c0_43, %c0_44] : memref<64x32xbf16, #tpu.memory_space<vmem>>, vector<64x32xbf16>
    %cst_45 = arith.constant dense<0.000000e+00> : vector<8x32xf32>
    %90 = tpu.matmul %88, %89, %cst_45 {dimension_numbers = #tpu.dot_dimension_numbers<[1], [0], [0], [1], [0, 0, 1, 1], [], []>} : vector<8x64xbf16>, vector<64x32xbf16>, vector<8x32xf32> -> vector<8x32xf32>
    %c0_46 = arith.constant 0 : index
    %c0_47 = arith.constant 0 : index
    %91 = vector.load %arg16[%c0_46, %c0_47] : memref<1x32xf32, #tpu.memory_space<vmem>>, vector<1x32xf32>
    %92 = vector.broadcast %91 : vector<1x32xf32> to vector<8x32xf32>
    %93 = arith.addf %90, %92 : vector<8x32xf32>
    %94 = arith.addf %68, %93 : vector<8x32xf32>
    %c0_48 = arith.constant 0 : index
    %c0_49 = arith.constant 0 : index
    %95 = vector.load %arg17[%c0_48, %c0_49] : memref<1x32xf32, #tpu.memory_space<vmem>>, vector<1x32xf32>
    %c0_50 = arith.constant 0 : index
    %c0_51 = arith.constant 0 : index
    %96 = vector.load %arg18[%c0_50, %c0_51] : memref<1x32xf32, #tpu.memory_space<vmem>>, vector<1x32xf32>
    %cst_52 = arith.constant dense<0.000000e+00> : vector<8xf32>
    %97 = vector.multi_reduction <add>, %94, %cst_52 [1] : vector<8x32xf32> to vector<8xf32>
    %98 = vector.shape_cast %97 : vector<8xf32> to vector<8x1xf32>
    %cst_53 = arith.constant 3.200000e+01 : f32
    %99 = vector.broadcast %cst_53 : f32 to vector<8x1xf32>
    %100 = arith.divf %98, %99 : vector<8x1xf32>
    %101 = vector.broadcast %100 : vector<8x1xf32> to vector<8x32xf32>
    %102 = arith.subf %94, %101 : vector<8x32xf32>
    %103 = arith.mulf %102, %102 : vector<8x32xf32>
    %cst_54 = arith.constant dense<0.000000e+00> : vector<8xf32>
    %104 = vector.multi_reduction <add>, %103, %cst_54 [1] : vector<8x32xf32> to vector<8xf32>
    %105 = vector.shape_cast %104 : vector<8xf32> to vector<8x1xf32>
    %cst_55 = arith.constant 3.200000e+01 : f32
    %106 = vector.broadcast %cst_55 : f32 to vector<8x1xf32>
    %107 = arith.divf %105, %106 : vector<8x1xf32>
    %108 = vector.broadcast %100 : vector<8x1xf32> to vector<8x32xf32>
    %109 = arith.subf %94, %108 : vector<8x32xf32>
    %cst_56 = arith.constant 9.99999974E-6 : f32
    %110 = vector.broadcast %cst_56 : f32 to vector<8x1xf32>
    %111 = arith.addf %107, %110 : vector<8x1xf32>
    %112 = math.rsqrt %111 : vector<8x1xf32>
    %113 = vector.broadcast %112 : vector<8x1xf32> to vector<8x32xf32>
    %114 = arith.mulf %109, %113 : vector<8x32xf32>
    %115 = vector.broadcast %95 : vector<1x32xf32> to vector<8x32xf32>
    %116 = arith.mulf %114, %115 : vector<8x32xf32>
    %117 = vector.broadcast %96 : vector<1x32xf32> to vector<8x32xf32>
    %118 = arith.addf %116, %117 : vector<8x32xf32>
    %c0_57 = arith.constant 0 : index
    %c0_58 = arith.constant 0 : index
    %c0_59 = arith.constant 0 : index
    %119 = vector.load %arg19[%c0_57, %c0_58, %c0_59] : memref<1x8x32xf32, #tpu.memory_space<vmem>>, vector<1x8x32xf32>
    %120 = vector.shape_cast %119 : vector<1x8x32xf32> to vector<8x32xf32>
    %121 = vector.shape_cast %118 : vector<8x32xf32> to vector<1x8x32xf32>
    tpu.vector_store %arg19[%c0_57, %c0_58, %c0_59], %121 {strides = array<i32>} : memref<1x8x32xf32, #tpu.memory_space<vmem>>, vector<1x8x32xf32>,
    return
  }
  func.func @transform_0(%arg0: i32, %arg1: i32) -> (i32, i32, i32) {
    %c0_i32 = arith.constant 0 : i32
    %c0_i32_0 = arith.constant 0 : i32
    %c0_i32_1 = arith.constant 0 : i32
    return %arg0, %c0_i32, %c0_i32_0 : i32, i32, i32
  }
  func.func @transform_1(%arg0: i32, %arg1: i32) -> (i32, i32) {
    %c0_i32 = arith.constant 0 : i32
    %c0_i32_0 = arith.constant 0 : i32
    %c0_i32_1 = arith.constant 0 : i32
    return %c0_i32, %c0_i32_0 : i32, i32
  }
  func.func @transform_2(%arg0: i32, %arg1: i32) -> (i32, i32) {
    %c0_i32 = arith.constant 0 : i32
    %c0_i32_0 = arith.constant 0 : i32
    %c0_i32_1 = arith.constant 0 : i32
    return %c0_i32, %c0_i32_0 : i32, i32
  }
  func.func @transform_3(%arg0: i32, %arg1: i32) -> (i32, i32) {
    %c0_i32 = arith.constant 0 : i32
    %c0_i32_0 = arith.constant 0 : i32
    %c0_i32_1 = arith.constant 0 : i32
    return %c0_i32, %c0_i32_0 : i32, i32
  }
  func.func @transform_4(%arg0: i32, %arg1: i32) -> (i32, i32) {
    %c0_i32 = arith.constant 0 : i32
    %c0_i32_0 = arith.constant 0 : i32
    %c0_i32_1 = arith.constant 0 : i32
    return %c0_i32, %c0_i32_0 : i32, i32
  }
  func.func @transform_5(%arg0: i32, %arg1: i32) -> (i32, i32) {
    %c0_i32 = arith.constant 0 : i32
    %c0_i32_0 = arith.constant 0 : i32
    %c0_i32_1 = arith.constant 0 : i32
    return %c0_i32, %c0_i32_0 : i32, i32
  }
  func.func @transform_6(%arg0: i32, %arg1: i32) -> (i32, i32) {
    %c0_i32 = arith.constant 0 : i32
    %c0_i32_0 = arith.constant 0 : i32
    %c0_i32_1 = arith.constant 0 : i32
    return %c0_i32, %c0_i32_0 : i32, i32
  }
  func.func @transform_7(%arg0: i32, %arg1: i32) -> (i32, i32) {
    %c0_i32 = arith.constant 0 : i32
    %c0_i32_0 = arith.constant 0 : i32
    %c0_i32_1 = arith.constant 0 : i32
    return %c0_i32, %c0_i32_0 : i32, i32
  }
  func.func @transform_8(%arg0: i32, %arg1: i32) -> (i32, i32) {
    %c0_i32 = arith.constant 0 : i32
    %c0_i32_0 = arith.constant 0 : i32
    %c0_i32_1 = arith.constant 0 : i32
    return %c0_i32, %c0_i32_0 : i32, i32
  }
  func.func @transform_9(%arg0: i32, %arg1: i32) -> (i32, i32) {
    %c0_i32 = arith.constant 0 : i32
    %c0_i32_0 = arith.constant 0 : i32
    %c0_i32_1 = arith.constant 0 : i32
    return %c0_i32, %c0_i32_0 : i32, i32
  }
  func.func @transform_10(%arg0: i32, %arg1: i32) -> (i32, i32) {
    %c0_i32 = arith.constant 0 : i32
    %c0_i32_0 = arith.constant 0 : i32
    %c0_i32_1 = arith.constant 0 : i32
    return %c0_i32, %c0_i32_0 : i32, i32
  }
  func.func @transform_11(%arg0: i32, %arg1: i32) -> (i32, i32) {
    %c0_i32 = arith.constant 0 : i32
    %c0_i32_0 = arith.constant 0 : i32
    %c0_i32_1 = arith.constant 0 : i32
    return %c0_i32, %c0_i32_0 : i32, i32
  }
  func.func @transform_12(%arg0: i32, %arg1: i32) -> (i32, i32) {
    %c0_i32 = arith.constant 0 : i32
    %c0_i32_0 = arith.constant 0 : i32
    %c0_i32_1 = arith.constant 0 : i32
    return %c0_i32, %c0_i32_0 : i32, i32
  }
  func.func @transform_13(%arg0: i32, %arg1: i32) -> (i32, i32) {
    %c0_i32 = arith.constant 0 : i32
    %c0_i32_0 = arith.constant 0 : i32
    %c0_i32_1 = arith.constant 0 : i32
    return %c0_i32, %c0_i32_0 : i32, i32
  }
  func.func @transform_14(%arg0: i32, %arg1: i32) -> (i32, i32) {
    %c0_i32 = arith.constant 0 : i32
    %c0_i32_0 = arith.constant 0 : i32
    %c0_i32_1 = arith.constant 0 : i32
    return %c0_i32, %c0_i32_0 : i32, i32
  }
  func.func @transform_15(%arg0: i32, %arg1: i32) -> (i32, i32) {
    %c0_i32 = arith.constant 0 : i32
    %c0_i32_0 = arith.constant 0 : i32
    %c0_i32_1 = arith.constant 0 : i32
    return %c0_i32, %c0_i32_0 : i32, i32
  }
  func.func @transform_16(%arg0: i32, %arg1: i32) -> (i32, i32) {
    %c0_i32 = arith.constant 0 : i32
    %c0_i32_0 = arith.constant 0 : i32
    %c0_i32_1 = arith.constant 0 : i32
    return %c0_i32, %c0_i32_0 : i32, i32
  }
  func.func @transform_17(%arg0: i32, %arg1: i32) -> (i32, i32, i32) {
    %c0_i32 = arith.constant 0 : i32
    %c0_i32_0 = arith.constant 0 : i32
    return %arg0, %arg1, %c0_i32 : i32, i32, i32
  }
  func.func @transform_18(%arg0: i32, %arg1: i32) -> (i32, i32, i32, i32) {
    %c0_i32 = arith.constant 0 : i32
    %c0_i32_0 = arith.constant 0 : i32
    %c0_i32_1 = arith.constant 0 : i32
    return %arg0, %c0_i32, %arg1, %c0_i32_0 : i32, i32, i32, i32
  }
}

module attributes {stable_mosaic.version = 11 : i64} {
  func.func @kernel(%arg0: i32, %arg1: i32, %arg2: memref<1x8x32xf32, #tpu.memory_space<vmem>>, %arg3: memref<32x32xbf16, #tpu.memory_space<vmem>>, %arg4: memref<1x32xf32, #tpu.memory_space<vmem>>, %arg5: memref<32x32xbf16, #tpu.memory_space<vmem>>, %arg6: memref<1x32xf32, #tpu.memory_space<vmem>>, %arg7: memref<32x32xbf16, #tpu.memory_space<vmem>>, %arg8: memref<1x32xf32, #tpu.memory_space<vmem>>, %arg9: memref<32x32xbf16, #tpu.memory_space<vmem>>, %arg10: memref<1x32xf32, #tpu.memory_space<vmem>>, %arg11: memref<1x32xf32, #tpu.memory_space<vmem>>, %arg12: memref<1x32xf32, #tpu.memory_space<vmem>>, %arg13: memref<32x64xbf16, #tpu.memory_space<vmem>>, %arg14: memref<1x64xf32, #tpu.memory_space<vmem>>, %arg15: memref<64x32xbf16, #tpu.memory_space<vmem>>, %arg16: memref<1x32xf32, #tpu.memory_space<vmem>>, %arg17: memref<1x32xf32, #tpu.memory_space<vmem>>, %arg18: memref<1x32xf32, #tpu.memory_space<vmem>>, %arg19: memref<1x8x32xf32, #tpu.memory_space<vmem>>, %arg20: memref<1x4x8x8xbf16, #tpu.memory_space<vmem>>, %arg21: memref<4x8x8xbf16, #tpu.memory_space<vmem>>, %arg22: memref<4x8x8xbf16, #tpu.memory_space<vmem>>) attributes {dimension_semantics = [#tpu.dimension_semantics<parallel>, #tpu.dimension_semantics<arbitrary>], iteration_bounds = array<i64: 2, 1>, scalar_prefetch = 0 : i64, scratch_operands = 2 : i64, tpu.core_type = #tpu.core_type<tc>, window_params = [{transform_indices = @transform_0, window_bounds = array<i64: 1, 8, 32>}, {pipeline_mode = #tpu.pipeline_mode<synchronous>, transform_indices = @transform_1, window_bounds = array<i64: 32, 32>}, {pipeline_mode = #tpu.pipeline_mode<synchronous>, transform_indices = @transform_2, window_bounds = array<i64: 1, 32>}, {pipeline_mode = #tpu.pipeline_mode<synchronous>, transform_indices = @transform_3, window_bounds = array<i64: 32, 32>}, {pipeline_mode = #tpu.pipeline_mode<synchronous>, transform_indices = @transform_4, window_bounds = array<i64: 1, 32>}, {pipeline_mode = #tpu.pipeline_mode<synchronous>, transform_indices = @transform_5, window_bounds = array<i64: 32, 32>}, {pipeline_mode = #tpu.pipeline_mode<synchronous>, transform_indices = @transform_6, window_bounds = array<i64: 1, 32>}, {pipeline_mode = #tpu.pipeline_mode<synchronous>, transform_indices = @transform_7, window_bounds = array<i64: 32, 32>}, {pipeline_mode = #tpu.pipeline_mode<synchronous>, transform_indices = @transform_8, window_bounds = array<i64: 1, 32>}, {pipeline_mode = #tpu.pipeline_mode<synchronous>, transform_indices = @transform_9, window_bounds = array<i64: 1, 32>}, {pipeline_mode = #tpu.pipeline_mode<synchronous>, transform_indices = @transform_10, window_bounds = array<i64: 1, 32>}, {pipeline_mode = #tpu.pipeline_mode<synchronous>, transform_indices = @transform_11, window_bounds = array<i64: 32, 64>}, {pipeline_mode = #tpu.pipeline_mode<synchronous>, transform_indices = @transform_12, window_bounds = array<i64: 1, 64>}, {pipeline_mode = #tpu.pipeline_mode<synchronous>, transform_indices = @transform_13, window_bounds = array<i64: 64, 32>}, {pipeline_mode = #tpu.pipeline_mode<synchronous>, transform_indices = @transform_14, window_bounds = array<i64: 1, 32>}, {pipeline_mode = #tpu.pipeline_mode<synchronous>, transform_indices = @transform_15, window_bounds = array<i64: 1, 32>}, {pipeline_mode = #tpu.pipeline_mode<synchronous>, transform_indices = @transform_16, window_bounds = array<i64: 1, 32>}, {transform_indices = @transform_17, window_bounds = array<i64: 1, 8, 32>}, {transform_indices = @transform_18, window_bounds = array<i64: 1, 4, 8, 8>}]} {
    %c0_i32 = arith.constant 0 : i32
    %0 = arith.cmpi eq, %arg1, %c0_i32 : i32
    %1 = arith.extui %0 : i1 to i32
    %c0_i32_0 = arith.constant 0 : i32
    %2 = arith.cmpi ne, %1, %c0_i32_0 : i32
    scf.if %2 {
      %c0_60 = arith.constant 0 : index
      %c0_61 = arith.constant 0 : index
      %c0_62 = arith.constant 0 : index
      %122 = vector.load %arg2[%c0_60, %c0_61, %c0_62] : memref<1x8x32xf32, #tpu.memory_space<vmem>>, vector<1x8x32xf32>
      %123 = vector.shape_cast %122 : vector<1x8x32xf32> to vector<8x32xf32>
      %124 = arith.truncf %123 : vector<8x32xf32> to vector<8x32xbf16>
      %c0_63 = arith.constant 0 : index
      %c0_64 = arith.constant 0 : index
      %125 = vector.load %arg5[%c0_63, %c0_64] : memref<32x32xbf16, #tpu.memory_space<vmem>>, vector<32x32xbf16>
      %cst_65 = arith.constant dense<0.000000e+00> : vector<8x32xf32>
      %126 = tpu.matmul %124, %125, %cst_65 {dimension_numbers = #tpu.dot_dimension_numbers<[1], [0], [0], [1], [0, 0, 1, 1], [], []>} : vector<8x32xbf16>, vector<32x32xbf16>, vector<8x32xf32> -> vector<8x32xf32>
      %c0_66 = arith.constant 0 : index
      %c0_67 = arith.constant 0 : index
      %127 = vector.load %arg6[%c0_66, %c0_67] : memref<1x32xf32, #tpu.memory_space<vmem>>, vector<1x32xf32>
      %128 = vector.broadcast %127 : vector<1x32xf32> to vector<8x32xf32>
      %129 = arith.addf %126, %128 : vector<8x32xf32>
      %c0_68 = arith.constant 0 : index
      %c0_69 = arith.constant 0 : index
      %130 = vector.load %arg7[%c0_68, %c0_69] : memref<32x32xbf16, #tpu.memory_space<vmem>>, vector<32x32xbf16>
      %cst_70 = arith.constant dense<0.000000e+00> : vector<8x32xf32>
      %131 = tpu.matmul %124, %130, %cst_70 {dimension_numbers = #tpu.dot_dimension_numbers<[1], [0], [0], [1], [0, 0, 1, 1], [], []>} : vector<8x32xbf16>, vector<32x32xbf16>, vector<8x32xf32> -> vector<8x32xf32>
      %c0_71 = arith.constant 0 : index
      %c0_72 = arith.constant 0 : index
      %132 = vector.load %arg8[%c0_71, %c0_72] : memref<1x32xf32, #tpu.memory_space<vmem>>, vector<1x32xf32>
      %133 = vector.broadcast %132 : vector<1x32xf32> to vector<8x32xf32>
      %134 = arith.addf %131, %133 : vector<8x32xf32>
      %135 = arith.truncf %129 : vector<8x32xf32> to vector<8x32xbf16>
      %136 = vector.shape_cast %135 : vector<8x32xbf16> to vector<8x4x8xbf16>
      %137 = tpu.transpose %136, [1, 0, 2] : vector<8x4x8xbf16> -> vector<4x8x8xbf16>
      %c0_73 = arith.constant 0 : index
      %c0_74 = arith.constant 0 : index
      %c0_75 = arith.constant 0 : index
      %138 = vector.load %arg21[%c0_73, %c0_74, %c0_75] : memref<4x8x8xbf16, #tpu.memory_space<vmem>>, vector<4x8x8xbf16>
      tpu.vector_store %arg21[%c0_73, %c0_74, %c0_75], %137 {strides = array<i32>} : memref<4x8x8xbf16, #tpu.memory_space<vmem>>, vector<4x8x8xbf16>,
      %139 = arith.truncf %134 : vector<8x32xf32> to vector<8x32xbf16>
      %140 = vector.shape_cast %139 : vector<8x32xbf16> to vector<8x4x8xbf16>
      %141 = tpu.transpose %140, [1, 0, 2] : vector<8x4x8xbf16> -> vector<4x8x8xbf16>
      %c0_76 = arith.constant 0 : index
      %c0_77 = arith.constant 0 : index
      %c0_78 = arith.constant 0 : index
      %142 = vector.load %arg22[%c0_76, %c0_77, %c0_78] : memref<4x8x8xbf16, #tpu.memory_space<vmem>>, vector<4x8x8xbf16>
      tpu.vector_store %arg22[%c0_76, %c0_77, %c0_78], %141 {strides = array<i32>} : memref<4x8x8xbf16, #tpu.memory_space<vmem>>, vector<4x8x8xbf16>,
    } else {
    }
    %c8_i32 = arith.constant 8 : i32
    %3 = arith.muli %arg1, %c8_i32 : i32
    %4 = tpu.assume_multiple %3, 8 : i32
    %c0 = arith.constant 0 : index
    %5 = arith.index_cast %4 : i32 to index
    %c0_1 = arith.constant 0 : index
    %6 = vector.load %arg2[%c0, %5, %c0_1] : memref<1x8x32xf32, #tpu.memory_space<vmem>>, vector<1x8x32xf32>
    %7 = vector.shape_cast %6 : vector<1x8x32xf32> to vector<8x32xf32>
    %8 = arith.truncf %7 : vector<8x32xf32> to vector<8x32xbf16>
    %c0_2 = arith.constant 0 : index
    %c0_3 = arith.constant 0 : index
    %9 = vector.load %arg3[%c0_2, %c0_3] : memref<32x32xbf16, #tpu.memory_space<vmem>>, vector<32x32xbf16>
    %cst = arith.constant dense<0.000000e+00> : vector<8x32xf32>
    %10 = tpu.matmul %8, %9, %cst {dimension_numbers = #tpu.dot_dimension_numbers<[1], [0], [0], [1], [0, 0, 1, 1], [], []>} : vector<8x32xbf16>, vector<32x32xbf16>, vector<8x32xf32> -> vector<8x32xf32>
    %c0_4 = arith.constant 0 : index
    %c0_5 = arith.constant 0 : index
    %11 = vector.load %arg4[%c0_4, %c0_5] : memref<1x32xf32, #tpu.memory_space<vmem>>, vector<1x32xf32>
    %12 = vector.broadcast %11 : vector<1x32xf32> to vector<8x32xf32>
    %13 = arith.addf %10, %12 : vector<8x32xf32>
    %14 = arith.truncf %13 : vector<8x32xf32> to vector<8x32xbf16>
    %15 = vector.shape_cast %14 : vector<8x32xbf16> to vector<8x4x8xbf16>
    %16 = tpu.transpose %15, [1, 0, 2] : vector<8x4x8xbf16> -> vector<4x8x8xbf16>
    %c0_6 = arith.constant 0 : index
    %c0_7 = arith.constant 0 : index
    %c0_8 = arith.constant 0 : index
    %17 = vector.load %arg21[%c0_6, %c0_7, %c0_8] : memref<4x8x8xbf16, #tpu.memory_space<vmem>>, vector<4x8x8xbf16>
    "tpu.trace_start"() <{level = 10 : i32, message = "hqd,hkd->hqk"}> : () -> ()
    %cst_9 = arith.constant dense<0.000000e+00> : vector<4x8x8xf32>
    %18 = tpu.matmul %16, %17, %cst_9 {dimension_numbers = #tpu.dot_dimension_numbers<[2], [2], [1], [1], [0, 0, 0, 1, 1, 1], [0], [0]>} : vector<4x8x8xbf16>, vector<4x8x8xbf16>, vector<4x8x8xf32> -> vector<4x8x8xf32>
    "tpu.trace_stop"() : () -> ()
    %cst_10 = arith.constant dense<0xFF800000> : vector<4x8xf32>
    %19 = vector.multi_reduction <maximumf>, %18, %cst_10 [2] : vector<4x8x8xf32> to vector<4x8xf32>
    %20 = vector.shape_cast %19 : vector<4x8xf32> to vector<4x8x1xf32>
    %21 = vector.broadcast %20 : vector<4x8x1xf32> to vector<4x8x8xf32>
    %22 = arith.subf %18, %21 : vector<4x8x8xf32>
    %23 = math.exp %22 : vector<4x8x8xf32>
    %cst_11 = arith.constant dense<0.000000e+00> : vector<4x8xf32>
    %24 = vector.multi_reduction <add>, %23, %cst_11 [2] : vector<4x8x8xf32> to vector<4x8xf32>
    %25 = vector.shape_cast %24 : vector<4x8xf32> to vector<4x8x1xf32>
    %26 = tpu.reciprocal %25 : vector<4x8x1xf32> -> vector<4x8x1xf32>
    %27 = vector.broadcast %26 : vector<4x8x1xf32> to vector<4x8x8xf32>
    %28 = arith.mulf %23, %27 : vector<4x8x8xf32>
    %29 = arith.truncf %28 : vector<4x8x8xf32> to vector<4x8x8xbf16>
    %c0_12 = arith.constant 0 : index
    %c0_13 = arith.constant 0 : index
    %c0_14 = arith.constant 0 : index
    %c0_15 = arith.constant 0 : index
    %30 = vector.load %arg20[%c0_12, %c0_13, %c0_14, %c0_15] : memref<1x4x8x8xbf16, #tpu.memory_space<vmem>>, vector<1x4x8x8xbf16>
    %31 = vector.shape_cast %30 : vector<1x4x8x8xbf16> to vector<4x8x8xbf16>
    %32 = vector.shape_cast %29 : vector<4x8x8xbf16> to vector<1x4x8x8xbf16>
    tpu.vector_store %arg20[%c0_12, %c0_13, %c0_14, %c0_15], %32 {strides = array<i32>} : memref<1x4x8x8xbf16, #tpu.memory_space<vmem>>, vector<1x4x8x8xbf16>,
    %33 = arith.truncf %28 : vector<4x8x8xf32> to vector<4x8x8xbf16>
    %c0_16 = arith.constant 0 : index
    %c0_17 = arith.constant 0 : index
    %c0_18 = arith.constant 0 : index
    %34 = vector.load %arg22[%c0_16, %c0_17, %c0_18] : memref<4x8x8xbf16, #tpu.memory_space<vmem>>, vector<4x8x8xbf16>
    "tpu.trace_start"() <{level = 10 : i32, message = "hqk,hkd->hqd"}> : () -> ()
    %cst_19 = arith.constant dense<0.000000e+00> : vector<4x8x8xf32>
    %35 = tpu.matmul %33, %34, %cst_19 {dimension_numbers = #tpu.dot_dimension_numbers<[2], [1], [1], [2], [0, 0, 0, 1, 1, 2], [0], [0]>} : vector<4x8x8xbf16>, vector<4x8x8xbf16>, vector<4x8x8xf32> -> vector<4x8x8xf32>
    "tpu.trace_stop"() : () -> ()
    %36 = arith.truncf %35 : vector<4x8x8xf32> to vector<4x8x8xbf16>
    %37 = tpu.transpose %36, [1, 0, 2] : vector<4x8x8xbf16> -> vector<8x4x8xbf16>
    %38 = vector.shape_cast %37 : vector<8x4x8xbf16> to vector<8x32xbf16>
    %c0_20 = arith.constant 0 : index
    %c0_21 = arith.constant 0 : index
    %39 = vector.load %arg9[%c0_20, %c0_21] : memref<32x32xbf16, #tpu.memory_space<vmem>>, vector<32x32xbf16>
    %cst_22 = arith.constant dense<0.000000e+00> : vector<8x32xf32>
    %40 = tpu.matmul %38, %39, %cst_22 {dimension_numbers = #tpu.dot_dimension_numbers<[1], [0], [0], [1], [0, 0, 1, 1], [], []>} : vector<8x32xbf16>, vector<32x32xbf16>, vector<8x32xf32> -> vector<8x32xf32>
    %c0_23 = arith.constant 0 : index
    %c0_24 = arith.constant 0 : index
    %41 = vector.load %arg10[%c0_23, %c0_24] : memref<1x32xf32, #tpu.memory_space<vmem>>, vector<1x32xf32>
    %42 = vector.broadcast %41 : vector<1x32xf32> to vector<8x32xf32>
    %43 = arith.addf %40, %42 : vector<8x32xf32>
    %44 = arith.addf %7, %43 : vector<8x32xf32>
    %c0_25 = arith.constant 0 : index
    %c0_26 = arith.constant 0 : index
    %45 = vector.load %arg11[%c0_25, %c0_26] : memref<1x32xf32, #tpu.memory_space<vmem>>, vector<1x32xf32>
    %c0_27 = arith.constant 0 : index
    %c0_28 = arith.constant 0 : index
    %46 = vector.load %arg12[%c0_27, %c0_28] : memref<1x32xf32, #tpu.memory_space<vmem>>, vector<1x32xf32>
    %cst_29 = arith.constant dense<0.000000e+00> : vector<8xf32>
    %47 = vector.multi_reduction <add>, %44, %cst_29 [1] : vector<8x32xf32> to vector<8xf32>
    %48 = vector.shape_cast %47 : vector<8xf32> to vector<8x1xf32>
    %cst_30 = arith.constant 3.200000e+01 : f32
    %49 = vector.broadcast %cst_30 : f32 to vector<8x1xf32>
    %50 = arith.divf %48, %49 : vector<8x1xf32>
    %51 = vector.broadcast %50 : vector<8x1xf32> to vector<8x32xf32>
    %52 = arith.subf %44, %51 : vector<8x32xf32>
    %53 = arith.mulf %52, %52 : vector<8x32xf32>
    %cst_31 = arith.constant dense<0.000000e+00> : vector<8xf32>
    %54 = vector.multi_reduction <add>, %53, %cst_31 [1] : vector<8x32xf32> to vector<8xf32>
    %55 = vector.shape_cast %54 : vector<8xf32> to vector<8x1xf32>
    %cst_32 = arith.constant 3.200000e+01 : f32
    %56 = vector.broadcast %cst_32 : f32 to vector<8x1xf32>
    %57 = arith.divf %55, %56 : vector<8x1xf32>
    %58 = vector.broadcast %50 : vector<8x1xf32> to vector<8x32xf32>
    %59 = arith.subf %44, %58 : vector<8x32xf32>
    %cst_33 = arith.constant 9.99999974E-6 : f32
    %60 = vector.broadcast %cst_33 : f32 to vector<8x1xf32>
    %61 = arith.addf %57, %60 : vector<8x1xf32>
    %62 = math.rsqrt %61 : vector<8x1xf32>
    %63 = vector.broadcast %62 : vector<8x1xf32> to vector<8x32xf32>
    %64 = arith.mulf %59, %63 : vector<8x32xf32>
    %65 = vector.broadcast %45 : vector<1x32xf32> to vector<8x32xf32>
    %66 = arith.mulf %64, %65 : vector<8x32xf32>
    %67 = vector.broadcast %46 : vector<1x32xf32> to vector<8x32xf32>
    %68 = arith.addf %66, %67 : vector<8x32xf32>
    %69 = arith.truncf %68 : vector<8x32xf32> to vector<8x32xbf16>
    %c0_34 = arith.constant 0 : index
    %c0_35 = arith.constant 0 : index
    %70 = vector.load %arg13[%c0_34, %c0_35] : memref<32x64xbf16, #tpu.memory_space<vmem>>, vector<32x64xbf16>
    %cst_36 = arith.constant dense<0.000000e+00> : vector<8x64xf32>
    %71 = tpu.matmul %69, %70, %cst_36 {dimension_numbers = #tpu.dot_dimension_numbers<[1], [0], [0], [1], [0, 0, 1, 1], [], []>} : vector<8x32xbf16>, vector<32x64xbf16>, vector<8x64xf32> -> vector<8x64xf32>
    %c0_37 = arith.constant 0 : index
    %c0_38 = arith.constant 0 : index
    %72 = vector.load %arg14[%c0_37, %c0_38] : memref<1x64xf32, #tpu.memory_space<vmem>>, vector<1x64xf32>
    %73 = vector.broadcast %72 : vector<1x64xf32> to vector<8x64xf32>
    %74 = arith.addf %71, %73 : vector<8x64xf32>
    %75 = arith.mulf %74, %74 : vector<8x64xf32>
    %76 = arith.mulf %74, %75 : vector<8x64xf32>
    %cst_39 = arith.constant 4.471500e-02 : f32
    %77 = vector.broadcast %cst_39 : f32 to vector<8x64xf32>
    %78 = arith.mulf %77, %76 : vector<8x64xf32>
    %79 = arith.addf %74, %78 : vector<8x64xf32>
    %cst_40 = arith.constant 0.797884583 : f32
    %80 = vector.broadcast %cst_40 : f32 to vector<8x64xf32>
    %81 = arith.mulf %80, %79 : vector<8x64xf32>
    %82 = math.tanh %81 : vector<8x64xf32>
    %cst_41 = arith.constant 1.000000e+00 : f32
    %83 = vector.broadcast %cst_41 : f32 to vector<8x64xf32>
    %84 = arith.addf %83, %82 : vector<8x64xf32>
    %cst_42 = arith.constant 5.000000e-01 : f32
    %85 = vector.broadcast %cst_42 : f32 to vector<8x64xf32>
    %86 = arith.mulf %85, %84 : vector<8x64xf32>
    %87 = arith.mulf %74, %86 : vector<8x64xf32>
    %88 = arith.truncf %87 : vector<8x64xf32> to vector<8x64xbf16>
    %c0_43 = arith.constant 0 : index
    %c0_44 = arith.constant 0 : index
    %89 = vector.load %arg15[%c0_43, %c0_44] : memref<64x32xbf16, #tpu.memory_space<vmem>>, vector<64x32xbf16>
    %cst_45 = arith.constant dense<0.000000e+00> : vector<8x32xf32>
    %90 = tpu.matmul %88, %89, %cst_45 {dimension_numbers = #tpu.dot_dimension_numbers<[1], [0], [0], [1], [0, 0, 1, 1], [], []>} : vector<8x64xbf16>, vector<64x32xbf16>, vector<8x32xf32> -> vector<8x32xf32>
    %c0_46 = arith.constant 0 : index
    %c0_47 = arith.constant 0 : index
    %91 = vector.load %arg16[%c0_46, %c0_47] : memref<1x32xf32, #tpu.memory_space<vmem>>, vector<1x32xf32>
    %92 = vector.broadcast %91 : vector<1x32xf32> to vector<8x32xf32>
    %93 = arith.addf %90, %92 : vector<8x32xf32>
    %94 = arith.addf %68, %93 : vector<8x32xf32>
    %c0_48 = arith.constant 0 : index
    %c0_49 = arith.constant 0 : index
    %95 = vector.load %arg17[%c0_48, %c0_49] : memref<1x32xf32, #tpu.memory_space<vmem>>, vector<1x32xf32>
    %c0_50 = arith.constant 0 : index
    %c0_51 = arith.constant 0 : index
    %96 = vector.load %arg18[%c0_50, %c0_51] : memref<1x32xf32, #tpu.memory_space<vmem>>, vector<1x32xf32>
    %cst_52 = arith.constant dense<0.000000e+00> : vector<8xf32>
    %97 = vector.multi_reduction <add>, %94, %cst_52 [1] : vector<8x32xf32> to vector<8xf32>
    %98 = vector.shape_cast %97 : vector<8xf32> to vector<8x1xf32>
    %cst_53 = arith.constant 3.200000e+01 : f32
    %99 = vector.broadcast %cst_53 : f32 to vector<8x1xf32>
    %100 = arith.divf %98, %99 : vector<8x1xf32>
    %101 = vector.broadcast %100 : vector<8x1xf32> to vector<8x32xf32>
    %102 = arith.subf %94, %101 : vector<8x32xf32>
    %103 = arith.mulf %102, %102 : vector<8x32xf32>
    %cst_54 = arith.constant dense<0.000000e+00> : vector<8xf32>
    %104 = vector.multi_reduction <add>, %103, %cst_54 [1] : vector<8x32xf32> to vector<8xf32>
    %105 = vector.shape_cast %104 : vector<8xf32> to vector<8x1xf32>
    %cst_55 = arith.constant 3.200000e+01 : f32
    %106 = vector.broadcast %cst_55 : f32 to vector<8x1xf32>
    %107 = arith.divf %105, %106 : vector<8x1xf32>
    %108 = vector.broadcast %100 : vector<8x1xf32> to vector<8x32xf32>
    %109 = arith.subf %94, %108 : vector<8x32xf32>
    %cst_56 = arith.constant 9.99999974E-6 : f32
    %110 = vector.broadcast %cst_56 : f32 to vector<8x1xf32>
    %111 = arith.addf %107, %110 : vector<8x1xf32>
    %112 = math.rsqrt %111 : vector<8x1xf32>
    %113 = vector.broadcast %112 : vector<8x1xf32> to vector<8x32xf32>
    %114 = arith.mulf %109, %113 : vector<8x32xf32>
    %115 = vector.broadcast %95 : vector<1x32xf32> to vector<8x32xf32>
    %116 = arith.mulf %114, %115 : vector<8x32xf32>
    %117 = vector.broadcast %96 : vector<1x32xf32> to vector<8x32xf32>
    %118 = arith.addf %116, %117 : vector<8x32xf32>
    %c0_57 = arith.constant 0 : index
    %c0_58 = arith.constant 0 : index
    %c0_59 = arith.constant 0 : index
    %119 = vector.load %arg19[%c0_57, %c0_58, %c0_59] : memref<1x8x32xf32, #tpu.memory_space<vmem>>, vector<1x8x32xf32>
    %120 = vector.shape_cast %119 : vector<1x8x32xf32> to vector<8x32xf32>
    %121 = vector.shape_cast %118 : vector<8x32xf32> to vector<1x8x32xf32>
    tpu.vector_store %arg19[%c0_57, %c0_58, %c0_59], %121 {strides = array<i32>} : memref<1x8x32xf32, #tpu.memory_space<vmem>>, vector<1x8x32xf32>,
    return
  }
  func.func @transform_0(%arg0: i32, %arg1: i32) -> (i32, i32, i32) {
    %c0_i32 = arith.constant 0 : i32
    %c0_i32_0 = arith.constant 0 : i32
    %c0_i32_1 = arith.constant 0 : i32
    return %arg0, %c0_i32, %c0_i32_0 : i32, i32, i32
  }
  func.func @transform_1(%arg0: i32, %arg1: i32) -> (i32, i32) {
    %c0_i32 = arith.constant 0 : i32
    %c0_i32_0 = arith.constant 0 : i32
    %c0_i32_1 = arith.constant 0 : i32
    return %c0_i32, %c0_i32_0 : i32, i32
  }
  func.func @transform_2(%arg0: i32, %arg1: i32) -> (i32, i32) {
    %c0_i32 = arith.constant 0 : i32
    %c0_i32_0 = arith.constant 0 : i32
    %c0_i32_1 = arith.constant 0 : i32
    return %c0_i32, %c0_i32_0 : i32, i32
  }
  func.func @transform_3(%arg0: i32, %arg1: i32) -> (i32, i32) {
    %c0_i32 = arith.constant 0 : i32
    %c0_i32_0 = arith.constant 0 : i32
    %c0_i32_1 = arith.constant 0 : i32
    return %c0_i32, %c0_i32_0 : i32, i32
  }
  func.func @transform_4(%arg0: i32, %arg1: i32) -> (i32, i32) {
    %c0_i32 = arith.constant 0 : i32
    %c0_i32_0 = arith.constant 0 : i32
    %c0_i32_1 = arith.constant 0 : i32
    return %c0_i32, %c0_i32_0 : i32, i32
  }
  func.func @transform_5(%arg0: i32, %arg1: i32) -> (i32, i32) {
    %c0_i32 = arith.constant 0 : i32
    %c0_i32_0 = arith.constant 0 : i32
    %c0_i32_1 = arith.constant 0 : i32
    return %c0_i32, %c0_i32_0 : i32, i32
  }
  func.func @transform_6(%arg0: i32, %arg1: i32) -> (i32, i32) {
    %c0_i32 = arith.constant 0 : i32
    %c0_i32_0 = arith.constant 0 : i32
    %c0_i32_1 = arith.constant 0 : i32
    return %c0_i32, %c0_i32_0 : i32, i32
  }
  func.func @transform_7(%arg0: i32, %arg1: i32) -> (i32, i32) {
    %c0_i32 = arith.constant 0 : i32
    %c0_i32_0 = arith.constant 0 : i32
    %c0_i32_1 = arith.constant 0 : i32
    return %c0_i32, %c0_i32_0 : i32, i32
  }
  func.func @transform_8(%arg0: i32, %arg1: i32) -> (i32, i32) {
    %c0_i32 = arith.constant 0 : i32
    %c0_i32_0 = arith.constant 0 : i32
    %c0_i32_1 = arith.constant 0 : i32
    return %c0_i32, %c0_i32_0 : i32, i32
  }
  func.func @transform_9(%arg0: i32, %arg1: i32) -> (i32, i32) {
    %c0_i32 = arith.constant 0 : i32
    %c0_i32_0 = arith.constant 0 : i32
    %c0_i32_1 = arith.constant 0 : i32
    return %c0_i32, %c0_i32_0 : i32, i32
  }
  func.func @transform_10(%arg0: i32, %arg1: i32) -> (i32, i32) {
    %c0_i32 = arith.constant 0 : i32
    %c0_i32_0 = arith.constant 0 : i32
    %c0_i32_1 = arith.constant 0 : i32
    return %c0_i32, %c0_i32_0 : i32, i32
  }
  func.func @transform_11(%arg0: i32, %arg1: i32) -> (i32, i32) {
    %c0_i32 = arith.constant 0 : i32
    %c0_i32_0 = arith.constant 0 : i32
    %c0_i32_1 = arith.constant 0 : i32
    return %c0_i32, %c0_i32_0 : i32, i32
  }
  func.func @transform_12(%arg0: i32, %arg1: i32) -> (i32, i32) {
    %c0_i32 = arith.constant 0 : i32
    %c0_i32_0 = arith.constant 0 : i32
    %c0_i32_1 = arith.constant 0 : i32
    return %c0_i32, %c0_i32_0 : i32, i32
  }
  func.func @transform_13(%arg0: i32, %arg1: i32) -> (i32, i32) {
    %c0_i32 = arith.constant 0 : i32
    %c0_i32_0 = arith.constant 0 : i32
    %c0_i32_1 = arith.constant 0 : i32
    return %c0_i32, %c0_i32_0 : i32, i32
  }
  func.func @transform_14(%arg0: i32, %arg1: i32) -> (i32, i32) {
    %c0_i32 = arith.constant 0 : i32
    %c0_i32_0 = arith.constant 0 : i32
    %c0_i32_1 = arith.constant 0 : i32
    return %c0_i32, %c0_i32_0 : i32, i32
  }
  func.func @transform_15(%arg0: i32, %arg1: i32) -> (i32, i32) {
    %c0_i32 = arith.constant 0 : i32
    %c0_i32_0 = arith.constant 0 : i32
    %c0_i32_1 = arith.constant 0 : i32
    return %c0_i32, %c0_i32_0 : i32, i32
  }
  func.func @transform_16(%arg0: i32, %arg1: i32) -> (i32, i32) {
    %c0_i32 = arith.constant 0 : i32
    %c0_i32_0 = arith.constant 0 : i32
    %c0_i32_1 = arith.constant 0 : i32
    return %c0_i32, %c0_i32_0 : i32, i32
  }
  func.func @transform_17(%arg0: i32, %arg1: i32) -> (i32, i32, i32) {
    %c0_i32 = arith.constant 0 : i32
    %c0_i32_0 = arith.constant 0 : i32
    return %arg0, %arg1, %c0_i32 : i32, i32, i32
  }
  func.func @transform_18(%arg0: i32, %arg1: i32) -> (i32, i32, i32, i32) {
    %c0_i32 = arith.constant 0 : i32
    %c0_i32_0 = arith.constant 0 : i32
    %c0_i32_1 = arith.constant 0 : i32
    return %arg0, %c0_i32, %arg1, %c0_i32_0 : i32, i32, i32, i32
  }
}

</mosaic_0001>

<llo_original>
// kernel: tpu_custom_call.1
$region0: #{tpu_custom_call.1}
  #allocation0 [shape = 'u32[]', space=smem, size = 0x4, offset = 0x4, fixed_abs, tag = 'smem constant byte address 0x4 - core index']
  #allocation1 [shape = 'u32[144,128]{1,0:T(1,128)}', space=vmem, size = 0x12000, scoped, tag = 'internal scratch']
  #allocation2 [shape = 'bf16[4,8,8]{2,1,0:T(8,128)(2,1)}', space=vmem, size = 0x2000, scoped, tag = 'scratch operand']
  #allocation3 [shape = 'bf16[4,8,8]{2,1,0:T(8,128)(2,1)}', space=vmem, size = 0x2000, scoped, tag = 'scratch operand']
  %s0 = inlined_call_operand.vmem [shape: f32[2,8,32], index: 0, kind: input, shape index: {}]
  %s1 = inlined_call_operand.vmem [shape: bf16[32,32], index: 1, kind: input, shape index: {}]
  %s2 = inlined_call_operand.vmem [shape: f32[1,32], index: 2, kind: input, shape index: {}]
  %s3 = inlined_call_operand.vmem [shape: bf16[32,32], index: 3, kind: input, shape index: {}]
  %s4 = inlined_call_operand.vmem [shape: f32[1,32], index: 4, kind: input, shape index: {}]
  %s5 = inlined_call_operand.hbm [shape: bf16[32,32], index: 5, kind: input, shape index: {}]
  %s6 = inlined_call_operand.hbm [shape: f32[1,32], index: 6, kind: input, shape index: {}]
  %s7 = inlined_call_operand.hbm [shape: bf16[32,32], index: 7, kind: input, shape index: {}]
  %s8 = inlined_call_operand.hbm [shape: f32[1,32], index: 8, kind: input, shape index: {}]
  %s9 = inlined_call_operand.hbm [shape: f32[1,32], index: 9, kind: input, shape index: {}]
  %s10 = inlined_call_operand.vmem [shape: f32[1,32], index: 10, kind: input, shape index: {}]
  %s11 = inlined_call_operand.vmem [shape: bf16[32,64], index: 11, kind: input, shape index: {}]
  %s12 = inlined_call_operand.vmem [shape: f32[1,64], index: 12, kind: input, shape index: {}]
  %s13 = inlined_call_operand.vmem [shape: bf16[64,32], index: 13, kind: input, shape index: {}]
  %s14 = inlined_call_operand.vmem [shape: f32[1,32], index: 14, kind: input, shape index: {}]
  %s15 = inlined_call_operand.vmem [shape: f32[1,32], index: 15, kind: input, shape index: {}]
  %s16 = inlined_call_operand.vmem [shape: f32[1,32], index: 16, kind: input, shape index: {}]
  %s17 = inlined_call_operand.hbm [shape: f32[2,8,32], index: 17, kind: output, shape index: {0}]
  %s18 = inlined_call_operand.hbm [shape: bf16[2,4,8,8], index: 18, kind: output, shape index: {1}]
  %19 = xla_tuple %s17, %s18
  %s20 = sld [smem:[#allocation0]]
  $region133: #{tpu_custom_call.1} parent=0
    _
  %s22 = ssub.s32 1, %s20
  %s23 = scalar_select 0, %s22, %s20
  $region1: #{tpu_custom_call.1} parent=0
    #allocation4 [shape = 'u8[8192]{0}', space=vmem, size = 0x2000, scoped, tag = 'input window, operand 5, single buffered']
    #allocation5 [shape = 's32[2]{0}', space=sflag, size = 0x8, scoped, tag = 'scoped memory for tpu_custom_call.1']
    #allocation6 [shape = 's32[2]{0}', space=sflag, size = 0x8, scoped, tag = 'scoped memory for tpu_custom_call.1']
    #allocation7 [shape = 'u8[512]{0}', space=vmem, size = 0x400, scoped, tag = 'input window, operand 6, single buffered']
    #allocation8 [shape = 's32[1]{0}', space=sflag, size = 0x4, scoped, tag = 'scoped memory for tpu_custom_call.1']
    #allocation9 [shape = 'u8[8192]{0}', space=vmem, size = 0x2000, scoped, tag = 'input window, operand 7, single buffered']
    #allocation10 [shape = 'u8[512]{0}', space=vmem, size = 0x400, scoped, tag = 'input window, operand 8, single buffered']
    #allocation11 [shape = 's32[1]{0}', space=sflag, size = 0x4, scoped, tag = 'scoped memory for tpu_custom_call.1']
    #allocation12 [shape = 'u8[512]{0}', space=vmem, size = 0x400, scoped, tag = 'input window, operand 9, single buffered']
    #allocation13 [shape = 'u8[8192]{0}', space=vmem, size = 0x2000, scoped, tag = 'output window, operand 0']
    #allocation14 [shape = 'u8[16384]{0}', space=vmem, size = 0x4000, scoped, tag = 'output window, operand 1']
    #allocation15 [shape = 's32[2]{0}', space=sflag, size = 0x8, scoped, tag = 'scoped memory for tpu_custom_call.1']
    %24 = vsyncpa [#allocation5], 0
    %25 = vsyncpa [#allocation8], 0
    %26 = vsyncpa [#allocation11], 0
    %27 = vsyncpa [#allocation6], 0
    %s28 = scalar_lea.sflag [#allocation6], 1
    %29 = vsyncpa %s28, 0
    %30 = vsyncpa [#allocation15], 0
    %s31 = scalar_lea.sflag [#allocation15], 1
    %32 = vsyncpa %s31, 0
    loop: start=0, step=1, limit=4
    $region2: #{tpu_custom_call.1} parent=1 // loop_pre_header
      _
    $region3: #{tpu_custom_call.1} parent=1 // loop_header
      %s34 = sphi 0, %s38
      %p35 = scmp.ge.s32.totalorder %s34, 4
      %s41 = sphi 0, %s53
      %s42 = sphi 0, %s49
      %s43 = sphi 0, %s41
      %s44 = sphi 0, %s42
      %s45 = sphi 0, %s43
      %s46 = sphi 0, %s44
      %s56 = sphi 0, %s58
      %s59 = sphi 0, %s56
      %s60 = sphi 0, %s59
      %s76 = sphi 0, %s60
      %s80 = sphi 0, %s80
      %s82 = sphi 0, %s80
      %s83 = sphi 0, %s82
      %s97 = sphi 0, %s83
      %s101 = sphi 0, %s101
      %s103 = sphi 0, %s101
      %s104 = sphi 0, %s103
      %s118 = sphi 0, %s104
      %s122 = sphi 0, %s122
      %s124 = sphi 0, %s122
      %s125 = sphi 0, %s124
      %s139 = sphi 0, %s125
      %s143 = sphi 0, %s143
      %s145 = sphi 0, %s143
      %s146 = sphi 0, %s145
      %s160 = sphi 0, %s146
      %s164 = sphi 0, %s164
      %s166 = sphi 0, %s164
      %s167 = sphi 0, %s166
      %s181 = sphi 0, %s167
      %s185 = sphi 0, %s185
      %s187 = sphi 0, %s185
      %s188 = sphi 0, %s187
      %s202 = sphi 0, %s188
      %s206 = sphi 0, %s206
      %s208 = sphi 0, %s206
      %s209 = sphi 0, %s208
      %s223 = sphi 0, %s209
      %s227 = sphi 0, %s227
      %s229 = sphi 0, %s227
      %s230 = sphi 0, %s229
      %s244 = sphi 0, %s230
      %s248 = sphi 0, %s248
      %s250 = sphi 0, %s248
      %s251 = sphi 0, %s250
      %s265 = sphi 0, %s251
      %s269 = sphi 0, %s269
      %s271 = sphi 0, %s269
      %s272 = sphi 0, %s271
      %s286 = sphi 0, %s272
      %s290 = sphi 0, %s290
      %s292 = sphi 0, %s290
      %s293 = sphi 0, %s292
      %s307 = sphi 0, %s293
      %s311 = sphi 0, %s311
      %s313 = sphi 0, %s311
      %s314 = sphi 0, %s313
      %s328 = sphi 0, %s314
      %s332 = sphi 0, %s332
      %s334 = sphi 0, %s332
      %s335 = sphi 0, %s334
      %s349 = sphi 0, %s335
      %s353 = sphi 0, %s353
      %s355 = sphi 0, %s353
      %s356 = sphi 0, %s355
      %s370 = sphi 0, %s356
      %s374 = sphi 0, %s374
      %s376 = sphi 0, %s374
      %s377 = sphi 0, %s376
      %s391 = sphi 0, %s377
      %s395 = sphi 0, %s395
      %s397 = sphi 0, %s395
      %s398 = sphi 0, %s397
      %s412 = sphi 0, %s398
      %s420 = sphi 0, %s422
      %s423 = sphi 0, %s420
      %s424 = sphi 0, %s423
      %s440 = sphi 0, %s424
      %s448 = sphi 0, %s450
      %s451 = sphi 0, %s448
      %s452 = sphi 0, %s451
      %s468 = sphi 0, %s452
    $region4: #{tpu_custom_call.1} parent=1 // loop_header_branch
      %37 = sbr.rel (%p35) target = $region8
    $region5: #{tpu_custom_call.1} parent=1 // loop_body
      %s39 = ssub.s32 %s34, 1
      %s40 = ssub.s32 %s34, 2
      %s47 = sadd.s32 1, %s42
      %p48 = scmp.ge.s32.totalorder %s47, 1
      %s49 = scalar_select %p48, 0, %s47
      %s50 = sadd.s32 1, %s41
      %s51 = scalar_select %p48, %s50, %s41
      %p52 = scmp.ge.s32.totalorder %s51, 2
      %s53 = scalar_select %p52, 0, %s51
      %s54 = ssub.s32 %s41, %s53
      %p55 = scmp.eq.s32.totalorder %s54, 0
      %s57 = sadd.s32 %s56, 1
      %s58 = scalar_select %p55, %s56, %s57
      %p61 = pneg %p55
      %p62 = scmp.eq.s32.totalorder %s34, 1
      %p63 = por %p61, %p62
      %p64 = scmp.ne.s32.totalorder %s56, %s59
      %p65 = scmp.eq.s32.totalorder %s34, 0
      %p66 = por %p64, %p65
      %p67 = scmp.ne.s32.totalorder %s56, %s59
      %p68 = scmp.eq.s32.totalorder %s39, 1
      %p69 = por %p67, %p68
      %p70 = scmp.ne.s32.totalorder %s59, %s60
      %p71 = scmp.eq.s32.totalorder %s39, 0
      %p72 = por %p70, %p71
      %p73 = scmp.ne.s32.totalorder %s59, %s60
      %p74 = scmp.eq.s32.totalorder %s40, 1
      %p75 = por %p73, %p74
      %p77 = scmp.ne.s32.totalorder %s60, %s76
      %p78 = scmp.eq.s32.totalorder %s40, 0
      %p79 = por %p77, %p78
      %s81 = sadd.s32 %s80, 1
      %p84 = scmp.eq.s32.totalorder %s34, 1
      %p85 = scmp.ne.s32.totalorder %s80, %s82
      %p86 = scmp.eq.s32.totalorder %s34, 0
      %p87 = por %p85, %p86
      %p88 = scmp.ne.s32.totalorder %s80, %s82
      %p89 = scmp.eq.s32.totalorder %s39, 1
      %p90 = por %p88, %p89
      %p91 = scmp.ne.s32.totalorder %s82, %s83
      %p92 = scmp.eq.s32.totalorder %s39, 0
      %p93 = por %p91, %p92
      %p94 = scmp.ne.s32.totalorder %s82, %s83
      %p95 = scmp.eq.s32.totalorder %s40, 1
      %p96 = por %p94, %p95
      %p98 = scmp.ne.s32.totalorder %s83, %s97
      %p99 = scmp.eq.s32.totalorder %s40, 0
      %p100 = por %p98, %p99
      %s102 = sadd.s32 %s101, 1
      %p105 = scmp.eq.s32.totalorder %s34, 1
      %p106 = scmp.ne.s32.totalorder %s101, %s103
      %p107 = scmp.eq.s32.totalorder %s34, 0
      %p108 = por %p106, %p107
      %p109 = scmp.ne.s32.totalorder %s101, %s103
      %p110 = scmp.eq.s32.totalorder %s39, 1
      %p111 = por %p109, %p110
      %p112 = scmp.ne.s32.totalorder %s103, %s104
      %p113 = scmp.eq.s32.totalorder %s39, 0
      %p114 = por %p112, %p113
      %p115 = scmp.ne.s32.totalorder %s103, %s104
      %p116 = scmp.eq.s32.totalorder %s40, 1
      %p117 = por %p115, %p116
      %p119 = scmp.ne.s32.totalorder %s104, %s118
      %p120 = scmp.eq.s32.totalorder %s40, 0
      %p121 = por %p119, %p120
      %s123 = sadd.s32 %s122, 1
      %p126 = scmp.eq.s32.totalorder %s34, 1
      %p127 = scmp.ne.s32.totalorder %s122, %s124
      %p128 = scmp.eq.s32.totalorder %s34, 0
      %p129 = por %p127, %p128
      %p130 = scmp.ne.s32.totalorder %s122, %s124
      %p131 = scmp.eq.s32.totalorder %s39, 1
      %p132 = por %p130, %p131
      %p133 = scmp.ne.s32.totalorder %s124, %s125
      %p134 = scmp.eq.s32.totalorder %s39, 0
      %p135 = por %p133, %p134
      %p136 = scmp.ne.s32.totalorder %s124, %s125
      %p137 = scmp.eq.s32.totalorder %s40, 1
      %p138 = por %p136, %p137
      %p140 = scmp.ne.s32.totalorder %s125, %s139
      %p141 = scmp.eq.s32.totalorder %s40, 0
      %p142 = por %p140, %p141
      %s144 = sadd.s32 %s143, 1
      %p147 = scmp.eq.s32.totalorder %s34, 1
      %p148 = scmp.ne.s32.totalorder %s143, %s145
      %p149 = scmp.eq.s32.totalorder %s34, 0
      %p150 = por %p148, %p149
      %p151 = scmp.ne.s32.totalorder %s143, %s145
      %p152 = scmp.eq.s32.totalorder %s39, 1
      %p153 = por %p151, %p152
      %p154 = scmp.ne.s32.totalorder %s145, %s146
      %p155 = scmp.eq.s32.totalorder %s39, 0
      %p156 = por %p154, %p155
      %p157 = scmp.ne.s32.totalorder %s145, %s146
      %p158 = scmp.eq.s32.totalorder %s40, 1
      %p159 = por %p157, %p158
      %p161 = scmp.ne.s32.totalorder %s146, %s160
      %p162 = scmp.eq.s32.totalorder %s40, 0
      %p163 = por %p161, %p162
      %s165 = sadd.s32 %s164, 1
      %p168 = scmp.eq.s32.totalorder %s34, 1
      %p169 = scmp.ne.s32.totalorder %s164, %s166
      %p170 = scmp.eq.s32.totalorder %s34, 0
      %p171 = por %p169, %p170
      %p172 = scmp.ne.s32.totalorder %s164, %s166
      %p173 = scmp.eq.s32.totalorder %s39, 1
      %p174 = por %p172, %p173
      %p175 = scmp.ne.s32.totalorder %s166, %s167
      %p176 = scmp.eq.s32.totalorder %s39, 0
      %p177 = por %p175, %p176
      %p178 = scmp.ne.s32.totalorder %s166, %s167
      %p179 = scmp.eq.s32.totalorder %s40, 1
      %p180 = por %p178, %p179
      %p182 = scmp.ne.s32.totalorder %s167, %s181
      %p183 = scmp.eq.s32.totalorder %s40, 0
      %p184 = por %p182, %p183
      %s186 = sadd.s32 %s185, 1
      %p189 = scmp.eq.s32.totalorder %s34, 1
      %p190 = scmp.ne.s32.totalorder %s185, %s187
      %p191 = scmp.eq.s32.totalorder %s34, 0
      %p192 = por %p190, %p191
      %p193 = scmp.ne.s32.totalorder %s185, %s187
      %p194 = scmp.eq.s32.totalorder %s39, 1
      %p195 = por %p193, %p194
      %p196 = scmp.ne.s32.totalorder %s187, %s188
      %p197 = scmp.eq.s32.totalorder %s39, 0
      %p198 = por %p196, %p197
      %p199 = scmp.ne.s32.totalorder %s187, %s188
      %p200 = scmp.eq.s32.totalorder %s40, 1
      %p201 = por %p199, %p200
      %p203 = scmp.ne.s32.totalorder %s188, %s202
      %p204 = scmp.eq.s32.totalorder %s40, 0
      %p205 = por %p203, %p204
      %s207 = sadd.s32 %s206, 1
      %p210 = scmp.eq.s32.totalorder %s34, 1
      %p211 = scmp.ne.s32.totalorder %s206, %s208
      %p212 = scmp.eq.s32.totalorder %s34, 0
      %p213 = por %p211, %p212
      %p214 = scmp.ne.s32.totalorder %s206, %s208
      %p215 = scmp.eq.s32.totalorder %s39, 1
      %p216 = por %p214, %p215
      %p217 = scmp.ne.s32.totalorder %s208, %s209
      %p218 = scmp.eq.s32.totalorder %s39, 0
      %p219 = por %p217, %p218
      %p220 = scmp.ne.s32.totalorder %s208, %s209
      %p221 = scmp.eq.s32.totalorder %s40, 1
      %p222 = por %p220, %p221
      %p224 = scmp.ne.s32.totalorder %s209, %s223
      %p225 = scmp.eq.s32.totalorder %s40, 0
      %p226 = por %p224, %p225
      %s228 = sadd.s32 %s227, 1
      %p231 = scmp.eq.s32.totalorder %s34, 1
      %p232 = scmp.ne.s32.totalorder %s227, %s229
      %p233 = scmp.eq.s32.totalorder %s34, 0
      %p234 = por %p232, %p233
      %p235 = scmp.ne.s32.totalorder %s227, %s229
      %p236 = scmp.eq.s32.totalorder %s39, 1
      %p237 = por %p235, %p236
      %p238 = scmp.ne.s32.totalorder %s229, %s230
      %p239 = scmp.eq.s32.totalorder %s39, 0
      %p240 = por %p238, %p239
      %p241 = scmp.ne.s32.totalorder %s229, %s230
      %p242 = scmp.eq.s32.totalorder %s40, 1
      %p243 = por %p241, %p242
      %p245 = scmp.ne.s32.totalorder %s230, %s244
      %p246 = scmp.eq.s32.totalorder %s40, 0
      %p247 = por %p245, %p246
      %s249 = sadd.s32 %s248, 1
      %p252 = scmp.eq.s32.totalorder %s34, 1
      %p253 = scmp.ne.s32.totalorder %s248, %s250
      %p254 = scmp.eq.s32.totalorder %s34, 0
      %p255 = por %p253, %p254
      %p256 = scmp.ne.s32.totalorder %s248, %s250
      %p257 = scmp.eq.s32.totalorder %s39, 1
      %p258 = por %p256, %p257
      %p259 = scmp.ne.s32.totalorder %s250, %s251
      %p260 = scmp.eq.s32.totalorder %s39, 0
      %p261 = por %p259, %p260
      %p262 = scmp.ne.s32.totalorder %s250, %s251
      %p263 = scmp.eq.s32.totalorder %s40, 1
      %p264 = por %p262, %p263
      %p266 = scmp.ne.s32.totalorder %s251, %s265
      %p267 = scmp.eq.s32.totalorder %s40, 0
      %p268 = por %p266, %p267
      %s270 = sadd.s32 %s269, 1
      %p273 = scmp.eq.s32.totalorder %s34, 1
      %p274 = scmp.ne.s32.totalorder %s269, %s271
      %p275 = scmp.eq.s32.totalorder %s34, 0
      %p276 = por %p274, %p275
      %p277 = scmp.ne.s32.totalorder %s269, %s271
      %p278 = scmp.eq.s32.totalorder %s39, 1
      %p279 = por %p277, %p278
      %p280 = scmp.ne.s32.totalorder %s271, %s272
      %p281 = scmp.eq.s32.totalorder %s39, 0
      %p282 = por %p280, %p281
      %p283 = scmp.ne.s32.totalorder %s271, %s272
      %p284 = scmp.eq.s32.totalorder %s40, 1
      %p285 = por %p283, %p284
      %p287 = scmp.ne.s32.totalorder %s272, %s286
      %p288 = scmp.eq.s32.totalorder %s40, 0
      %p289 = por %p287, %p288
      %s291 = sadd.s32 %s290, 1
      %p294 = scmp.eq.s32.totalorder %s34, 1
      %p295 = scmp.ne.s32.totalorder %s290, %s292
      %p296 = scmp.eq.s32.totalorder %s34, 0
      %p297 = por %p295, %p296
      %p298 = scmp.ne.s32.totalorder %s290, %s292
      %p299 = scmp.eq.s32.totalorder %s39, 1
      %p300 = por %p298, %p299
      %p301 = scmp.ne.s32.totalorder %s292, %s293
      %p302 = scmp.eq.s32.totalorder %s39, 0
      %p303 = por %p301, %p302
      %p304 = scmp.ne.s32.totalorder %s292, %s293
      %p305 = scmp.eq.s32.totalorder %s40, 1
      %p306 = por %p304, %p305
      %p308 = scmp.ne.s32.totalorder %s293, %s307
      %p309 = scmp.eq.s32.totalorder %s40, 0
      %p310 = por %p308, %p309
      %s312 = sadd.s32 %s311, 1
      %p315 = scmp.eq.s32.totalorder %s34, 1
      %p316 = scmp.ne.s32.totalorder %s311, %s313
      %p317 = scmp.eq.s32.totalorder %s34, 0
      %p318 = por %p316, %p317
      %p319 = scmp.ne.s32.totalorder %s311, %s313
      %p320 = scmp.eq.s32.totalorder %s39, 1
      %p321 = por %p319, %p320
      %p322 = scmp.ne.s32.totalorder %s313, %s314
      %p323 = scmp.eq.s32.totalorder %s39, 0
      %p324 = por %p322, %p323
      %p325 = scmp.ne.s32.totalorder %s313, %s314
      %p326 = scmp.eq.s32.totalorder %s40, 1
      %p327 = por %p325, %p326
      %p329 = scmp.ne.s32.totalorder %s314, %s328
      %p330 = scmp.eq.s32.totalorder %s40, 0
      %p331 = por %p329, %p330
      %s333 = sadd.s32 %s332, 1
      %p336 = scmp.eq.s32.totalorder %s34, 1
      %p337 = scmp.ne.s32.totalorder %s332, %s334
      %p338 = scmp.eq.s32.totalorder %s34, 0
      %p339 = por %p337, %p338
      %p340 = scmp.ne.s32.totalorder %s332, %s334
      %p341 = scmp.eq.s32.totalorder %s39, 1
      %p342 = por %p340, %p341
      %p343 = scmp.ne.s32.totalorder %s334, %s335
      %p344 = scmp.eq.s32.totalorder %s39, 0
      %p345 = por %p343, %p344
      %p346 = scmp.ne.s32.totalorder %s334, %s335
      %p347 = scmp.eq.s32.totalorder %s40, 1
      %p348 = por %p346, %p347
      %p350 = scmp.ne.s32.totalorder %s335, %s349
      %p351 = scmp.eq.s32.totalorder %s40, 0
      %p352 = por %p350, %p351
      %s354 = sadd.s32 %s353, 1
      %p357 = scmp.eq.s32.totalorder %s34, 1
      %p358 = scmp.ne.s32.totalorder %s353, %s355
      %p359 = scmp.eq.s32.totalorder %s34, 0
      %p360 = por %p358, %p359
      %p361 = scmp.ne.s32.totalorder %s353, %s355
      %p362 = scmp.eq.s32.totalorder %s39, 1
      %p363 = por %p361, %p362
      %p364 = scmp.ne.s32.totalorder %s355, %s356
      %p365 = scmp.eq.s32.totalorder %s39, 0
      %p366 = por %p364, %p365
      %p367 = scmp.ne.s32.totalorder %s355, %s356
      %p368 = scmp.eq.s32.totalorder %s40, 1
      %p369 = por %p367, %p368
      %p371 = scmp.ne.s32.totalorder %s356, %s370
      %p372 = scmp.eq.s32.totalorder %s40, 0
      %p373 = por %p371, %p372
      %s375 = sadd.s32 %s374, 1
      %p378 = scmp.eq.s32.totalorder %s34, 1
      %p379 = scmp.ne.s32.totalorder %s374, %s376
      %p380 = scmp.eq.s32.totalorder %s34, 0
      %p381 = por %p379, %p380
      %p382 = scmp.ne.s32.totalorder %s374, %s376
      %p383 = scmp.eq.s32.totalorder %s39, 1
      %p384 = por %p382, %p383
      %p385 = scmp.ne.s32.totalorder %s376, %s377
      %p386 = scmp.eq.s32.totalorder %s39, 0
      %p387 = por %p385, %p386
      %p388 = scmp.ne.s32.totalorder %s376, %s377
      %p389 = scmp.eq.s32.totalorder %s40, 1
      %p390 = por %p388, %p389
      %p392 = scmp.ne.s32.totalorder %s377, %s391
      %p393 = scmp.eq.s32.totalorder %s40, 0
      %p394 = por %p392, %p393
      %s396 = sadd.s32 %s395, 1
      %p399 = scmp.eq.s32.totalorder %s34, 1
      %p400 = scmp.ne.s32.totalorder %s395, %s397
      %p401 = scmp.eq.s32.totalorder %s34, 0
      %p402 = por %p400, %p401
      %p403 = scmp.ne.s32.totalorder %s395, %s397
      %p404 = scmp.eq.s32.totalorder %s39, 1
      %p405 = por %p403, %p404
      %p406 = scmp.ne.s32.totalorder %s397, %s398
      %p407 = scmp.eq.s32.totalorder %s39, 0
      %p408 = por %p406, %p407
      %p409 = scmp.ne.s32.totalorder %s397, %s398
      %p410 = scmp.eq.s32.totalorder %s40, 1
      %p411 = por %p409, %p410
      %p413 = scmp.ne.s32.totalorder %s398, %s412
      %p414 = scmp.eq.s32.totalorder %s40, 0
      %p415 = por %p413, %p414
      %s416 = ssub.s32 %s41, %s53
      %s417 = ssub.s32 %s42, %s49
      %s418 = sor.u32 %s416, %s417
      %p419 = scmp.eq.s32.totalorder %s418, 0
      %s421 = sadd.s32 %s420, 1
      %s422 = scalar_select %p419, %s420, %s421
      %p425 = pneg %p419
      %p426 = scmp.eq.s32.totalorder %s34, 1
      %p427 = por %p425, %p426
      %p428 = scmp.ne.s32.totalorder %s420, %s423
      %p429 = scmp.eq.s32.totalorder %s34, 0
      %p430 = por %p428, %p429
      %p431 = scmp.ne.s32.totalorder %s420, %s423
      %p432 = scmp.eq.s32.totalorder %s39, 1
      %p433 = por %p431, %p432
      %p434 = scmp.ne.s32.totalorder %s423, %s424
      %p435 = scmp.eq.s32.totalorder %s39, 0
      %p436 = por %p434, %p435
      %p437 = scmp.ne.s32.totalorder %s423, %s424
      %p438 = scmp.eq.s32.totalorder %s40, 1
      %p439 = por %p437, %p438
      %p441 = scmp.ne.s32.totalorder %s424, %s440
      %p442 = scmp.eq.s32.totalorder %s40, 0
      %p443 = por %p441, %p442
      %s444 = ssub.s32 %s41, %s53
      %s445 = ssub.s32 %s42, %s49
      %s446 = sor.u32 %s444, %s445
      %p447 = scmp.eq.s32.totalorder %s446, 0
      %s449 = sadd.s32 %s448, 1
      %s450 = scalar_select %p447, %s448, %s449
      %p453 = pneg %p447
      %p454 = scmp.eq.s32.totalorder %s34, 1
      %p455 = por %p453, %p454
      %p456 = scmp.ne.s32.totalorder %s448, %s451
      %p457 = scmp.eq.s32.totalorder %s34, 0
      %p458 = por %p456, %p457
      %p459 = scmp.ne.s32.totalorder %s448, %s451
      %p460 = scmp.eq.s32.totalorder %s39, 1
      %p461 = por %p459, %p460
      %p462 = scmp.ne.s32.totalorder %s451, %s452
      %p463 = scmp.eq.s32.totalorder %s39, 0
      %p464 = por %p462, %p463
      %p465 = scmp.ne.s32.totalorder %s451, %s452
      %p466 = scmp.eq.s32.totalorder %s40, 1
      %p467 = por %p465, %p466
      %p469 = scmp.ne.s32.totalorder %s452, %s468
      %p470 = scmp.eq.s32.totalorder %s40, 0
      %p471 = por %p469, %p470
      %p472 = scmp.le.s32.totalorder 1, %s34
      %p473 = scmp.lt.s32.totalorder %s34, 3
      %p474 = pnand %p472, %p473
      %p475 = pneg %p474
      // Predicated region
      $region9: #{tpu_custom_call.1} parent=5 // pred_check
        _
      $region10: #{tpu_custom_call.1} parent=5 // pred_check_branch
        %477 = sbr.rel (%p474) target = $region12
      $region11: #{tpu_custom_call.1} parent=5 // pred_region
        %s478 = ssub.s32 %s34, 1
        // Predicated region
        $region13: #{tpu_custom_call.1} parent=11 // pred_check
          %p479 = pneg %p93
        $region14: #{tpu_custom_call.1} parent=11 // pred_check_branch
          %481 = sbr.rel (%p479) target = $region16
        $region15: #{tpu_custom_call.1} parent=11 // pred_region
          _
        $region16: #{tpu_custom_call.1} parent=11 // pred_fallthru
          _
        // Predicated region
        $region17: #{tpu_custom_call.1} parent=11 // pred_check
          %p482 = pneg %p114
        $region18: #{tpu_custom_call.1} parent=11 // pred_check_branch
          %484 = sbr.rel (%p482) target = $region20
        $region19: #{tpu_custom_call.1} parent=11 // pred_region
          _
        $region20: #{tpu_custom_call.1} parent=11 // pred_fallthru
          _
        // Predicated region
        $region21: #{tpu_custom_call.1} parent=11 // pred_check
          %p485 = pneg %p135
        $region22: #{tpu_custom_call.1} parent=11 // pred_check_branch
          %487 = sbr.rel (%p485) target = $region24
        $region23: #{tpu_custom_call.1} parent=11 // pred_region
          _
        $region24: #{tpu_custom_call.1} parent=11 // pred_fallthru
          _
        // Predicated region
        $region25: #{tpu_custom_call.1} parent=11 // pred_check
          %p488 = pneg %p156
        $region26: #{tpu_custom_call.1} parent=11 // pred_check_branch
          %490 = sbr.rel (%p488) target = $region28
        $region27: #{tpu_custom_call.1} parent=11 // pred_region
          _
        $region28: #{tpu_custom_call.1} parent=11 // pred_fallthru
          _
        // Predicated region
        $region29: #{tpu_custom_call.1} parent=11 // pred_check
          %p491 = pneg %p177
        $region30: #{tpu_custom_call.1} parent=11 // pred_check_branch
          %493 = sbr.rel (%p491) target = $region32
        $region31: #{tpu_custom_call.1} parent=11 // pred_region
          %s495 = ssub.s32 256, 256
          %496 = vsyncadd [#allocation5], %s495
          %s497 = sshll.u32 [#allocation4], 4
          %s498 = int_to_ptr.vmem [resolvable:$true] %s497
          %503 = dma.hbm_to_vmem [thread:$0]  %s5, 256, %s498, [#allocation5], 64, 64, 4
        $region32: #{tpu_custom_call.1} parent=11 // pred_fallthru
          _
        // Predicated region
        $region33: #{tpu_custom_call.1} parent=11 // pred_check
          %p504 = pneg %p198
        $region34: #{tpu_custom_call.1} parent=11 // pred_check_branch
          %506 = sbr.rel (%p504) target = $region36
        $region35: #{tpu_custom_call.1} parent=11 // pred_region
          %s508 = ssub.s32 16, 16
          %509 = vsyncadd [#allocation8], %s508
          %s511 = sshll.u32 [#allocation7], 4
          %s512 = int_to_ptr.vmem [resolvable:$true] %s511
          %514 = dma.hbm_to_vmem [thread:$0]  %s6, 16, %s512, [#allocation8]
        $region36: #{tpu_custom_call.1} parent=11 // pred_fallthru
          _
        // Predicated region
        $region37: #{tpu_custom_call.1} parent=11 // pred_check
          %p515 = pneg %p219
        $region38: #{tpu_custom_call.1} parent=11 // pred_check_branch
          %517 = sbr.rel (%p515) target = $region40
        $region39: #{tpu_custom_call.1} parent=11 // pred_region
          %s519 = ssub.s32 256, 256
          %520 = vsyncadd [#allocation8], %s519
          %s521 = sshll.u32 [#allocation9], 4
          %s522 = int_to_ptr.vmem [resolvable:$true] %s521
          %527 = dma.hbm_to_vmem [thread:$0]  %s7, 256, %s522, [#allocation8], 64, 64, 4
        $region40: #{tpu_custom_call.1} parent=11 // pred_fallthru
          _
        // Predicated region
        $region41: #{tpu_custom_call.1} parent=11 // pred_check
          %p528 = pneg %p240
        $region42: #{tpu_custom_call.1} parent=11 // pred_check_branch
          %530 = sbr.rel (%p528) target = $region44
        $region43: #{tpu_custom_call.1} parent=11 // pred_region
          %s532 = ssub.s32 16, 16
          %533 = vsyncadd [#allocation11], %s532
          %s535 = sshll.u32 [#allocation10], 4
          %s536 = int_to_ptr.vmem [resolvable:$true] %s535
          %538 = dma.hbm_to_vmem [thread:$0]  %s8, 16, %s536, [#allocation11]
        $region44: #{tpu_custom_call.1} parent=11 // pred_fallthru
          _
        // Predicated region
        $region45: #{tpu_custom_call.1} parent=11 // pred_check
          %p539 = pneg %p261
        $region46: #{tpu_custom_call.1} parent=11 // pred_check_branch
          %541 = sbr.rel (%p539) target = $region48
        $region47: #{tpu_custom_call.1} parent=11 // pred_region
          %s543 = ssub.s32 16, 16
          %544 = vsyncadd [#allocation11], %s543
          %s546 = sshll.u32 [#allocation12], 4
          %s547 = int_to_ptr.vmem [resolvable:$true] %s546
          %549 = dma.hbm_to_vmem [thread:$0]  %s9, 16, %s547, [#allocation11]
        $region48: #{tpu_custom_call.1} parent=11 // pred_fallthru
          _
        // Predicated region
        $region49: #{tpu_custom_call.1} parent=11 // pred_check
          %p550 = pneg %p282
        $region50: #{tpu_custom_call.1} parent=11 // pred_check_branch
          %552 = sbr.rel (%p550) target = $region52
        $region51: #{tpu_custom_call.1} parent=11 // pred_region
          _
        $region52: #{tpu_custom_call.1} parent=11 // pred_fallthru
          _
        // Predicated region
        $region53: #{tpu_custom_call.1} parent=11 // pred_check
          %p553 = pneg %p303
        $region54: #{tpu_custom_call.1} parent=11 // pred_check_branch
          %555 = sbr.rel (%p553) target = $region56
        $region55: #{tpu_custom_call.1} parent=11 // pred_region
          _
        $region56: #{tpu_custom_call.1} parent=11 // pred_fallthru
          _
        // Predicated region
        $region57: #{tpu_custom_call.1} parent=11 // pred_check
          %p556 = pneg %p324
        $region58: #{tpu_custom_call.1} parent=11 // pred_check_branch
          %558 = sbr.rel (%p556) target = $region60
        $region59: #{tpu_custom_call.1} parent=11 // pred_region
          _
        $region60: #{tpu_custom_call.1} parent=11 // pred_fallthru
          _
        // Predicated region
        $region61: #{tpu_custom_call.1} parent=11 // pred_check
          %p559 = pneg %p345
        $region62: #{tpu_custom_call.1} parent=11 // pred_check_branch
          %561 = sbr.rel (%p559) target = $region64
        $region63: #{tpu_custom_call.1} parent=11 // pred_region
          _
        $region64: #{tpu_custom_call.1} parent=11 // pred_fallthru
          _
        // Predicated region
        $region65: #{tpu_custom_call.1} parent=11 // pred_check
          %p562 = pneg %p366
        $region66: #{tpu_custom_call.1} parent=11 // pred_check_branch
          %564 = sbr.rel (%p562) target = $region68
        $region67: #{tpu_custom_call.1} parent=11 // pred_region
          _
        $region68: #{tpu_custom_call.1} parent=11 // pred_fallthru
          _
        // Predicated region
        $region69: #{tpu_custom_call.1} parent=11 // pred_check
          %p565 = pneg %p387
        $region70: #{tpu_custom_call.1} parent=11 // pred_check_branch
          %567 = sbr.rel (%p565) target = $region72
        $region71: #{tpu_custom_call.1} parent=11 // pred_region
          _
        $region72: #{tpu_custom_call.1} parent=11 // pred_fallthru
          _
        // Predicated region
        $region73: #{tpu_custom_call.1} parent=11 // pred_check
          %p568 = pneg %p408
        $region74: #{tpu_custom_call.1} parent=11 // pred_check_branch
          %570 = sbr.rel (%p568) target = $region76
        $region75: #{tpu_custom_call.1} parent=11 // pred_region
          _
        $region76: #{tpu_custom_call.1} parent=11 // pred_fallthru
          _
      $region12: #{tpu_custom_call.1} parent=5 // pred_fallthru
        _
      %p571 = scmp.lt.s32.totalorder %s34, 2
      // Predicated region
      $region77: #{tpu_custom_call.1} parent=5 // pred_check
        %p572 = pneg %p571
      $region78: #{tpu_custom_call.1} parent=5 // pred_check_branch
        %574 = sbr.rel (%p572) target = $region80
      $region79: #{tpu_custom_call.1} parent=5 // pred_region
        // Predicated region
        $region81: #{tpu_custom_call.1} parent=79 // pred_check
          %p575 = pneg %p66
        $region82: #{tpu_custom_call.1} parent=79 // pred_check_branch
          %577 = sbr.rel (%p575) target = $region84
        $region83: #{tpu_custom_call.1} parent=79 // pred_region
          %p578 = scmp.lt.s32.totalorder %s41, 1
          %s579 = scalar_select %p578, %s41, 1
          %s580 = smul.addr %s579, 8
          %s581 = scalar_lea.vmem %s0, %s580
        $region84: #{tpu_custom_call.1} parent=79 // pred_fallthru
          _
      $region80: #{tpu_custom_call.1} parent=5 // pred_fallthru
        _
      %p582 = scmp.le.s32.totalorder 1, %s34
      %p583 = scmp.lt.s32.totalorder %s34, 3
      %p584 = pnand %p582, %p583
      %p585 = pneg %p584
      // Predicated region
      $region85: #{tpu_custom_call.1} parent=5 // pred_check
        _
      $region86: #{tpu_custom_call.1} parent=5 // pred_check_branch
        %587 = sbr.rel (%p584) target = $region88
      $region87: #{tpu_custom_call.1} parent=5 // pred_region
        %s588 = ssub.s32 %s34, 1
        // Predicated region
        $region89: #{tpu_custom_call.1} parent=87 // pred_check
          %p589 = pneg %p177
        $region90: #{tpu_custom_call.1} parent=87 // pred_check_branch
          %591 = sbr.rel (%p589) target = $region92
        $region91: #{tpu_custom_call.1} parent=87 // pred_region
          %592 = dma.done [#allocation5], 256
        $region92: #{tpu_custom_call.1} parent=87 // pred_fallthru
          _
        // Predicated region
        $region93: #{tpu_custom_call.1} parent=87 // pred_check
          %p593 = pneg %p198
        $region94: #{tpu_custom_call.1} parent=87 // pred_check_branch
          %595 = sbr.rel (%p593) target = $region96
        $region95: #{tpu_custom_call.1} parent=87 // pred_region
          %596 = dma.done [#allocation8], 16
        $region96: #{tpu_custom_call.1} parent=87 // pred_fallthru
          _
        // Predicated region
        $region97: #{tpu_custom_call.1} parent=87 // pred_check
          %p597 = pneg %p219
        $region98: #{tpu_custom_call.1} parent=87 // pred_check_branch
          %599 = sbr.rel (%p597) target = $region100
        $region99: #{tpu_custom_call.1} parent=87 // pred_region
          %600 = dma.done [#allocation8], 256
        $region100: #{tpu_custom_call.1} parent=87 // pred_fallthru
          _
        // Predicated region
        $region101: #{tpu_custom_call.1} parent=87 // pred_check
          %p601 = pneg %p240
        $region102: #{tpu_custom_call.1} parent=87 // pred_check_branch
          %603 = sbr.rel (%p601) target = $region104
        $region103: #{tpu_custom_call.1} parent=87 // pred_region
          %604 = dma.done [#allocation11], 16
        $region104: #{tpu_custom_call.1} parent=87 // pred_fallthru
          _
        // Predicated region
        $region105: #{tpu_custom_call.1} parent=87 // pred_check
          %p605 = pneg %p261
        $region106: #{tpu_custom_call.1} parent=87 // pred_check_branch
          %607 = sbr.rel (%p605) target = $region108
        $region107: #{tpu_custom_call.1} parent=87 // pred_region
          %608 = dma.done [#allocation11], 16
        $region108: #{tpu_custom_call.1} parent=87 // pred_fallthru
          _
        %p609 = scmp.lt.s32.totalorder %s43, 1
        %s610 = scalar_select %p609, %s43, 1
        %s611 = smul.addr %s610, 8
        %s612 = scalar_lea.vmem %s0, %s611
        %p613 = pneg %p72
        %p614 = pneg %p69
        %p615 = pneg %p93
        %p616 = pneg %p90
        %p617 = pneg %p114
        %p618 = pneg %p111
        %p619 = pneg %p135
        %p620 = pneg %p132
        %p621 = pneg %p156
        %p622 = pneg %p153
        %p623 = pneg %p177
        %p624 = pneg %p174
        %p625 = pneg %p198
        %p626 = pneg %p195
        %p627 = pneg %p219
        %p628 = pneg %p216
        %p629 = pneg %p240
        %p630 = pneg %p237
        %p631 = pneg %p261
        %p632 = pneg %p258
        %p633 = pneg %p282
        %p634 = pneg %p279
        %p635 = pneg %p303
        %p636 = pneg %p300
        %p637 = pneg %p324
        %p638 = pneg %p321
        %p639 = pneg %p345
        %p640 = pneg %p342
        %p641 = pneg %p366
        %p642 = pneg %p363
        %p643 = pneg %p387
        %p644 = pneg %p384
        %p645 = pneg %p408
        %p646 = pneg %p405
        %p647 = pneg %p436
        %p648 = pneg %p433
        %s649 = sand.u32 %s423, 1
        %s650 = scalar_lea.sflag [#allocation6], %s649
        %s651 = sand.u32 %s423, 1
        %s652 = smul.addr %s651, 8
        %s653 = scalar_lea.vmem [#allocation13], %s652
        %p654 = pneg %p464
        %p655 = pneg %p461
        %s656 = sand.u32 %s451, 1
        %s657 = scalar_lea.sflag [#allocation15], %s656
        %s658 = sand.u32 %s451, 1
        %s659 = smul.addr %s658, 16
        %s660 = scalar_lea.vmem [#allocation14], %s659
        %p661 = scmp.lt.s32.totalorder %s43, 1
        %s662 = scalar_select %p661, %s43, 1
        %s663 = smul.addr %s662, 8
        %s664 = scalar_lea.vmem %s0, %s663
        %p666 = scmp.eq.s32.totalorder %s44, 0
        // Predicated region
        $region109: #{tpu_custom_call.1} parent=87 // pred_check
          %p667 = pneg %p666
        $region110: #{tpu_custom_call.1} parent=87 // pred_check_branch
          %669 = sbr.rel (%p667) target = $region112
        $region111: #{tpu_custom_call.1} parent=87 // pred_region
          %v670 = vld [vmem:[%s664] sm:$0xff]
          %v671 = vpack.c.bf16 %v670, %v670
          %v672 = vld [vmem:[%s3] sm:$0xf]
          %v673 = vld [vmem:[%s3 + $0x4] sm:$0xf]
          %v674 = vld [vmem:[%s3 + $0x8] sm:$0xf]
          %v675 = vld [vmem:[%s3 + $0xc] sm:$0xf]
          %v676 = vld [vmem:[%s4] sm:$0x1]
          %v678 = vlaneseq
          %v679 = vshrl.u32 %v678, 7
          %v680 = vsub.s32 0, %v679
          %v681 = vrot.slane %v676, %v680
          %v687 = vunpack.c.l.b16 %v672
          %v688 = vunpack.c.l.b16 %v673
          %v689 = vunpack.c.l.b16 %v674
          %v690 = vunpack.c.l.b16 %v675
          %v691 = vpack.c.b16 %v688, %v687
          %v692 = vpack.c.b16 %v690, %v689
          %vm695 = vcmask 261120
          %v697 = vsel %vm695, %v671, 0
          %699 = vmatprep.subr.bf16.mxu0 0
          %700 = vmatpush1.bf16.msra.mxu0 %v691
          %701 = vmatprep.subr.bf16.mxu0 0
          %702 = vmatpush1.bf16.msra.mxu0 %v692
          %703 = vmatprep.subr.bf16.mxu0 0
          %704 = vmatpush1.bf16.msra.mxu0 0
          %705 = vmatprep.subr.bf16.mxu0 0
          %706 = vmatpush1.bf16.msra.mxu0 0
          %707 = vmatprep.subr.bf16.mxu0 0
          %708 = vmatpush1.bf16.msra.mxu0 0
          %709 = vmatprep.subr.bf16.mxu0 0
          %710 = vmatpush1.bf16.msra.mxu0 0
          %711 = vmatprep.subr.bf16.mxu0 0
          %712 = vmatpush1.bf16.msra.mxu0 0
          %713 = vmatprep.subr.bf16.mxu0 0
          %714 = vmatpush1.bf16.msra.mxu0 0
          %715 = vmatprep.subr.bf16.mxu0 0
          %716 = vmatpush1.bf16.msra.mxu0 0
          %717 = vmatprep.subr.bf16.mxu0 0
          %718 = vmatpush1.bf16.msra.mxu0 0
          %719 = vmatprep.subr.bf16.mxu0 0
          %720 = vmatpush1.bf16.msra.mxu0 0
          %721 = vmatprep.subr.bf16.mxu0 0
          %722 = vmatpush1.bf16.msra.mxu0 0
          %723 = vmatprep.subr.bf16.mxu0 0
          %724 = vmatpush1.bf16.msra.mxu0 0
          %725 = vmatprep.subr.bf16.mxu0 0
          %726 = vmatpush1.bf16.msra.mxu0 0
          %727 = vmatprep.subr.bf16.mxu0 0
          %728 = vmatpush1.bf16.msra.mxu0 0
          %729 = vmatprep.subr.bf16.mxu0 0
          %730 = vmatpush1.bf16.msra.mxu0 0
          %731 = vmatprep.mubr.bf16.mxu0 0
          %732 = vmatmul.mubr.bf16.gmra.mrb[0].mxu0 %v697
          %v733 = vpop.f32.mrb[0].mxu0
          %v734 = vadd.f32 %v681, %v733
          %v735 = vpop.f32.mrb[0].mxu0
          %v736 = vpop.f32.mrb[0].mxu0
          %v737 = vpop.f32.mrb[0].mxu0
          %738 = vdwg.mxu0
          %v739 = vld [vmem:[#allocation4] sm:$0xf]
          %v740 = vld [vmem:[#allocation4 + $0x4] sm:$0xf]
          %v741 = vld [vmem:[#allocation4 + $0x8] sm:$0xf]
          %v742 = vld [vmem:[#allocation4 + $0xc] sm:$0xf]
          %v743 = vld [vmem:[#allocation7] sm:$0x1]
          %v745 = vlaneseq
          %v746 = vshrl.u32 %v745, 7
          %v747 = vsub.s32 0, %v746
          %v748 = vrot.slane %v743, %v747
          %v754 = vunpack.c.l.b16 %v739
          %v755 = vunpack.c.l.b16 %v740
          %v756 = vunpack.c.l.b16 %v741
          %v757 = vunpack.c.l.b16 %v742
          %v758 = vpack.c.b16 %v755, %v754
          %v759 = vpack.c.b16 %v757, %v756
          %762 = vmatprep.subr.bf16.mxu0 0
          %763 = vmatpush1.bf16.msra.mxu0 %v758
          %764 = vmatprep.subr.bf16.mxu0 0
          %765 = vmatpush1.bf16.msra.mxu0 %v759
          %766 = vmatprep.subr.bf16.mxu0 0
          %767 = vmatpush1.bf16.msra.mxu0 0
          %768 = vmatprep.subr.bf16.mxu0 0
          %769 = vmatpush1.bf16.msra.mxu0 0
          %770 = vmatprep.subr.bf16.mxu0 0
          %771 = vmatpush1.bf16.msra.mxu0 0
          %772 = vmatprep.subr.bf16.mxu0 0
          %773 = vmatpush1.bf16.msra.mxu0 0
          %774 = vmatprep.subr.bf16.mxu0 0
          %775 = vmatpush1.bf16.msra.mxu0 0
          %776 = vmatprep.subr.bf16.mxu0 0
          %777 = vmatpush1.bf16.msra.mxu0 0
          %778 = vmatprep.subr.bf16.mxu0 0
          %779 = vmatpush1.bf16.msra.mxu0 0
          %780 = vmatprep.subr.bf16.mxu0 0
          %781 = vmatpush1.bf16.msra.mxu0 0
          %782 = vmatprep.subr.bf16.mxu0 0
          %783 = vmatpush1.bf16.msra.mxu0 0
          %784 = vmatprep.subr.bf16.mxu0 0
          %785 = vmatpush1.bf16.msra.mxu0 0
          %786 = vmatprep.subr.bf16.mxu0 0
          %787 = vmatpush1.bf16.msra.mxu0 0
          %788 = vmatprep.subr.bf16.mxu0 0
          %789 = vmatpush1.bf16.msra.mxu0 0
          %790 = vmatprep.subr.bf16.mxu0 0
          %791 = vmatpush1.bf16.msra.mxu0 0
          %792 = vmatprep.subr.bf16.mxu0 0
          %793 = vmatpush1.bf16.msra.mxu0 0
          %794 = vmatprep.mubr.bf16.mxu0 0
          %795 = vmatmul.mubr.bf16.gmra.mrb[0].mxu0 %v697
          %v796 = vpop.f32.mrb[0].mxu0
          %v797 = vadd.f32 %v748, %v796
          %v798 = vpop.f32.mrb[0].mxu0
          %v799 = vpop.f32.mrb[0].mxu0
          %v800 = vpop.f32.mrb[0].mxu0
          %801 = vdwg.mxu0
          %v802 = vpack.c.bf16 %v734, %v734
          %804 = vrot.lane.b32.xlu0 %v802, 120
          %v805 = vpop.permute.xlu0 %804
          %806 = vrot.lane.b32.xlu0 %v802, 112
          %v807 = vpop.permute.xlu0 %806
          %808 = vrot.lane.b32.xlu0 %v802, 104
          %v809 = vpop.permute.xlu0 %808
          %v811 = vunpack.c.l.s4 1983009808
          %v812 = vunpack.c.0.s8 %v811
          %v813 = vlaneseq
          %v814 = vshrl.u32 %v813, 7
          %v815 = vsub.s32 %v812, %v814
          %v816 = vrot.slane %v802, %v815
          %v819 = vunpack.c.l.s4 1983009808
          %v820 = vunpack.c.0.s8 %v819
          %v821 = vlaneseq
          %v822 = vshrl.u32 %v821, 7
          %v823 = vsub.s32 %v820, %v822
          %v824 = vrot.slane %v807, %v823
          %v825 = vcombine.low %v816, %v824
          %v826 = vcombine.high %v816, %v824
          %v828 = vunpack.c.l.s4 1934713408
          %v829 = vunpack.c.0.s8 %v828
          %v830 = vlaneseq
          %v831 = vshrl.u32 %v830, 7
          %v832 = vsub.s32 %v829, %v831
          %v833 = vrot.slane %v825, %v832
          %v835 = vunpack.c.l.s4 1934713408
          %v836 = vunpack.c.0.s8 %v835
          %v837 = vlaneseq
          %v838 = vshrl.u32 %v837, 7
          %v839 = vsub.s32 %v836, %v838
          %v840 = vrot.slane %v826, %v839
          %v841 = vcombine.high %v833, 0
          %v842 = vcombine.high %v840, 0
          %v845 = vunpack.c.l.s4 1983009808
          %v846 = vunpack.c.0.s8 %v845
          %v847 = vlaneseq
          %v848 = vshrl.u32 %v847, 7
          %v849 = vsub.s32 %v846, %v848
          %v850 = vrot.slane %v805, %v849
          %v853 = vunpack.c.l.s4 1983009808
          %v854 = vunpack.c.0.s8 %v853
          %v855 = vlaneseq
          %v856 = vshrl.u32 %v855, 7
          %v857 = vsub.s32 %v854, %v856
          %v858 = vrot.slane %v809, %v857
          %v859 = vcombine.low %v850, %v858
          %v860 = vcombine.high %v850, %v858
          %v862 = vunpack.c.l.s4 1934713408
          %v863 = vunpack.c.0.s8 %v862
          %v864 = vlaneseq
          %v865 = vshrl.u32 %v864, 7
          %v866 = vsub.s32 %v863, %v865
          %v867 = vrot.slane %v859, %v866
          %v869 = vunpack.c.l.s4 1934713408
          %v870 = vunpack.c.0.s8 %v869
          %v871 = vlaneseq
          %v872 = vshrl.u32 %v871, 7
          %v873 = vsub.s32 %v870, %v872
          %v874 = vrot.slane %v860, %v873
          %v875 = vcombine.high %v867, 0
          %v876 = vcombine.high %v874, 0
          %v879 = vpack.i.b16 %v867, %v833
          %v881 = vshrl.u32 %v833, 16
          %v882 = vshrl.u32 %v867, 16
          %v883 = vpack.i.b16 %v882, %v881
          %v887 = vpack.i.b16 %v875, %v841
          %v889 = vshrl.u32 %v841, 16
          %v890 = vshrl.u32 %v875, 16
          %v891 = vpack.i.b16 %v890, %v889
          %v895 = vpack.i.b16 %v874, %v840
          %v897 = vshrl.u32 %v840, 16
          %v898 = vshrl.u32 %v874, 16
          %v899 = vpack.i.b16 %v898, %v897
          %v903 = vpack.i.b16 %v876, %v842
          %v905 = vshrl.u32 %v842, 16
          %v906 = vshrl.u32 %v876, 16
          %v907 = vpack.i.b16 %v906, %v905
          %v909 = vcombine.low %v879, %v895
          %v911 = vunpack.c.l.s4 1983009808
          %v912 = vunpack.c.0.s8 %v911
          %v913 = vlaneseq
          %v914 = vshrl.u32 %v913, 7
          %v915 = vsub.s32 %v912, %v914
          %v916 = vrot.slane %v909, %v915
          %v917 = vcombine.low %v887, %v903
          %v919 = vunpack.c.l.s4 1983009808
          %v920 = vunpack.c.0.s8 %v919
          %v921 = vlaneseq
          %v922 = vshrl.u32 %v921, 7
          %v923 = vsub.s32 %v920, %v922
          %v924 = vrot.slane %v917, %v923
          %v925 = vcombine.low %v916, %v924
          %v927 = vunpack.c.l.s4 1934713408
          %v928 = vunpack.c.0.s8 %v927
          %v929 = vlaneseq
          %v930 = vshrl.u32 %v929, 7
          %v931 = vsub.s32 %v928, %v930
          %v932 = vrot.slane %v925, %v931
          %v933 = vcombine.high %v932, 0
          %v934 = vcombine.low %v883, %v899
          %v936 = vunpack.c.l.s4 1983009808
          %v937 = vunpack.c.0.s8 %v936
          %v938 = vlaneseq
          %v939 = vshrl.u32 %v938, 7
          %v940 = vsub.s32 %v937, %v939
          %v941 = vrot.slane %v934, %v940
          %v942 = vcombine.low %v891, %v907
          %v944 = vunpack.c.l.s4 1983009808
          %v945 = vunpack.c.0.s8 %v944
          %v946 = vlaneseq
          %v947 = vshrl.u32 %v946, 7
          %v948 = vsub.s32 %v945, %v947
          %v949 = vrot.slane %v942, %v948
          %v950 = vcombine.low %v941, %v949
          %v952 = vunpack.c.l.s4 1934713408
          %v953 = vunpack.c.0.s8 %v952
          %v954 = vlaneseq
          %v955 = vshrl.u32 %v954, 7
          %v956 = vsub.s32 %v953, %v955
          %v957 = vrot.slane %v950, %v956
          %v958 = vcombine.high %v957, 0
          %v961 = vpack.i.b16 %v957, %v932
          %v963 = vshrl.u32 %v932, 16
          %v964 = vshrl.u32 %v957, 16
          %v965 = vpack.i.b16 %v964, %v963
          %v969 = vpack.i.b16 %v958, %v933
          %v971 = vshrl.u32 %v933, 16
          %v972 = vshrl.u32 %v958, 16
          %v973 = vpack.i.b16 %v972, %v971
          %vm975 = vcmask 60416
          %976 = vst.msk [vmem:[#allocation2] sm:$0xf] %vm975, %v961
          %977 = vst.msk [vmem:[#allocation2 + $0x4] sm:$0xf] %vm975, %v965
          %978 = vst.msk [vmem:[#allocation2 + $0x8] sm:$0xf] %vm975, %v969
          %979 = vst.msk [vmem:[#allocation2 + $0xc] sm:$0xf] %vm975, %v973
          %v980 = vpack.c.bf16 %v797, %v797
          %982 = vrot.lane.b32.xlu0 %v980, 120
          %v983 = vpop.permute.xlu0 %982
          %984 = vrot.lane.b32.xlu0 %v980, 112
          %v985 = vpop.permute.xlu0 %984
          %986 = vrot.lane.b32.xlu0 %v980, 104
          %v987 = vpop.permute.xlu0 %986
          %v989 = vunpack.c.l.s4 1983009808
          %v990 = vunpack.c.0.s8 %v989
          %v991 = vlaneseq
          %v992 = vshrl.u32 %v991, 7
          %v993 = vsub.s32 %v990, %v992
          %v994 = vrot.slane %v980, %v993
          %v997 = vunpack.c.l.s4 1983009808
          %v998 = vunpack.c.0.s8 %v997
          %v999 = vlaneseq
          %v1000 = vshrl.u32 %v999, 7
          %v1001 = vsub.s32 %v998, %v1000
          %v1002 = vrot.slane %v985, %v1001
          %v1003 = vcombine.low %v994, %v1002
          %v1004 = vcombine.high %v994, %v1002
          %v1006 = vunpack.c.l.s4 1934713408
          %v1007 = vunpack.c.0.s8 %v1006
          %v1008 = vlaneseq
          %v1009 = vshrl.u32 %v1008, 7
          %v1010 = vsub.s32 %v1007, %v1009
          %v1011 = vrot.slane %v1003, %v1010
          %v1013 = vunpack.c.l.s4 1934713408
          %v1014 = vunpack.c.0.s8 %v1013
          %v1015 = vlaneseq
          %v1016 = vshrl.u32 %v1015, 7
          %v1017 = vsub.s32 %v1014, %v1016
          %v1018 = vrot.slane %v1004, %v1017
          %v1019 = vcombine.high %v1011, 0
          %v1020 = vcombine.high %v1018, 0
          %v1023 = vunpack.c.l.s4 1983009808
          %v1024 = vunpack.c.0.s8 %v1023
          %v1025 = vlaneseq
          %v1026 = vshrl.u32 %v1025, 7
          %v1027 = vsub.s32 %v1024, %v1026
          %v1028 = vrot.slane %v983, %v1027
          %v1031 = vunpack.c.l.s4 1983009808
          %v1032 = vunpack.c.0.s8 %v1031
          %v1033 = vlaneseq
          %v1034 = vshrl.u32 %v1033, 7
          %v1035 = vsub.s32 %v1032, %v1034
          %v1036 = vrot.slane %v987, %v1035
          %v1037 = vcombine.low %v1028, %v1036
          %v1038 = vcombine.high %v1028, %v1036
          %v1040 = vunpack.c.l.s4 1934713408
          %v1041 = vunpack.c.0.s8 %v1040
          %v1042 = vlaneseq
          %v1043 = vshrl.u32 %v1042, 7
          %v1044 = vsub.s32 %v1041, %v1043
          %v1045 = vrot.slane %v1037, %v1044
          %v1047 = vunpack.c.l.s4 1934713408
          %v1048 = vunpack.c.0.s8 %v1047
          %v1049 = vlaneseq
          %v1050 = vshrl.u32 %v1049, 7
          %v1051 = vsub.s32 %v1048, %v1050
          %v1052 = vrot.slane %v1038, %v1051
          %v1053 = vcombine.high %v1045, 0
          %v1054 = vcombine.high %v1052, 0
          %v1057 = vpack.i.b16 %v1045, %v1011
          %v1059 = vshrl.u32 %v1011, 16
          %v1060 = vshrl.u32 %v1045, 16
          %v1061 = vpack.i.b16 %v1060, %v1059
          %v1065 = vpack.i.b16 %v1053, %v1019
          %v1067 = vshrl.u32 %v1019, 16
          %v1068 = vshrl.u32 %v1053, 16
          %v1069 = vpack.i.b16 %v1068, %v1067
          %v1073 = vpack.i.b16 %v1052, %v1018
          %v1075 = vshrl.u32 %v1018, 16
          %v1076 = vshrl.u32 %v1052, 16
          %v1077 = vpack.i.b16 %v1076, %v1075
          %v1081 = vpack.i.b16 %v1054, %v1020
          %v1083 = vshrl.u32 %v1020, 16
          %v1084 = vshrl.u32 %v1054, 16
          %v1085 = vpack.i.b16 %v1084, %v1083
          %v1087 = vcombine.low %v1057, %v1073
          %v1089 = vunpack.c.l.s4 1983009808
          %v1090 = vunpack.c.0.s8 %v1089
          %v1091 = vlaneseq
          %v1092 = vshrl.u32 %v1091, 7
          %v1093 = vsub.s32 %v1090, %v1092
          %v1094 = vrot.slane %v1087, %v1093
          %v1095 = vcombine.low %v1065, %v1081
          %v1097 = vunpack.c.l.s4 1983009808
          %v1098 = vunpack.c.0.s8 %v1097
          %v1099 = vlaneseq
          %v1100 = vshrl.u32 %v1099, 7
          %v1101 = vsub.s32 %v1098, %v1100
          %v1102 = vrot.slane %v1095, %v1101
          %v1103 = vcombine.low %v1094, %v1102
          %v1105 = vunpack.c.l.s4 1934713408
          %v1106 = vunpack.c.0.s8 %v1105
          %v1107 = vlaneseq
          %v1108 = vshrl.u32 %v1107, 7
          %v1109 = vsub.s32 %v1106, %v1108
          %v1110 = vrot.slane %v1103, %v1109
          %v1111 = vcombine.high %v1110, 0
          %v1112 = vcombine.low %v1061, %v1077
          %v1114 = vunpack.c.l.s4 1983009808
          %v1115 = vunpack.c.0.s8 %v1114
          %v1116 = vlaneseq
          %v1117 = vshrl.u32 %v1116, 7
          %v1118 = vsub.s32 %v1115, %v1117
          %v1119 = vrot.slane %v1112, %v1118
          %v1120 = vcombine.low %v1069, %v1085
          %v1122 = vunpack.c.l.s4 1983009808
          %v1123 = vunpack.c.0.s8 %v1122
          %v1124 = vlaneseq
          %v1125 = vshrl.u32 %v1124, 7
          %v1126 = vsub.s32 %v1123, %v1125
          %v1127 = vrot.slane %v1120, %v1126
          %v1128 = vcombine.low %v1119, %v1127
          %v1130 = vunpack.c.l.s4 1934713408
          %v1131 = vunpack.c.0.s8 %v1130
          %v1132 = vlaneseq
          %v1133 = vshrl.u32 %v1132, 7
          %v1134 = vsub.s32 %v1131, %v1133
          %v1135 = vrot.slane %v1128, %v1134
          %v1136 = vcombine.high %v1135, 0
          %v1139 = vpack.i.b16 %v1135, %v1110
          %v1141 = vshrl.u32 %v1110, 16
          %v1142 = vshrl.u32 %v1135, 16
          %v1143 = vpack.i.b16 %v1142, %v1141
          %v1147 = vpack.i.b16 %v1136, %v1111
          %v1149 = vshrl.u32 %v1111, 16
          %v1150 = vshrl.u32 %v1136, 16
          %v1151 = vpack.i.b16 %v1150, %v1149
          %1153 = vst.msk [vmem:[#allocation3] sm:$0xf] %vm975, %v1139
          %1154 = vst.msk [vmem:[#allocation3 + $0x4] sm:$0xf] %vm975, %v1143
          %1155 = vst.msk [vmem:[#allocation3 + $0x8] sm:$0xf] %vm975, %v1147
          %1156 = vst.msk [vmem:[#allocation3 + $0xc] sm:$0xf] %vm975, %v1151
        $region112: #{tpu_custom_call.1} parent=87 // pred_fallthru
          _
        %s1157 = smul.u32 %s44, 8
        %s1158 = scalar_lea.vmem %s664, %s1157
        %v1159 = vld [vmem:[%s1158] sm:$0xff]
        %v1160 = vpack.c.bf16 %v1159, %v1159
        %v1161 = vld [vmem:[%s1] sm:$0xf]
        %v1162 = vld [vmem:[%s1 + $0x4] sm:$0xf]
        %v1163 = vld [vmem:[%s1 + $0x8] sm:$0xf]
        %v1164 = vld [vmem:[%s1 + $0xc] sm:$0xf]
        %v1165 = vld [vmem:[%s2] sm:$0x1]
        %v1167 = vlaneseq
        %v1168 = vshrl.u32 %v1167, 7
        %v1169 = vsub.s32 0, %v1168
        %v1170 = vrot.slane %v1165, %v1169
        %v1176 = vunpack.c.l.b16 %v1161
        %v1177 = vunpack.c.l.b16 %v1162
        %v1178 = vunpack.c.l.b16 %v1163
        %v1179 = vunpack.c.l.b16 %v1164
        %v1180 = vpack.c.b16 %v1177, %v1176
        %v1181 = vpack.c.b16 %v1179, %v1178
        %vm1184 = vcmask 261120
        %v1186 = vsel %vm1184, %v1160, 0
        %1188 = vmatprep.subr.bf16.mxu0 0
        %1189 = vmatpush1.bf16.msra.mxu0 %v1180
        %1190 = vmatprep.subr.bf16.mxu0 0
        %1191 = vmatpush1.bf16.msra.mxu0 %v1181
        %1192 = vmatprep.subr.bf16.mxu0 0
        %1193 = vmatpush1.bf16.msra.mxu0 0
        %1194 = vmatprep.subr.bf16.mxu0 0
        %1195 = vmatpush1.bf16.msra.mxu0 0
        %1196 = vmatprep.subr.bf16.mxu0 0
        %1197 = vmatpush1.bf16.msra.mxu0 0
        %1198 = vmatprep.subr.bf16.mxu0 0
        %1199 = vmatpush1.bf16.msra.mxu0 0
        %1200 = vmatprep.subr.bf16.mxu0 0
        %1201 = vmatpush1.bf16.msra.mxu0 0
        %1202 = vmatprep.subr.bf16.mxu0 0
        %1203 = vmatpush1.bf16.msra.mxu0 0
        %1204 = vmatprep.subr.bf16.mxu0 0
        %1205 = vmatpush1.bf16.msra.mxu0 0
        %1206 = vmatprep.subr.bf16.mxu0 0
        %1207 = vmatpush1.bf16.msra.mxu0 0
        %1208 = vmatprep.subr.bf16.mxu0 0
        %1209 = vmatpush1.bf16.msra.mxu0 0
        %1210 = vmatprep.subr.bf16.mxu0 0
        %1211 = vmatpush1.bf16.msra.mxu0 0
        %1212 = vmatprep.subr.bf16.mxu0 0
        %1213 = vmatpush1.bf16.msra.mxu0 0
        %1214 = vmatprep.subr.bf16.mxu0 0
        %1215 = vmatpush1.bf16.msra.mxu0 0
        %1216 = vmatprep.subr.bf16.mxu0 0
        %1217 = vmatpush1.bf16.msra.mxu0 0
        %1218 = vmatprep.subr.bf16.mxu0 0
        %1219 = vmatpush1.bf16.msra.mxu0 0
        %1220 = vmatprep.mubr.bf16.mxu0 0
        %1221 = vmatmul.mubr.bf16.gmra.mrb[0].mxu0 %v1186
        %v1222 = vpop.f32.mrb[0].mxu0
        %v1223 = vadd.f32 %v1170, %v1222
        %v1224 = vpop.f32.mrb[0].mxu0
        %v1225 = vpop.f32.mrb[0].mxu0
        %v1226 = vpop.f32.mrb[0].mxu0
        %1227 = vdwg.mxu0
        %v1228 = vpack.c.bf16 %v1223, %v1223
        %1230 = vrot.lane.b32.xlu0 %v1228, 120
        %v1231 = vpop.permute.xlu0 %1230
        %1232 = vrot.lane.b32.xlu0 %v1228, 112
        %v1233 = vpop.permute.xlu0 %1232
        %1234 = vrot.lane.b32.xlu0 %v1228, 104
        %v1235 = vpop.permute.xlu0 %1234
        %v1237 = vunpack.c.l.s4 1983009808
        %v1238 = vunpack.c.0.s8 %v1237
        %v1239 = vlaneseq
        %v1240 = vshrl.u32 %v1239, 7
        %v1241 = vsub.s32 %v1238, %v1240
        %v1242 = vrot.slane %v1228, %v1241
        %v1245 = vunpack.c.l.s4 1983009808
        %v1246 = vunpack.c.0.s8 %v1245
        %v1247 = vlaneseq
        %v1248 = vshrl.u32 %v1247, 7
        %v1249 = vsub.s32 %v1246, %v1248
        %v1250 = vrot.slane %v1233, %v1249
        %v1251 = vcombine.low %v1242, %v1250
        %v1252 = vcombine.high %v1242, %v1250
        %v1254 = vunpack.c.l.s4 1934713408
        %v1255 = vunpack.c.0.s8 %v1254
        %v1256 = vlaneseq
        %v1257 = vshrl.u32 %v1256, 7
        %v1258 = vsub.s32 %v1255, %v1257
        %v1259 = vrot.slane %v1251, %v1258
        %v1261 = vunpack.c.l.s4 1934713408
        %v1262 = vunpack.c.0.s8 %v1261
        %v1263 = vlaneseq
        %v1264 = vshrl.u32 %v1263, 7
        %v1265 = vsub.s32 %v1262, %v1264
        %v1266 = vrot.slane %v1252, %v1265
        %v1267 = vcombine.high %v1259, 0
        %v1268 = vcombine.high %v1266, 0
        %v1271 = vunpack.c.l.s4 1983009808
        %v1272 = vunpack.c.0.s8 %v1271
        %v1273 = vlaneseq
        %v1274 = vshrl.u32 %v1273, 7
        %v1275 = vsub.s32 %v1272, %v1274
        %v1276 = vrot.slane %v1231, %v1275
        %v1279 = vunpack.c.l.s4 1983009808
        %v1280 = vunpack.c.0.s8 %v1279
        %v1281 = vlaneseq
        %v1282 = vshrl.u32 %v1281, 7
        %v1283 = vsub.s32 %v1280, %v1282
        %v1284 = vrot.slane %v1235, %v1283
        %v1285 = vcombine.low %v1276, %v1284
        %v1286 = vcombine.high %v1276, %v1284
        %v1288 = vunpack.c.l.s4 1934713408
        %v1289 = vunpack.c.0.s8 %v1288
        %v1290 = vlaneseq
        %v1291 = vshrl.u32 %v1290, 7
        %v1292 = vsub.s32 %v1289, %v1291
        %v1293 = vrot.slane %v1285, %v1292
        %v1295 = vunpack.c.l.s4 1934713408
        %v1296 = vunpack.c.0.s8 %v1295
        %v1297 = vlaneseq
        %v1298 = vshrl.u32 %v1297, 7
        %v1299 = vsub.s32 %v1296, %v1298
        %v1300 = vrot.slane %v1286, %v1299
        %v1301 = vcombine.high %v1293, 0
        %v1302 = vcombine.high %v1300, 0
        %v1305 = vpack.i.b16 %v1293, %v1259
        %v1307 = vshrl.u32 %v1259, 16
        %v1308 = vshrl.u32 %v1293, 16
        %v1309 = vpack.i.b16 %v1308, %v1307
        %v1313 = vpack.i.b16 %v1301, %v1267
        %v1315 = vshrl.u32 %v1267, 16
        %v1316 = vshrl.u32 %v1301, 16
        %v1317 = vpack.i.b16 %v1316, %v1315
        %v1321 = vpack.i.b16 %v1300, %v1266
        %v1323 = vshrl.u32 %v1266, 16
        %v1324 = vshrl.u32 %v1300, 16
        %v1325 = vpack.i.b16 %v1324, %v1323
        %v1329 = vpack.i.b16 %v1302, %v1268
        %v1331 = vshrl.u32 %v1268, 16
        %v1332 = vshrl.u32 %v1302, 16
        %v1333 = vpack.i.b16 %v1332, %v1331
        %v1335 = vcombine.low %v1305, %v1321
        %v1337 = vunpack.c.l.s4 1983009808
        %v1338 = vunpack.c.0.s8 %v1337
        %v1339 = vlaneseq
        %v1340 = vshrl.u32 %v1339, 7
        %v1341 = vsub.s32 %v1338, %v1340
        %v1342 = vrot.slane %v1335, %v1341
        %v1343 = vcombine.low %v1313, %v1329
        %v1345 = vunpack.c.l.s4 1983009808
        %v1346 = vunpack.c.0.s8 %v1345
        %v1347 = vlaneseq
        %v1348 = vshrl.u32 %v1347, 7
        %v1349 = vsub.s32 %v1346, %v1348
        %v1350 = vrot.slane %v1343, %v1349
        %v1351 = vcombine.low %v1342, %v1350
        %v1353 = vunpack.c.l.s4 1934713408
        %v1354 = vunpack.c.0.s8 %v1353
        %v1355 = vlaneseq
        %v1356 = vshrl.u32 %v1355, 7
        %v1357 = vsub.s32 %v1354, %v1356
        %v1358 = vrot.slane %v1351, %v1357
        %v1359 = vcombine.high %v1358, 0
        %v1360 = vcombine.low %v1309, %v1325
        %v1362 = vunpack.c.l.s4 1983009808
        %v1363 = vunpack.c.0.s8 %v1362
        %v1364 = vlaneseq
        %v1365 = vshrl.u32 %v1364, 7
        %v1366 = vsub.s32 %v1363, %v1365
        %v1367 = vrot.slane %v1360, %v1366
        %v1368 = vcombine.low %v1317, %v1333
        %v1370 = vunpack.c.l.s4 1983009808
        %v1371 = vunpack.c.0.s8 %v1370
        %v1372 = vlaneseq
        %v1373 = vshrl.u32 %v1372, 7
        %v1374 = vsub.s32 %v1371, %v1373
        %v1375 = vrot.slane %v1368, %v1374
        %v1376 = vcombine.low %v1367, %v1375
        %v1378 = vunpack.c.l.s4 1934713408
        %v1379 = vunpack.c.0.s8 %v1378
        %v1380 = vlaneseq
        %v1381 = vshrl.u32 %v1380, 7
        %v1382 = vsub.s32 %v1379, %v1381
        %v1383 = vrot.slane %v1376, %v1382
        %v1384 = vcombine.high %v1383, 0
        %v1387 = vpack.i.b16 %v1383, %v1358
        %v1388 = vshrl.u32 %v1358, 16
        %v1389 = vshrl.u32 %v1383, 16
        %v1390 = vpack.i.b16 %v1389, %v1388
        %v1393 = vpack.i.b16 %v1384, %v1359
        %v1394 = vshrl.u32 %v1359, 16
        %v1395 = vshrl.u32 %v1384, 16
        %v1396 = vpack.i.b16 %v1395, %v1394
        %v1397 = vld [vmem:[#allocation2] sm:$0xf]
        %v1398 = vld [vmem:[#allocation2 + $0x4] sm:$0xf]
        %v1399 = vld [vmem:[#allocation2 + $0x8] sm:$0xf]
        %v1400 = vld [vmem:[#allocation2 + $0xc] sm:$0xf]
        %vm1401 = vcmask 64512
        %v1403 = vsel %vm1401, %v1387, 0
        %v1406 = vsel %vm1401, %v1397, 0
        %1408 = vmatprep.subr.bf16.mxu0 0
        %1409 = vmatpush1.bf16.xpose.msra.mxu0 %v1406
        %1410 = vmatprep.subr.bf16.mxu0 0
        %1411 = vmatpush1.bf16.xpose.msra.mxu0 0
        %1412 = vmatprep.subr.bf16.mxu0 0
        %1413 = vmatpush1.bf16.xpose.msra.mxu0 0
        %1414 = vmatprep.subr.bf16.mxu0 0
        %1415 = vmatpush1.bf16.xpose.msra.mxu0 0
        %1416 = vmatprep.subr.bf16.mxu0 0
        %1417 = vmatpush1.bf16.xpose.msra.mxu0 0
        %1418 = vmatprep.subr.bf16.mxu0 0
        %1419 = vmatpush1.bf16.xpose.msra.mxu0 0
        %1420 = vmatprep.subr.bf16.mxu0 0
        %1421 = vmatpush1.bf16.xpose.msra.mxu0 0
        %1422 = vmatprep.subr.bf16.mxu0 0
        %1423 = vmatpush1.bf16.xpose.msra.mxu0 0
        %1424 = vmatprep.subr.bf16.mxu0 0
        %1425 = vmatpush1.bf16.xpose.msra.mxu0 0
        %1426 = vmatprep.subr.bf16.mxu0 0
        %1427 = vmatpush1.bf16.xpose.msra.mxu0 0
        %1428 = vmatprep.subr.bf16.mxu0 0
        %1429 = vmatpush1.bf16.xpose.msra.mxu0 0
        %1430 = vmatprep.subr.bf16.mxu0 0
        %1431 = vmatpush1.bf16.xpose.msra.mxu0 0
        %1432 = vmatprep.subr.bf16.mxu0 0
        %1433 = vmatpush1.bf16.xpose.msra.mxu0 0
        %1434 = vmatprep.subr.bf16.mxu0 0
        %1435 = vmatpush1.bf16.xpose.msra.mxu0 0
        %1436 = vmatprep.subr.bf16.mxu0 0
        %1437 = vmatpush1.bf16.xpose.msra.mxu0 0
        %1438 = vmatprep.subr.bf16.mxu0 0
        %1439 = vmatpush1.bf16.xpose.msra.mxu0 0
        %1440 = vmatprep.mubr.bf16.mxu0 0
        %1441 = vmatmul.mubr.bf16.gmra.mrb[0].mxu0 %v1403
        %v1442 = vpop.f32.mrb[0].mxu0
        %v1443 = vadd.f32 0.0, %v1442
        %v1444 = vpop.f32.mrb[0].mxu0
        %v1445 = vpop.f32.mrb[0].mxu0
        %v1446 = vpop.f32.mrb[0].mxu0
        %1447 = vdwg.mxu0
        %v1449 = vsel %vm1401, %v1390, 0
        %v1452 = vsel %vm1401, %v1398, 0
        %1454 = vmatprep.subr.bf16.mxu0 0
        %1455 = vmatpush1.bf16.xpose.msra.mxu0 %v1452
        %1456 = vmatprep.subr.bf16.mxu0 0
        %1457 = vmatpush1.bf16.xpose.msra.mxu0 0
        %1458 = vmatprep.subr.bf16.mxu0 0
        %1459 = vmatpush1.bf16.xpose.msra.mxu0 0
        %1460 = vmatprep.subr.bf16.mxu0 0
        %1461 = vmatpush1.bf16.xpose.msra.mxu0 0
        %1462 = vmatprep.subr.bf16.mxu0 0
        %1463 = vmatpush1.bf16.xpose.msra.mxu0 0
        %1464 = vmatprep.subr.bf16.mxu0 0
        %1465 = vmatpush1.bf16.xpose.msra.mxu0 0
        %1466 = vmatprep.subr.bf16.mxu0 0
        %1467 = vmatpush1.bf16.xpose.msra.mxu0 0
        %1468 = vmatprep.subr.bf16.mxu0 0
        %1469 = vmatpush1.bf16.xpose.msra.mxu0 0
        %1470 = vmatprep.subr.bf16.mxu0 0
        %1471 = vmatpush1.bf16.xpose.msra.mxu0 0
        %1472 = vmatprep.subr.bf16.mxu0 0
        %1473 = vmatpush1.bf16.xpose.msra.mxu0 0
        %1474 = vmatprep.subr.bf16.mxu0 0
        %1475 = vmatpush1.bf16.xpose.msra.mxu0 0
        %1476 = vmatprep.subr.bf16.mxu0 0
        %1477 = vmatpush1.bf16.xpose.msra.mxu0 0
        %1478 = vmatprep.subr.bf16.mxu0 0
        %1479 = vmatpush1.bf16.xpose.msra.mxu0 0
        %1480 = vmatprep.subr.bf16.mxu0 0
        %1481 = vmatpush1.bf16.xpose.msra.mxu0 0
        %1482 = vmatprep.subr.bf16.mxu0 0
        %1483 = vmatpush1.bf16.xpose.msra.mxu0 0
        %1484 = vmatprep.subr.bf16.mxu0 0
        %1485 = vmatpush1.bf16.xpose.msra.mxu0 0
        %1486 = vmatprep.mubr.bf16.mxu0 0
        %1487 = vmatmul.mubr.bf16.gmra.mrb[0].mxu0 %v1449
        %v1488 = vpop.f32.mrb[0].mxu0
        %v1489 = vadd.f32 0.0, %v1488
        %v1490 = vpop.f32.mrb[0].mxu0
        %v1491 = vpop.f32.mrb[0].mxu0
        %v1492 = vpop.f32.mrb[0].mxu0
        %1493 = vdwg.mxu0
        %v1495 = vsel %vm1401, %v1393, 0
        %v1498 = vsel %vm1401, %v1399, 0
        %1500 = vmatprep.subr.bf16.mxu0 0
        %1501 = vmatpush1.bf16.xpose.msra.mxu0 %v1498
        %1502 = vmatprep.subr.bf16.mxu0 0
        %1503 = vmatpush1.bf16.xpose.msra.mxu0 0
        %1504 = vmatprep.subr.bf16.mxu0 0
        %1505 = vmatpush1.bf16.xpose.msra.mxu0 0
        %1506 = vmatprep.subr.bf16.mxu0 0
        %1507 = vmatpush1.bf16.xpose.msra.mxu0 0
        %1508 = vmatprep.subr.bf16.mxu0 0
        %1509 = vmatpush1.bf16.xpose.msra.mxu0 0
        %1510 = vmatprep.subr.bf16.mxu0 0
        %1511 = vmatpush1.bf16.xpose.msra.mxu0 0
        %1512 = vmatprep.subr.bf16.mxu0 0
        %1513 = vmatpush1.bf16.xpose.msra.mxu0 0
        %1514 = vmatprep.subr.bf16.mxu0 0
        %1515 = vmatpush1.bf16.xpose.msra.mxu0 0
        %1516 = vmatprep.subr.bf16.mxu0 0
        %1517 = vmatpush1.bf16.xpose.msra.mxu0 0
        %1518 = vmatprep.subr.bf16.mxu0 0
        %1519 = vmatpush1.bf16.xpose.msra.mxu0 0
        %1520 = vmatprep.subr.bf16.mxu0 0
        %1521 = vmatpush1.bf16.xpose.msra.mxu0 0
        %1522 = vmatprep.subr.bf16.mxu0 0
        %1523 = vmatpush1.bf16.xpose.msra.mxu0 0
        %1524 = vmatprep.subr.bf16.mxu0 0
        %1525 = vmatpush1.bf16.xpose.msra.mxu0 0
        %1526 = vmatprep.subr.bf16.mxu0 0
        %1527 = vmatpush1.bf16.xpose.msra.mxu0 0
        %1528 = vmatprep.subr.bf16.mxu0 0
        %1529 = vmatpush1.bf16.xpose.msra.mxu0 0
        %1530 = vmatprep.subr.bf16.mxu0 0
        %1531 = vmatpush1.bf16.xpose.msra.mxu0 0
        %1532 = vmatprep.mubr.bf16.mxu0 0
        %1533 = vmatmul.mubr.bf16.gmra.mrb[0].mxu0 %v1495
        %v1534 = vpop.f32.mrb[0].mxu0
        %v1535 = vadd.f32 0.0, %v1534
        %v1536 = vpop.f32.mrb[0].mxu0
        %v1537 = vpop.f32.mrb[0].mxu0
        %v1538 = vpop.f32.mrb[0].mxu0
        %1539 = vdwg.mxu0
        %v1541 = vsel %vm1401, %v1396, 0
        %v1544 = vsel %vm1401, %v1400, 0
        %1546 = vmatprep.subr.bf16.mxu0 0
        %1547 = vmatpush1.bf16.xpose.msra.mxu0 %v1544
        %1548 = vmatprep.subr.bf16.mxu0 0
        %1549 = vmatpush1.bf16.xpose.msra.mxu0 0
        %1550 = vmatprep.subr.bf16.mxu0 0
        %1551 = vmatpush1.bf16.xpose.msra.mxu0 0
        %1552 = vmatprep.subr.bf16.mxu0 0
        %1553 = vmatpush1.bf16.xpose.msra.mxu0 0
        %1554 = vmatprep.subr.bf16.mxu0 0
        %1555 = vmatpush1.bf16.xpose.msra.mxu0 0
        %1556 = vmatprep.subr.bf16.mxu0 0
        %1557 = vmatpush1.bf16.xpose.msra.mxu0 0
        %1558 = vmatprep.subr.bf16.mxu0 0
        %1559 = vmatpush1.bf16.xpose.msra.mxu0 0
        %1560 = vmatprep.subr.bf16.mxu0 0
        %1561 = vmatpush1.bf16.xpose.msra.mxu0 0
        %1562 = vmatprep.subr.bf16.mxu0 0
        %1563 = vmatpush1.bf16.xpose.msra.mxu0 0
        %1564 = vmatprep.subr.bf16.mxu0 0
        %1565 = vmatpush1.bf16.xpose.msra.mxu0 0
        %1566 = vmatprep.subr.bf16.mxu0 0
        %1567 = vmatpush1.bf16.xpose.msra.mxu0 0
        %1568 = vmatprep.subr.bf16.mxu0 0
        %1569 = vmatpush1.bf16.xpose.msra.mxu0 0
        %1570 = vmatprep.subr.bf16.mxu0 0
        %1571 = vmatpush1.bf16.xpose.msra.mxu0 0
        %1572 = vmatprep.subr.bf16.mxu0 0
        %1573 = vmatpush1.bf16.xpose.msra.mxu0 0
        %1574 = vmatprep.subr.bf16.mxu0 0
        %1575 = vmatpush1.bf16.xpose.msra.mxu0 0
        %1576 = vmatprep.subr.bf16.mxu0 0
        %1577 = vmatpush1.bf16.xpose.msra.mxu0 0
        %1578 = vmatprep.mubr.bf16.mxu0 0
        %1579 = vmatmul.mubr.bf16.gmra.mrb[0].mxu0 %v1541
        %v1580 = vpop.f32.mrb[0].mxu0
        %v1581 = vadd.f32 0.0, %v1580
        %v1582 = vpop.f32.mrb[0].mxu0
        %v1583 = vpop.f32.mrb[0].mxu0
        %v1584 = vpop.f32.mrb[0].mxu0
        %1585 = vdwg.mxu0
        %v1586 = vsel %vm1401, %v1443, -inf
        %1587 = vmax.xlane.f32.xlu0 %v1586
        %v1588 = vpop.xlane.xlu0 %1587
        %v1589 = vsel %vm1401, %v1489, -inf
        %1590 = vmax.xlane.f32.xlu0 %v1589
        %v1591 = vpop.xlane.xlu0 %1590
        %v1592 = vsel %vm1401, %v1535, -inf
        %1593 = vmax.xlane.f32.xlu0 %v1592
        %v1594 = vpop.xlane.xlu0 %1593
        %v1595 = vsel %vm1401, %v1581, -inf
        %1596 = vmax.xlane.f32.xlu0 %v1595
        %v1597 = vpop.xlane.xlu0 %1596
        %v1598 = vsub.f32 %v1443, %v1588
        %v1599 = vsub.f32 %v1489, %v1591
        %v1600 = vsub.f32 %v1535, %v1594
        %v1601 = vsub.f32 %v1581, %v1597
        %v1602 = vmul.f32 %v1598, 1.442695
        %v1603 = vpow.pop %v1602
        %v1604 = vmul.f32 %v1599, 1.442695
        %v1605 = vpow.pop %v1604
        %v1606 = vmul.f32 %v1600, 1.442695
        %v1607 = vpow.pop %v1606
        %v1608 = vmul.f32 %v1601, 1.442695
        %v1609 = vpow.pop %v1608
        %v1610 = vsel %vm1401, %v1603, 0.0
        %1611 = vadd.xlane.f32.xlu0 %v1610
        %v1612 = vpop.xlane.xlu0 %1611
        %v1613 = vsel %vm1401, %v1605, 0.0
        %1614 = vadd.xlane.f32.xlu0 %v1613
        %v1615 = vpop.xlane.xlu0 %1614
        %v1616 = vsel %vm1401, %v1607, 0.0
        %1617 = vadd.xlane.f32.xlu0 %v1616
        %v1618 = vpop.xlane.xlu0 %1617
        %v1619 = vsel %vm1401, %v1609, 0.0
        %1620 = vadd.xlane.f32.xlu0 %v1619
        %v1621 = vpop.xlane.xlu0 %1620
        %v1622 = vrcp.pop %v1612
        %v1623 = vrcp.pop %v1615
        %v1624 = vrcp.pop %v1618
        %v1625 = vrcp.pop %v1621
        %v1626 = vmul.f32 %v1603, %v1622
        %v1627 = vmul.f32 %v1605, %v1623
        %v1628 = vmul.f32 %v1607, %v1624
        %v1629 = vmul.f32 %v1609, %v1625
        %v1630 = vpack.c.bf16 %v1626, %v1626
        %v1631 = vpack.c.bf16 %v1627, %v1627
        %v1632 = vpack.c.bf16 %v1628, %v1628
        %v1633 = vpack.c.bf16 %v1629, %v1629
        %vm1634 = vcmask 60416
        %1635 = vst.msk [vmem:[%s660] sm:$0xf] %vm1634, %v1630
        %1636 = vst.msk [vmem:[%s660 + $0x4] sm:$0xf] %vm1634, %v1631
        %1637 = vst.msk [vmem:[%s660 + $0x8] sm:$0xf] %vm1634, %v1632
        %1638 = vst.msk [vmem:[%s660 + $0xc] sm:$0xf] %vm1634, %v1633
        %v1639 = vld [vmem:[#allocation3] sm:$0xf]
        %v1640 = vld [vmem:[#allocation3 + $0x4] sm:$0xf]
        %v1641 = vld [vmem:[#allocation3 + $0x8] sm:$0xf]
        %v1642 = vld [vmem:[#allocation3 + $0xc] sm:$0xf]
        %v1644 = vsel %vm1401, %v1630, 0
        %vm1646 = vcmask 1043456
        %v1648 = vsel %vm1646, %v1639, 0
        %1650 = vmatprep.subr.bf16.mxu0 0
        %1651 = vmatpush1.bf16.msra.mxu0 %v1648
        %1652 = vmatprep.subr.bf16.mxu0 0
        %1653 = vmatpush1.bf16.msra.mxu0 0
        %1654 = vmatprep.subr.bf16.mxu0 0
        %1655 = vmatpush1.bf16.msra.mxu0 0
        %1656 = vmatprep.subr.bf16.mxu0 0
        %1657 = vmatpush1.bf16.msra.mxu0 0
        %1658 = vmatprep.subr.bf16.mxu0 0
        %1659 = vmatpush1.bf16.msra.mxu0 0
        %1660 = vmatprep.subr.bf16.mxu0 0
        %1661 = vmatpush1.bf16.msra.mxu0 0
        %1662 = vmatprep.subr.bf16.mxu0 0
        %1663 = vmatpush1.bf16.msra.mxu0 0
        %1664 = vmatprep.subr.bf16.mxu0 0
        %1665 = vmatpush1.bf16.msra.mxu0 0
        %1666 = vmatprep.subr.bf16.mxu0 0
        %1667 = vmatpush1.bf16.msra.mxu0 0
        %1668 = vmatprep.subr.bf16.mxu0 0
        %1669 = vmatpush1.bf16.msra.mxu0 0
        %1670 = vmatprep.subr.bf16.mxu0 0
        %1671 = vmatpush1.bf16.msra.mxu0 0
        %1672 = vmatprep.subr.bf16.mxu0 0
        %1673 = vmatpush1.bf16.msra.mxu0 0
        %1674 = vmatprep.subr.bf16.mxu0 0
        %1675 = vmatpush1.bf16.msra.mxu0 0
        %1676 = vmatprep.subr.bf16.mxu0 0
        %1677 = vmatpush1.bf16.msra.mxu0 0
        %1678 = vmatprep.subr.bf16.mxu0 0
        %1679 = vmatpush1.bf16.msra.mxu0 0
        %1680 = vmatprep.subr.bf16.mxu0 0
        %1681 = vmatpush1.bf16.msra.mxu0 0
        %1682 = vmatprep.mubr.bf16.mxu0 0
        %1683 = vmatmul.mubr.bf16.gmra.mrb[0].mxu0 %v1644
        %v1684 = vpop.f32.mrb[0].mxu0
        %v1685 = vadd.f32 0.0, %v1684
        %v1686 = vpop.f32.mrb[0].mxu0
        %v1687 = vpop.f32.mrb[0].mxu0
        %v1688 = vpop.f32.mrb[0].mxu0
        %1689 = vdwg.mxu0
        %v1691 = vsel %vm1401, %v1631, 0
        %v1694 = vsel %vm1646, %v1640, 0
        %1696 = vmatprep.subr.bf16.mxu0 0
        %1697 = vmatpush1.bf16.msra.mxu0 %v1694
        %1698 = vmatprep.subr.bf16.mxu0 0
        %1699 = vmatpush1.bf16.msra.mxu0 0
        %1700 = vmatprep.subr.bf16.mxu0 0
        %1701 = vmatpush1.bf16.msra.mxu0 0
        %1702 = vmatprep.subr.bf16.mxu0 0
        %1703 = vmatpush1.bf16.msra.mxu0 0
        %1704 = vmatprep.subr.bf16.mxu0 0
        %1705 = vmatpush1.bf16.msra.mxu0 0
        %1706 = vmatprep.subr.bf16.mxu0 0
        %1707 = vmatpush1.bf16.msra.mxu0 0
        %1708 = vmatprep.subr.bf16.mxu0 0
        %1709 = vmatpush1.bf16.msra.mxu0 0
        %1710 = vmatprep.subr.bf16.mxu0 0
        %1711 = vmatpush1.bf16.msra.mxu0 0
        %1712 = vmatprep.subr.bf16.mxu0 0
        %1713 = vmatpush1.bf16.msra.mxu0 0
        %1714 = vmatprep.subr.bf16.mxu0 0
        %1715 = vmatpush1.bf16.msra.mxu0 0
        %1716 = vmatprep.subr.bf16.mxu0 0
        %1717 = vmatpush1.bf16.msra.mxu0 0
        %1718 = vmatprep.subr.bf16.mxu0 0
        %1719 = vmatpush1.bf16.msra.mxu0 0
        %1720 = vmatprep.subr.bf16.mxu0 0
        %1721 = vmatpush1.bf16.msra.mxu0 0
        %1722 = vmatprep.subr.bf16.mxu0 0
        %1723 = vmatpush1.bf16.msra.mxu0 0
        %1724 = vmatprep.subr.bf16.mxu0 0
        %1725 = vmatpush1.bf16.msra.mxu0 0
        %1726 = vmatprep.subr.bf16.mxu0 0
        %1727 = vmatpush1.bf16.msra.mxu0 0
        %1728 = vmatprep.mubr.bf16.mxu0 0
        %1729 = vmatmul.mubr.bf16.gmra.mrb[0].mxu0 %v1691
        %v1730 = vpop.f32.mrb[0].mxu0
        %v1731 = vadd.f32 0.0, %v1730
        %v1732 = vpop.f32.mrb[0].mxu0
        %v1733 = vpop.f32.mrb[0].mxu0
        %v1734 = vpop.f32.mrb[0].mxu0
        %1735 = vdwg.mxu0
        %v1737 = vsel %vm1401, %v1632, 0
        %v1740 = vsel %vm1646, %v1641, 0
        %1742 = vmatprep.subr.bf16.mxu0 0
        %1743 = vmatpush1.bf16.msra.mxu0 %v1740
        %1744 = vmatprep.subr.bf16.mxu0 0
        %1745 = vmatpush1.bf16.msra.mxu0 0
        %1746 = vmatprep.subr.bf16.mxu0 0
        %1747 = vmatpush1.bf16.msra.mxu0 0
        %1748 = vmatprep.subr.bf16.mxu0 0
        %1749 = vmatpush1.bf16.msra.mxu0 0
        %1750 = vmatprep.subr.bf16.mxu0 0
        %1751 = vmatpush1.bf16.msra.mxu0 0
        %1752 = vmatprep.subr.bf16.mxu0 0
        %1753 = vmatpush1.bf16.msra.mxu0 0
        %1754 = vmatprep.subr.bf16.mxu0 0
        %1755 = vmatpush1.bf16.msra.mxu0 0
        %1756 = vmatprep.subr.bf16.mxu0 0
        %1757 = vmatpush1.bf16.msra.mxu0 0
        %1758 = vmatprep.subr.bf16.mxu0 0
        %1759 = vmatpush1.bf16.msra.mxu0 0
        %1760 = vmatprep.subr.bf16.mxu0 0
        %1761 = vmatpush1.bf16.msra.mxu0 0
        %1762 = vmatprep.subr.bf16.mxu0 0
        %1763 = vmatpush1.bf16.msra.mxu0 0
        %1764 = vmatprep.subr.bf16.mxu0 0
        %1765 = vmatpush1.bf16.msra.mxu0 0
        %1766 = vmatprep.subr.bf16.mxu0 0
        %1767 = vmatpush1.bf16.msra.mxu0 0
        %1768 = vmatprep.subr.bf16.mxu0 0
        %1769 = vmatpush1.bf16.msra.mxu0 0
        %1770 = vmatprep.subr.bf16.mxu0 0
        %1771 = vmatpush1.bf16.msra.mxu0 0
        %1772 = vmatprep.subr.bf16.mxu0 0
        %1773 = vmatpush1.bf16.msra.mxu0 0
        %1774 = vmatprep.mubr.bf16.mxu0 0
        %1775 = vmatmul.mubr.bf16.gmra.mrb[0].mxu0 %v1737
        %v1776 = vpop.f32.mrb[0].mxu0
        %v1777 = vadd.f32 0.0, %v1776
        %v1778 = vpop.f32.mrb[0].mxu0
        %v1779 = vpop.f32.mrb[0].mxu0
        %v1780 = vpop.f32.mrb[0].mxu0
        %1781 = vdwg.mxu0
        %v1783 = vsel %vm1401, %v1633, 0
        %v1786 = vsel %vm1646, %v1642, 0
        %1788 = vmatprep.subr.bf16.mxu0 0
        %1789 = vmatpush1.bf16.msra.mxu0 %v1786
        %1790 = vmatprep.subr.bf16.mxu0 0
        %1791 = vmatpush1.bf16.msra.mxu0 0
        %1792 = vmatprep.subr.bf16.mxu0 0
        %1793 = vmatpush1.bf16.msra.mxu0 0
        %1794 = vmatprep.subr.bf16.mxu0 0
        %1795 = vmatpush1.bf16.msra.mxu0 0
        %1796 = vmatprep.subr.bf16.mxu0 0
        %1797 = vmatpush1.bf16.msra.mxu0 0
        %1798 = vmatprep.subr.bf16.mxu0 0
        %1799 = vmatpush1.bf16.msra.mxu0 0
        %1800 = vmatprep.subr.bf16.mxu0 0
        %1801 = vmatpush1.bf16.msra.mxu0 0
        %1802 = vmatprep.subr.bf16.mxu0 0
        %1803 = vmatpush1.bf16.msra.mxu0 0
        %1804 = vmatprep.subr.bf16.mxu0 0
        %1805 = vmatpush1.bf16.msra.mxu0 0
        %1806 = vmatprep.subr.bf16.mxu0 0
        %1807 = vmatpush1.bf16.msra.mxu0 0
        %1808 = vmatprep.subr.bf16.mxu0 0
        %1809 = vmatpush1.bf16.msra.mxu0 0
        %1810 = vmatprep.subr.bf16.mxu0 0
        %1811 = vmatpush1.bf16.msra.mxu0 0
        %1812 = vmatprep.subr.bf16.mxu0 0
        %1813 = vmatpush1.bf16.msra.mxu0 0
        %1814 = vmatprep.subr.bf16.mxu0 0
        %1815 = vmatpush1.bf16.msra.mxu0 0
        %1816 = vmatprep.subr.bf16.mxu0 0
        %1817 = vmatpush1.bf16.msra.mxu0 0
        %1818 = vmatprep.subr.bf16.mxu0 0
        %1819 = vmatpush1.bf16.msra.mxu0 0
        %1820 = vmatprep.mubr.bf16.mxu0 0
        %1821 = vmatmul.mubr.bf16.gmra.mrb[0].mxu0 %v1783
        %v1822 = vpop.f32.mrb[0].mxu0
        %v1823 = vadd.f32 0.0, %v1822
        %v1824 = vpop.f32.mrb[0].mxu0
        %v1825 = vpop.f32.mrb[0].mxu0
        %v1826 = vpop.f32.mrb[0].mxu0
        %1827 = vdwg.mxu0
        %v1828 = vpack.c.bf16 %v1685, %v1685
        %v1830 = vunpack.c.l.s4 1983009808
        %v1831 = vunpack.c.0.s8 %v1830
        %v1832 = vlaneseq
        %v1833 = vshrl.u32 %v1832, 7
        %v1834 = vsub.s32 %v1831, %v1833
        %v1835 = vrot.slane %v1828, %v1834
        %v1836 = vpack.c.bf16 %v1777, %v1777
        %v1838 = vunpack.c.l.s4 1983009808
        %v1839 = vunpack.c.0.s8 %v1838
        %v1840 = vlaneseq
        %v1841 = vshrl.u32 %v1840, 7
        %v1842 = vsub.s32 %v1839, %v1841
        %v1843 = vrot.slane %v1836, %v1842
        %v1844 = vcombine.low %v1835, %v1843
        %v1845 = vcombine.high %v1835, %v1843
        %v1847 = vunpack.c.l.s4 1934713408
        %v1848 = vunpack.c.0.s8 %v1847
        %v1849 = vlaneseq
        %v1850 = vshrl.u32 %v1849, 7
        %v1851 = vsub.s32 %v1848, %v1850
        %v1852 = vrot.slane %v1844, %v1851
        %v1854 = vunpack.c.l.s4 1934713408
        %v1855 = vunpack.c.0.s8 %v1854
        %v1856 = vlaneseq
        %v1857 = vshrl.u32 %v1856, 7
        %v1858 = vsub.s32 %v1855, %v1857
        %v1859 = vrot.slane %v1845, %v1858
        %v1860 = vcombine.high %v1852, 0
        %v1861 = vcombine.high %v1859, 0
        %v1862 = vpack.c.bf16 %v1731, %v1731
        %v1864 = vunpack.c.l.s4 1983009808
        %v1865 = vunpack.c.0.s8 %v1864
        %v1866 = vlaneseq
        %v1867 = vshrl.u32 %v1866, 7
        %v1868 = vsub.s32 %v1865, %v1867
        %v1869 = vrot.slane %v1862, %v1868
        %v1870 = vpack.c.bf16 %v1823, %v1823
        %v1872 = vunpack.c.l.s4 1983009808
        %v1873 = vunpack.c.0.s8 %v1872
        %v1874 = vlaneseq
        %v1875 = vshrl.u32 %v1874, 7
        %v1876 = vsub.s32 %v1873, %v1875
        %v1877 = vrot.slane %v1870, %v1876
        %v1878 = vcombine.low %v1869, %v1877
        %v1879 = vcombine.high %v1869, %v1877
        %v1881 = vunpack.c.l.s4 1934713408
        %v1882 = vunpack.c.0.s8 %v1881
        %v1883 = vlaneseq
        %v1884 = vshrl.u32 %v1883, 7
        %v1885 = vsub.s32 %v1882, %v1884
        %v1886 = vrot.slane %v1878, %v1885
        %v1888 = vunpack.c.l.s4 1934713408
        %v1889 = vunpack.c.0.s8 %v1888
        %v1890 = vlaneseq
        %v1891 = vshrl.u32 %v1890, 7
        %v1892 = vsub.s32 %v1889, %v1891
        %v1893 = vrot.slane %v1879, %v1892
        %v1894 = vcombine.high %v1886, 0
        %v1895 = vcombine.high %v1893, 0
        %v1898 = vpack.i.b16 %v1886, %v1852
        %v1900 = vshrl.u32 %v1852, 16
        %v1901 = vshrl.u32 %v1886, 16
        %v1902 = vpack.i.b16 %v1901, %v1900
        %v1906 = vpack.i.b16 %v1894, %v1860
        %v1908 = vshrl.u32 %v1860, 16
        %v1909 = vshrl.u32 %v1894, 16
        %v1910 = vpack.i.b16 %v1909, %v1908
        %v1914 = vpack.i.b16 %v1893, %v1859
        %v1916 = vshrl.u32 %v1859, 16
        %v1917 = vshrl.u32 %v1893, 16
        %v1918 = vpack.i.b16 %v1917, %v1916
        %v1922 = vpack.i.b16 %v1895, %v1861
        %v1924 = vshrl.u32 %v1861, 16
        %v1925 = vshrl.u32 %v1895, 16
        %v1926 = vpack.i.b16 %v1925, %v1924
        %v1928 = vcombine.low %v1898, %v1914
        %v1930 = vunpack.c.l.s4 1983009808
        %v1931 = vunpack.c.0.s8 %v1930
        %v1932 = vlaneseq
        %v1933 = vshrl.u32 %v1932, 7
        %v1934 = vsub.s32 %v1931, %v1933
        %v1935 = vrot.slane %v1928, %v1934
        %v1936 = vcombine.low %v1906, %v1922
        %v1938 = vunpack.c.l.s4 1983009808
        %v1939 = vunpack.c.0.s8 %v1938
        %v1940 = vlaneseq
        %v1941 = vshrl.u32 %v1940, 7
        %v1942 = vsub.s32 %v1939, %v1941
        %v1943 = vrot.slane %v1936, %v1942
        %v1944 = vcombine.low %v1935, %v1943
        %v1946 = vunpack.c.l.s4 1934713408
        %v1947 = vunpack.c.0.s8 %v1946
        %v1948 = vlaneseq
        %v1949 = vshrl.u32 %v1948, 7
        %v1950 = vsub.s32 %v1947, %v1949
        %v1951 = vrot.slane %v1944, %v1950
        %v1952 = vcombine.high %v1951, 0
        %v1953 = vcombine.low %v1902, %v1918
        %v1955 = vunpack.c.l.s4 1983009808
        %v1956 = vunpack.c.0.s8 %v1955
        %v1957 = vlaneseq
        %v1958 = vshrl.u32 %v1957, 7
        %v1959 = vsub.s32 %v1956, %v1958
        %v1960 = vrot.slane %v1953, %v1959
        %v1961 = vcombine.low %v1910, %v1926
        %v1963 = vunpack.c.l.s4 1983009808
        %v1964 = vunpack.c.0.s8 %v1963
        %v1965 = vlaneseq
        %v1966 = vshrl.u32 %v1965, 7
        %v1967 = vsub.s32 %v1964, %v1966
        %v1968 = vrot.slane %v1961, %v1967
        %v1969 = vcombine.low %v1960, %v1968
        %v1971 = vunpack.c.l.s4 1934713408
        %v1972 = vunpack.c.0.s8 %v1971
        %v1973 = vlaneseq
        %v1974 = vshrl.u32 %v1973, 7
        %v1975 = vsub.s32 %v1972, %v1974
        %v1976 = vrot.slane %v1969, %v1975
        %v1977 = vcombine.high %v1976, 0
        %v1980 = vpack.i.b16 %v1976, %v1951
        %v1981 = vshrl.u32 %v1951, 16
        %v1982 = vshrl.u32 %v1976, 16
        %v1983 = vpack.i.b16 %v1982, %v1981
        %v1986 = vpack.i.b16 %v1977, %v1952
        %v1987 = vshrl.u32 %v1952, 16
        %v1988 = vshrl.u32 %v1977, 16
        %v1989 = vpack.i.b16 %v1988, %v1987
        %1990 = vrot.lane.b32.xlu0 %v1983, 8
        %v1991 = vpop.permute.xlu0 %1990
        %1992 = vrot.lane.b32.xlu0 %v1986, 16
        %v1993 = vpop.permute.xlu0 %1992
        %1994 = vrot.lane.b32.xlu0 %v1989, 24
        %v1995 = vpop.permute.xlu0 %1994
        %v1998 = vsel %vm1401, %v1980, %v1991
        %vm1999 = vcmask 130048
        %v2001 = vsel %vm1999, %v1998, %v1993
        %vm2002 = vcmask 195584
        %v2004 = vsel %vm2002, %v2001, %v1995
        %v2005 = vld [vmem:[#allocation9] sm:$0xf]
        %v2006 = vld [vmem:[#allocation9 + $0x4] sm:$0xf]
        %v2007 = vld [vmem:[#allocation9 + $0x8] sm:$0xf]
        %v2008 = vld [vmem:[#allocation9 + $0xc] sm:$0xf]
        %v2009 = vld [vmem:[#allocation10] sm:$0x1]
        %v2011 = vlaneseq
        %v2012 = vshrl.u32 %v2011, 7
        %v2013 = vsub.s32 0, %v2012
        %v2014 = vrot.slane %v2009, %v2013
        %v2020 = vunpack.c.l.b16 %v2005
        %v2021 = vunpack.c.l.b16 %v2006
        %v2022 = vunpack.c.l.b16 %v2007
        %v2023 = vunpack.c.l.b16 %v2008
        %v2024 = vpack.c.b16 %v2021, %v2020
        %v2025 = vpack.c.b16 %v2023, %v2022
        %v2028 = vsel %vm1184, %v2004, 0
        %2030 = vmatprep.subr.bf16.mxu0 0
        %2031 = vmatpush1.bf16.msra.mxu0 %v2024
        %2032 = vmatprep.subr.bf16.mxu0 0
        %2033 = vmatpush1.bf16.msra.mxu0 %v2025
        %2034 = vmatprep.subr.bf16.mxu0 0
        %2035 = vmatpush1.bf16.msra.mxu0 0
        %2036 = vmatprep.subr.bf16.mxu0 0
        %2037 = vmatpush1.bf16.msra.mxu0 0
        %2038 = vmatprep.subr.bf16.mxu0 0
        %2039 = vmatpush1.bf16.msra.mxu0 0
        %2040 = vmatprep.subr.bf16.mxu0 0
        %2041 = vmatpush1.bf16.msra.mxu0 0
        %2042 = vmatprep.subr.bf16.mxu0 0
        %2043 = vmatpush1.bf16.msra.mxu0 0
        %2044 = vmatprep.subr.bf16.mxu0 0
        %2045 = vmatpush1.bf16.msra.mxu0 0
        %2046 = vmatprep.subr.bf16.mxu0 0
        %2047 = vmatpush1.bf16.msra.mxu0 0
        %2048 = vmatprep.subr.bf16.mxu0 0
        %2049 = vmatpush1.bf16.msra.mxu0 0
        %2050 = vmatprep.subr.bf16.mxu0 0
        %2051 = vmatpush1.bf16.msra.mxu0 0
        %2052 = vmatprep.subr.bf16.mxu0 0
        %2053 = vmatpush1.bf16.msra.mxu0 0
        %2054 = vmatprep.subr.bf16.mxu0 0
        %2055 = vmatpush1.bf16.msra.mxu0 0
        %2056 = vmatprep.subr.bf16.mxu0 0
        %2057 = vmatpush1.bf16.msra.mxu0 0
        %2058 = vmatprep.subr.bf16.mxu0 0
        %2059 = vmatpush1.bf16.msra.mxu0 0
        %2060 = vmatprep.subr.bf16.mxu0 0
        %2061 = vmatpush1.bf16.msra.mxu0 0
        %2062 = vmatprep.mubr.bf16.mxu0 0
        %2063 = vmatmul.mubr.bf16.gmra.mrb[0].mxu0 %v2028
        %v2064 = vpop.f32.mrb[0].mxu0
        %v2065 = vadd.f32 %v2014, %v2064
        %v2066 = vpop.f32.mrb[0].mxu0
        %v2067 = vpop.f32.mrb[0].mxu0
        %v2068 = vpop.f32.mrb[0].mxu0
        %2069 = vdwg.mxu0
        %v2070 = vadd.f32 %v1159, %v2065
        %v2071 = vld [vmem:[#allocation12] sm:$0x1]
        %v2072 = vld [vmem:[%s10] sm:$0x1]
        %v2073 = vsel %vm1184, %v2070, 0.0
        %2074 = vadd.xlane.f32.xlu0 %v2073
        %v2075 = vpop.xlane.xlu0 %2074
        %v2076 = vrcp.pop 32.0
        %v2077 = vmul.f32 %v2075, %v2076
        %v2078 = vsub.f32 %v2070, %v2077
        %v2079 = vmul.f32 %v2078, %v2078
        %v2080 = vsel %vm1184, %v2079, 0.0
        %2081 = vadd.xlane.f32.xlu0 %v2080
        %v2082 = vpop.xlane.xlu0 %2081
        %v2083 = vmul.f32 %v2082, %v2076
        %v2084 = vadd.f32 %v2083, 1e-05
        %v2085 = vrsqrt.pop %v2084
        %v2086 = vmul.f32 %v2078, %v2085
        %v2088 = vlaneseq
        %v2089 = vshrl.u32 %v2088, 7
        %v2090 = vsub.s32 0, %v2089
        %v2091 = vrot.slane %v2071, %v2090
        %v2093 = vmul.f32 %v2086, %v2091
        %v2095 = vlaneseq
        %v2096 = vshrl.u32 %v2095, 7
        %v2097 = vsub.s32 0, %v2096
        %v2098 = vrot.slane %v2072, %v2097
        %v2100 = vadd.f32 %v2093, %v2098
        %v2101 = vpack.c.bf16 %v2100, %v2100
        %v2102 = vld [vmem:[%s11] sm:$0xf]
        %v2103 = vld [vmem:[%s11 + $0x4] sm:$0xf]
        %v2104 = vld [vmem:[%s11 + $0x8] sm:$0xf]
        %v2105 = vld [vmem:[%s11 + $0xc] sm:$0xf]
        %v2106 = vld [vmem:[%s12] sm:$0x1]
        %v2108 = vlaneseq
        %v2109 = vshrl.u32 %v2108, 7
        %v2110 = vsub.s32 0, %v2109
        %v2111 = vrot.slane %v2106, %v2110
        %v2117 = vunpack.c.l.b16 %v2102
        %v2118 = vunpack.c.l.b16 %v2103
        %v2119 = vunpack.c.l.b16 %v2104
        %v2120 = vunpack.c.l.b16 %v2105
        %v2121 = vpack.c.b16 %v2118, %v2117
        %v2122 = vpack.c.b16 %v2120, %v2119
        %v2126 = vsel %vm1184, %v2101, 0
        %2128 = vmatprep.subr.bf16.mxu0 0
        %2129 = vmatpush1.bf16.msra.mxu0 %v2121
        %2130 = vmatprep.subr.bf16.mxu0 0
        %2131 = vmatpush1.bf16.msra.mxu0 %v2122
        %2132 = vmatprep.subr.bf16.mxu0 0
        %2133 = vmatpush1.bf16.msra.mxu0 0
        %2134 = vmatprep.subr.bf16.mxu0 0
        %2135 = vmatpush1.bf16.msra.mxu0 0
        %2136 = vmatprep.subr.bf16.mxu0 0
        %2137 = vmatpush1.bf16.msra.mxu0 0
        %2138 = vmatprep.subr.bf16.mxu0 0
        %2139 = vmatpush1.bf16.msra.mxu0 0
        %2140 = vmatprep.subr.bf16.mxu0 0
        %2141 = vmatpush1.bf16.msra.mxu0 0
        %2142 = vmatprep.subr.bf16.mxu0 0
        %2143 = vmatpush1.bf16.msra.mxu0 0
        %2144 = vmatprep.subr.bf16.mxu0 0
        %2145 = vmatpush1.bf16.msra.mxu0 0
        %2146 = vmatprep.subr.bf16.mxu0 0
        %2147 = vmatpush1.bf16.msra.mxu0 0
        %2148 = vmatprep.subr.bf16.mxu0 0
        %2149 = vmatpush1.bf16.msra.mxu0 0
        %2150 = vmatprep.subr.bf16.mxu0 0
        %2151 = vmatpush1.bf16.msra.mxu0 0
        %2152 = vmatprep.subr.bf16.mxu0 0
        %2153 = vmatpush1.bf16.msra.mxu0 0
        %2154 = vmatprep.subr.bf16.mxu0 0
        %2155 = vmatpush1.bf16.msra.mxu0 0
        %2156 = vmatprep.subr.bf16.mxu0 0
        %2157 = vmatpush1.bf16.msra.mxu0 0
        %2158 = vmatprep.subr.bf16.mxu0 0
        %2159 = vmatpush1.bf16.msra.mxu0 0
        %2160 = vmatprep.mubr.bf16.mxu0 0
        %2161 = vmatmul.mubr.bf16.gmra.mrb[0].mxu0 %v2126
        %v2162 = vpop.f32.mrb[0].mxu0
        %v2163 = vadd.f32 %v2111, %v2162
        %v2164 = vpop.f32.mrb[0].mxu0
        %v2165 = vpop.f32.mrb[0].mxu0
        %v2166 = vpop.f32.mrb[0].mxu0
        %2167 = vdwg.mxu0
        %v2168 = vmul.f32 %v2163, %v2163
        %v2169 = vmul.f32 %v2163, %v2168
        %v2170 = vmul.f32 %v2169, 0.044715
        %v2171 = vadd.f32 %v2163, %v2170
        %v2172 = vmul.f32 %v2171, 0.7978846
        %v2173 = vtanh.pop %v2172
        %v2174 = vadd.f32 %v2173, 1.0
        %v2175 = vmul.f32 %v2174, 0.5
        %v2176 = vmul.f32 %v2163, %v2175
        %v2177 = vpack.c.bf16 %v2176, %v2176
        %v2178 = vld [vmem:[%s13] sm:$0xf]
        %v2179 = vld [vmem:[%s13 + $0x4] sm:$0xf]
        %v2180 = vld [vmem:[%s13 + $0x8] sm:$0xf]
        %v2181 = vld [vmem:[%s13 + $0xc] sm:$0xf]
        %v2182 = vld [vmem:[%s13 + $0x10] sm:$0xf]
        %v2183 = vld [vmem:[%s13 + $0x14] sm:$0xf]
        %v2184 = vld [vmem:[%s13 + $0x18] sm:$0xf]
        %v2185 = vld [vmem:[%s13 + $0x1c] sm:$0xf]
        %v2186 = vld [vmem:[%s14] sm:$0x1]
        %v2188 = vlaneseq
        %v2189 = vshrl.u32 %v2188, 7
        %v2190 = vsub.s32 0, %v2189
        %v2191 = vrot.slane %v2186, %v2190
        %v2201 = vunpack.c.l.b16 %v2178
        %v2202 = vunpack.c.l.b16 %v2179
        %v2203 = vunpack.c.l.b16 %v2180
        %v2204 = vunpack.c.l.b16 %v2181
        %v2205 = vunpack.c.l.b16 %v2182
        %v2206 = vunpack.c.l.b16 %v2183
        %v2207 = vunpack.c.l.b16 %v2184
        %v2208 = vunpack.c.l.b16 %v2185
        %v2209 = vpack.c.b16 %v2202, %v2201
        %v2210 = vpack.c.b16 %v2204, %v2203
        %v2211 = vpack.c.b16 %v2206, %v2205
        %v2212 = vpack.c.b16 %v2208, %v2207
        %vm2217 = vcmask 523264
        %v2219 = vsel %vm2217, %v2177, 0
        %2221 = vmatprep.subr.bf16.mxu0 0
        %2222 = vmatpush1.bf16.msra.mxu0 %v2209
        %2223 = vmatprep.subr.bf16.mxu0 0
        %2224 = vmatpush1.bf16.msra.mxu0 %v2210
        %2225 = vmatprep.subr.bf16.mxu0 0
        %2226 = vmatpush1.bf16.msra.mxu0 %v2211
        %2227 = vmatprep.subr.bf16.mxu0 0
        %2228 = vmatpush1.bf16.msra.mxu0 %v2212
        %2229 = vmatprep.subr.bf16.mxu0 0
        %2230 = vmatpush1.bf16.msra.mxu0 0
        %2231 = vmatprep.subr.bf16.mxu0 0
        %2232 = vmatpush1.bf16.msra.mxu0 0
        %2233 = vmatprep.subr.bf16.mxu0 0
        %2234 = vmatpush1.bf16.msra.mxu0 0
        %2235 = vmatprep.subr.bf16.mxu0 0
        %2236 = vmatpush1.bf16.msra.mxu0 0
        %2237 = vmatprep.subr.bf16.mxu0 0
        %2238 = vmatpush1.bf16.msra.mxu0 0
        %2239 = vmatprep.subr.bf16.mxu0 0
        %2240 = vmatpush1.bf16.msra.mxu0 0
        %2241 = vmatprep.subr.bf16.mxu0 0
        %2242 = vmatpush1.bf16.msra.mxu0 0
        %2243 = vmatprep.subr.bf16.mxu0 0
        %2244 = vmatpush1.bf16.msra.mxu0 0
        %2245 = vmatprep.subr.bf16.mxu0 0
        %2246 = vmatpush1.bf16.msra.mxu0 0
        %2247 = vmatprep.subr.bf16.mxu0 0
        %2248 = vmatpush1.bf16.msra.mxu0 0
        %2249 = vmatprep.subr.bf16.mxu0 0
        %2250 = vmatpush1.bf16.msra.mxu0 0
        %2251 = vmatprep.subr.bf16.mxu0 0
        %2252 = vmatpush1.bf16.msra.mxu0 0
        %2253 = vmatprep.mubr.bf16.mxu0 0
        %2254 = vmatmul.mubr.bf16.gmra.mrb[0].mxu0 %v2219
        %v2255 = vpop.f32.mrb[0].mxu0
        %v2256 = vadd.f32 %v2191, %v2255
        %v2257 = vpop.f32.mrb[0].mxu0
        %v2258 = vpop.f32.mrb[0].mxu0
        %v2259 = vpop.f32.mrb[0].mxu0
        %2260 = vdwg.mxu0
        %v2261 = vadd.f32 %v2100, %v2256
        %v2262 = vld [vmem:[%s15] sm:$0x1]
        %v2263 = vld [vmem:[%s16] sm:$0x1]
        %v2264 = vsel %vm1184, %v2261, 0.0
        %2265 = vadd.xlane.f32.xlu0 %v2264
        %v2266 = vpop.xlane.xlu0 %2265
        %v2267 = vmul.f32 %v2266, %v2076
        %v2268 = vsub.f32 %v2261, %v2267
        %v2269 = vmul.f32 %v2268, %v2268
        %v2270 = vsel %vm1184, %v2269, 0.0
        %2271 = vadd.xlane.f32.xlu0 %v2270
        %v2272 = vpop.xlane.xlu0 %2271
        %v2273 = vmul.f32 %v2272, %v2076
        %v2274 = vadd.f32 %v2273, 1e-05
        %v2275 = vrsqrt.pop %v2274
        %v2276 = vmul.f32 %v2268, %v2275
        %v2278 = vlaneseq
        %v2279 = vshrl.u32 %v2278, 7
        %v2280 = vsub.s32 0, %v2279
        %v2281 = vrot.slane %v2262, %v2280
        %v2283 = vmul.f32 %v2276, %v2281
        %v2285 = vlaneseq
        %v2286 = vshrl.u32 %v2285, 7
        %v2287 = vsub.s32 0, %v2286
        %v2288 = vrot.slane %v2263, %v2287
        %v2290 = vadd.f32 %v2283, %v2288
        %2291 = vst.msk [vmem:[%s653] sm:$0xff] %vm1184, %v2290
        %s2292 = sand.u32 %s423, 1
        %s2293 = scalar_lea.sflag [#allocation6], %s2292
        %s2294 = sand.u32 %s423, 1
        %s2295 = smul.addr %s2294, 8
        %s2296 = scalar_lea.vmem [#allocation13], %s2295
        %s2297 = sand.u32 %s451, 1
        %s2298 = scalar_lea.sflag [#allocation15], %s2297
        %s2299 = sand.u32 %s451, 1
        %s2300 = smul.addr %s2299, 16
        %s2301 = scalar_lea.vmem [#allocation14], %s2300
        // Predicated region
        $region113: #{tpu_custom_call.1} parent=87 // pred_check
          %p2302 = pneg %p433
        $region114: #{tpu_custom_call.1} parent=87 // pred_check_branch
          %2304 = sbr.rel (%p2302) target = $region116
        $region115: #{tpu_custom_call.1} parent=87 // pred_region
          %s2306 = ssub.s32 128, 128
          %2307 = vsyncadd %s2293, %s2306
          %s2308 = sadd.s32 %s44, %s43
          %s2309 = smul.addr %s2308, 128
          %s2310 = scalar_lea.hbm %s17, %s2309
          %s2312 = sshll.u32 %s2296, 4
          %s2313 = int_to_ptr.vmem [resolvable:$true] %s2312
          %2315 = dma.vmem_to_hbm [thread:$0]  %s2313, 128, %s2310, %s2293
        $region116: #{tpu_custom_call.1} parent=87 // pred_fallthru
          _
        // Predicated region
        $region117: #{tpu_custom_call.1} parent=87 // pred_check
          %p2316 = pneg %p461
        $region118: #{tpu_custom_call.1} parent=87 // pred_check_branch
          %2318 = sbr.rel (%p2316) target = $region120
        $region119: #{tpu_custom_call.1} parent=87 // pred_region
          %s2320 = ssub.s32 256, 256
          %2321 = vsyncadd %s2298, %s2320
          %s2322 = smul.addr %s43, 4
          %s2323 = sadd.s32 %s44, %s2322
          %s2324 = smul.addr %s2323, 64
          %s2325 = scalar_lea.hbm %s18, %s2324
          %s2326 = sshll.u32 %s2301, 4
          %s2327 = int_to_ptr.vmem [resolvable:$true] %s2326
          %2332 = dma.vmem_to_hbm [thread:$0]  %s2327, 256, %s2325, %s2298, 64, 64, 4
        $region120: #{tpu_custom_call.1} parent=87 // pred_fallthru
          _
      $region88: #{tpu_custom_call.1} parent=5 // pred_fallthru
        _
      %p2333 = scmp.le.s32.totalorder 2, %s34
      // Predicated region
      $region121: #{tpu_custom_call.1} parent=5 // pred_check
        %p2334 = pneg %p2333
      $region122: #{tpu_custom_call.1} parent=5 // pred_check_branch
        %2336 = sbr.rel (%p2334) target = $region124
      $region123: #{tpu_custom_call.1} parent=5 // pred_region
        %s2337 = ssub.s32 %s34, 2
        // Predicated region
        $region125: #{tpu_custom_call.1} parent=123 // pred_check
          %p2338 = pneg %p439
        $region126: #{tpu_custom_call.1} parent=123 // pred_check_branch
          %2340 = sbr.rel (%p2338) target = $region128
        $region127: #{tpu_custom_call.1} parent=123 // pred_region
          %s2341 = sand.u32 %s424, 1
          %s2342 = scalar_lea.sflag [#allocation6], %s2341
          %s2343 = sand.u32 %s424, 1
          %s2344 = smul.addr %s2343, 8
          %s2345 = scalar_lea.vmem [#allocation13], %s2344
          %2346 = dma.done %s2342, 128
        $region128: #{tpu_custom_call.1} parent=123 // pred_fallthru
          _
        // Predicated region
        $region129: #{tpu_custom_call.1} parent=123 // pred_check
          %p2347 = pneg %p467
        $region130: #{tpu_custom_call.1} parent=123 // pred_check_branch
          %2349 = sbr.rel (%p2347) target = $region132
        $region131: #{tpu_custom_call.1} parent=123 // pred_region
          %s2350 = sand.u32 %s452, 1
          %s2351 = scalar_lea.sflag [#allocation15], %s2350
          %s2352 = sand.u32 %s452, 1
          %s2353 = smul.addr %s2352, 16
          %s2354 = scalar_lea.vmem [#allocation14], %s2353
          %2355 = dma.done %s2351, 256
        $region132: #{tpu_custom_call.1} parent=123 // pred_fallthru
          _
      $region124: #{tpu_custom_call.1} parent=5 // pred_fallthru
        _
    $region6: #{tpu_custom_call.1} parent=1 // loop_footer
      %s38 = sadd.s32 1, %s34
    $region7: #{tpu_custom_call.1} parent=1 // loop_footer_branch
      %33 = sbr.rel target = $region3
    $region8: #{tpu_custom_call.1} parent=1 // loop_exit
      _
    %2356 = vsyncpa [#allocation5], 1
    %s2357 = scalar_lea.sflag [#allocation5], 1
    %2358 = vsyncpa %s2357, 1
    %2359 = vsyncpa [#allocation8], 1
    %2360 = vsyncpa [#allocation11], 1
    %2361 = vsyncpa [#allocation6], 1
    %s2362 = scalar_lea.sflag [#allocation6], 1
    %2363 = vsyncpa %s2362, 1
    %2364 = vsyncpa [#allocation15], 1
    %s2365 = scalar_lea.sflag [#allocation15], 1
    %2366 = vsyncpa %s2365, 1

// kernel: tpu_custom_call.1
$region0: #{tpu_custom_call.1}
  #allocation0 [shape = 'u32[]', space=smem, size = 0x4, offset = 0x4, fixed_abs, tag = 'smem constant byte address 0x4 - core index']
  #allocation1 [shape = 'u32[144,128]{1,0:T(1,128)}', space=vmem, size = 0x12000, scoped, tag = 'internal scratch']
  #allocation2 [shape = 'bf16[4,8,8]{2,1,0:T(8,128)(2,1)}', space=vmem, size = 0x2000, scoped, tag = 'scratch operand']
  #allocation3 [shape = 'bf16[4,8,8]{2,1,0:T(8,128)(2,1)}', space=vmem, size = 0x2000, scoped, tag = 'scratch operand']
  %s0 = inlined_call_operand.vmem [shape: f32[2,8,32], index: 0, kind: input, shape index: {}]
  %s1 = inlined_call_operand.vmem [shape: bf16[32,32], index: 1, kind: input, shape index: {}]
  %s2 = inlined_call_operand.vmem [shape: f32[1,32], index: 2, kind: input, shape index: {}]
  %s3 = inlined_call_operand.vmem [shape: bf16[32,32], index: 3, kind: input, shape index: {}]
  %s4 = inlined_call_operand.vmem [shape: f32[1,32], index: 4, kind: input, shape index: {}]
  %s5 = inlined_call_operand.hbm [shape: bf16[32,32], index: 5, kind: input, shape index: {}]
  %s6 = inlined_call_operand.hbm [shape: f32[1,32], index: 6, kind: input, shape index: {}]
  %s7 = inlined_call_operand.hbm [shape: bf16[32,32], index: 7, kind: input, shape index: {}]
  %s8 = inlined_call_operand.hbm [shape: f32[1,32], index: 8, kind: input, shape index: {}]
  %s9 = inlined_call_operand.hbm [shape: f32[1,32], index: 9, kind: input, shape index: {}]
  %s10 = inlined_call_operand.vmem [shape: f32[1,32], index: 10, kind: input, shape index: {}]
  %s11 = inlined_call_operand.vmem [shape: bf16[32,64], index: 11, kind: input, shape index: {}]
  %s12 = inlined_call_operand.vmem [shape: f32[1,64], index: 12, kind: input, shape index: {}]
  %s13 = inlined_call_operand.vmem [shape: bf16[64,32], index: 13, kind: input, shape index: {}]
  %s14 = inlined_call_operand.vmem [shape: f32[1,32], index: 14, kind: input, shape index: {}]
  %s15 = inlined_call_operand.vmem [shape: f32[1,32], index: 15, kind: input, shape index: {}]
  %s16 = inlined_call_operand.vmem [shape: f32[1,32], index: 16, kind: input, shape index: {}]
  %s17 = inlined_call_operand.hbm [shape: f32[2,8,32], index: 17, kind: output, shape index: {0}]
  %s18 = inlined_call_operand.hbm [shape: bf16[2,4,8,8], index: 18, kind: output, shape index: {1}]
  %19 = xla_tuple %s17, %s18
  %s20 = sld [smem:[#allocation0]]
  $region133: #{tpu_custom_call.1} parent=0
    _
  %s22 = ssub.s32 1, %s20
  %s23 = scalar_select 0, %s22, %s20
  $region1: #{tpu_custom_call.1} parent=0
    #allocation4 [shape = 'u8[8192]{0}', space=vmem, size = 0x2000, scoped, tag = 'input window, operand 5, single buffered']
    #allocation5 [shape = 's32[2]{0}', space=sflag, size = 0x8, scoped, tag = 'scoped memory for tpu_custom_call.1']
    #allocation6 [shape = 's32[2]{0}', space=sflag, size = 0x8, scoped, tag = 'scoped memory for tpu_custom_call.1']
    #allocation7 [shape = 'u8[512]{0}', space=vmem, size = 0x400, scoped, tag = 'input window, operand 6, single buffered']
    #allocation8 [shape = 's32[1]{0}', space=sflag, size = 0x4, scoped, tag = 'scoped memory for tpu_custom_call.1']
    #allocation9 [shape = 'u8[8192]{0}', space=vmem, size = 0x2000, scoped, tag = 'input window, operand 7, single buffered']
    #allocation10 [shape = 'u8[512]{0}', space=vmem, size = 0x400, scoped, tag = 'input window, operand 8, single buffered']
    #allocation11 [shape = 's32[1]{0}', space=sflag, size = 0x4, scoped, tag = 'scoped memory for tpu_custom_call.1']
    #allocation12 [shape = 'u8[512]{0}', space=vmem, size = 0x400, scoped, tag = 'input window, operand 9, single buffered']
    #allocation13 [shape = 'u8[8192]{0}', space=vmem, size = 0x2000, scoped, tag = 'output window, operand 0']
    #allocation14 [shape = 'u8[16384]{0}', space=vmem, size = 0x4000, scoped, tag = 'output window, operand 1']
    #allocation15 [shape = 's32[2]{0}', space=sflag, size = 0x8, scoped, tag = 'scoped memory for tpu_custom_call.1']
    %24 = vsyncpa [#allocation5], 0
    %25 = vsyncpa [#allocation8], 0
    %26 = vsyncpa [#allocation11], 0
    %27 = vsyncpa [#allocation6], 0
    %s28 = scalar_lea.sflag [#allocation6], 1
    %29 = vsyncpa %s28, 0
    %30 = vsyncpa [#allocation15], 0
    %s31 = scalar_lea.sflag [#allocation15], 1
    %32 = vsyncpa %s31, 0
    loop: start=0, step=1, limit=4
    $region2: #{tpu_custom_call.1} parent=1 // loop_pre_header
      _
    $region3: #{tpu_custom_call.1} parent=1 // loop_header
      %s34 = sphi 0, %s38
      %p35 = scmp.ge.s32.totalorder %s34, 4
      %s41 = sphi 0, %s53
      %s42 = sphi 0, %s49
      %s43 = sphi 0, %s41
      %s44 = sphi 0, %s42
      %s45 = sphi 0, %s43
      %s46 = sphi 0, %s44
      %s56 = sphi 0, %s58
      %s59 = sphi 0, %s56
      %s60 = sphi 0, %s59
      %s76 = sphi 0, %s60
      %s80 = sphi 0, %s80
      %s82 = sphi 0, %s80
      %s83 = sphi 0, %s82
      %s97 = sphi 0, %s83
      %s101 = sphi 0, %s101
      %s103 = sphi 0, %s101
      %s104 = sphi 0, %s103
      %s118 = sphi 0, %s104
      %s122 = sphi 0, %s122
      %s124 = sphi 0, %s122
      %s125 = sphi 0, %s124
      %s139 = sphi 0, %s125
      %s143 = sphi 0, %s143
      %s145 = sphi 0, %s143
      %s146 = sphi 0, %s145
      %s160 = sphi 0, %s146
      %s164 = sphi 0, %s164
      %s166 = sphi 0, %s164
      %s167 = sphi 0, %s166
      %s181 = sphi 0, %s167
      %s185 = sphi 0, %s185
      %s187 = sphi 0, %s185
      %s188 = sphi 0, %s187
      %s202 = sphi 0, %s188
      %s206 = sphi 0, %s206
      %s208 = sphi 0, %s206
      %s209 = sphi 0, %s208
      %s223 = sphi 0, %s209
      %s227 = sphi 0, %s227
      %s229 = sphi 0, %s227
      %s230 = sphi 0, %s229
      %s244 = sphi 0, %s230
      %s248 = sphi 0, %s248
      %s250 = sphi 0, %s248
      %s251 = sphi 0, %s250
      %s265 = sphi 0, %s251
      %s269 = sphi 0, %s269
      %s271 = sphi 0, %s269
      %s272 = sphi 0, %s271
      %s286 = sphi 0, %s272
      %s290 = sphi 0, %s290
      %s292 = sphi 0, %s290
      %s293 = sphi 0, %s292
      %s307 = sphi 0, %s293
      %s311 = sphi 0, %s311
      %s313 = sphi 0, %s311
      %s314 = sphi 0, %s313
      %s328 = sphi 0, %s314
      %s332 = sphi 0, %s332
      %s334 = sphi 0, %s332
      %s335 = sphi 0, %s334
      %s349 = sphi 0, %s335
      %s353 = sphi 0, %s353
      %s355 = sphi 0, %s353
      %s356 = sphi 0, %s355
      %s370 = sphi 0, %s356
      %s374 = sphi 0, %s374
      %s376 = sphi 0, %s374
      %s377 = sphi 0, %s376
      %s391 = sphi 0, %s377
      %s395 = sphi 0, %s395
      %s397 = sphi 0, %s395
      %s398 = sphi 0, %s397
      %s412 = sphi 0, %s398
      %s420 = sphi 0, %s422
      %s423 = sphi 0, %s420
      %s424 = sphi 0, %s423
      %s440 = sphi 0, %s424
      %s448 = sphi 0, %s450
      %s451 = sphi 0, %s448
      %s452 = sphi 0, %s451
      %s468 = sphi 0, %s452
    $region4: #{tpu_custom_call.1} parent=1 // loop_header_branch
      %37 = sbr.rel (%p35) target = $region8
    $region5: #{tpu_custom_call.1} parent=1 // loop_body
      %s39 = ssub.s32 %s34, 1
      %s40 = ssub.s32 %s34, 2
      %s47 = sadd.s32 1, %s42
      %p48 = scmp.ge.s32.totalorder %s47, 1
      %s49 = scalar_select %p48, 0, %s47
      %s50 = sadd.s32 1, %s41
      %s51 = scalar_select %p48, %s50, %s41
      %p52 = scmp.ge.s32.totalorder %s51, 2
      %s53 = scalar_select %p52, 0, %s51
      %s54 = ssub.s32 %s41, %s53
      %p55 = scmp.eq.s32.totalorder %s54, 0
      %s57 = sadd.s32 %s56, 1
      %s58 = scalar_select %p55, %s56, %s57
      %p61 = pneg %p55
      %p62 = scmp.eq.s32.totalorder %s34, 1
      %p63 = por %p61, %p62
      %p64 = scmp.ne.s32.totalorder %s56, %s59
      %p65 = scmp.eq.s32.totalorder %s34, 0
      %p66 = por %p64, %p65
      %p67 = scmp.ne.s32.totalorder %s56, %s59
      %p68 = scmp.eq.s32.totalorder %s39, 1
      %p69 = por %p67, %p68
      %p70 = scmp.ne.s32.totalorder %s59, %s60
      %p71 = scmp.eq.s32.totalorder %s39, 0
      %p72 = por %p70, %p71
      %p73 = scmp.ne.s32.totalorder %s59, %s60
      %p74 = scmp.eq.s32.totalorder %s40, 1
      %p75 = por %p73, %p74
      %p77 = scmp.ne.s32.totalorder %s60, %s76
      %p78 = scmp.eq.s32.totalorder %s40, 0
      %p79 = por %p77, %p78
      %s81 = sadd.s32 %s80, 1
      %p84 = scmp.eq.s32.totalorder %s34, 1
      %p85 = scmp.ne.s32.totalorder %s80, %s82
      %p86 = scmp.eq.s32.totalorder %s34, 0
      %p87 = por %p85, %p86
      %p88 = scmp.ne.s32.totalorder %s80, %s82
      %p89 = scmp.eq.s32.totalorder %s39, 1
      %p90 = por %p88, %p89
      %p91 = scmp.ne.s32.totalorder %s82, %s83
      %p92 = scmp.eq.s32.totalorder %s39, 0
      %p93 = por %p91, %p92
      %p94 = scmp.ne.s32.totalorder %s82, %s83
      %p95 = scmp.eq.s32.totalorder %s40, 1
      %p96 = por %p94, %p95
      %p98 = scmp.ne.s32.totalorder %s83, %s97
      %p99 = scmp.eq.s32.totalorder %s40, 0
      %p100 = por %p98, %p99
      %s102 = sadd.s32 %s101, 1
      %p105 = scmp.eq.s32.totalorder %s34, 1
      %p106 = scmp.ne.s32.totalorder %s101, %s103
      %p107 = scmp.eq.s32.totalorder %s34, 0
      %p108 = por %p106, %p107
      %p109 = scmp.ne.s32.totalorder %s101, %s103
      %p110 = scmp.eq.s32.totalorder %s39, 1
      %p111 = por %p109, %p110
      %p112 = scmp.ne.s32.totalorder %s103, %s104
      %p113 = scmp.eq.s32.totalorder %s39, 0
      %p114 = por %p112, %p113
      %p115 = scmp.ne.s32.totalorder %s103, %s104
      %p116 = scmp.eq.s32.totalorder %s40, 1
      %p117 = por %p115, %p116
      %p119 = scmp.ne.s32.totalorder %s104, %s118
      %p120 = scmp.eq.s32.totalorder %s40, 0
      %p121 = por %p119, %p120
      %s123 = sadd.s32 %s122, 1
      %p126 = scmp.eq.s32.totalorder %s34, 1
      %p127 = scmp.ne.s32.totalorder %s122, %s124
      %p128 = scmp.eq.s32.totalorder %s34, 0
      %p129 = por %p127, %p128
      %p130 = scmp.ne.s32.totalorder %s122, %s124
      %p131 = scmp.eq.s32.totalorder %s39, 1
      %p132 = por %p130, %p131
      %p133 = scmp.ne.s32.totalorder %s124, %s125
      %p134 = scmp.eq.s32.totalorder %s39, 0
      %p135 = por %p133, %p134
      %p136 = scmp.ne.s32.totalorder %s124, %s125
      %p137 = scmp.eq.s32.totalorder %s40, 1
      %p138 = por %p136, %p137
      %p140 = scmp.ne.s32.totalorder %s125, %s139
      %p141 = scmp.eq.s32.totalorder %s40, 0
      %p142 = por %p140, %p141
      %s144 = sadd.s32 %s143, 1
      %p147 = scmp.eq.s32.totalorder %s34, 1
      %p148 = scmp.ne.s32.totalorder %s143, %s145
      %p149 = scmp.eq.s32.totalorder %s34, 0
      %p150 = por %p148, %p149
      %p151 = scmp.ne.s32.totalorder %s143, %s145
      %p152 = scmp.eq.s32.totalorder %s39, 1
      %p153 = por %p151, %p152
      %p154 = scmp.ne.s32.totalorder %s145, %s146
      %p155 = scmp.eq.s32.totalorder %s39, 0
      %p156 = por %p154, %p155
      %p157 = scmp.ne.s32.totalorder %s145, %s146
      %p158 = scmp.eq.s32.totalorder %s40, 1
      %p159 = por %p157, %p158
      %p161 = scmp.ne.s32.totalorder %s146, %s160
      %p162 = scmp.eq.s32.totalorder %s40, 0
      %p163 = por %p161, %p162
      %s165 = sadd.s32 %s164, 1
      %p168 = scmp.eq.s32.totalorder %s34, 1
      %p169 = scmp.ne.s32.totalorder %s164, %s166
      %p170 = scmp.eq.s32.totalorder %s34, 0
      %p171 = por %p169, %p170
      %p172 = scmp.ne.s32.totalorder %s164, %s166
      %p173 = scmp.eq.s32.totalorder %s39, 1
      %p174 = por %p172, %p173
      %p175 = scmp.ne.s32.totalorder %s166, %s167
      %p176 = scmp.eq.s32.totalorder %s39, 0
      %p177 = por %p175, %p176
      %p178 = scmp.ne.s32.totalorder %s166, %s167
      %p179 = scmp.eq.s32.totalorder %s40, 1
      %p180 = por %p178, %p179
      %p182 = scmp.ne.s32.totalorder %s167, %s181
      %p183 = scmp.eq.s32.totalorder %s40, 0
      %p184 = por %p182, %p183
      %s186 = sadd.s32 %s185, 1
      %p189 = scmp.eq.s32.totalorder %s34, 1
      %p190 = scmp.ne.s32.totalorder %s185, %s187
      %p191 = scmp.eq.s32.totalorder %s34, 0
      %p192 = por %p190, %p191
      %p193 = scmp.ne.s32.totalorder %s185, %s187
      %p194 = scmp.eq.s32.totalorder %s39, 1
      %p195 = por %p193, %p194
      %p196 = scmp.ne.s32.totalorder %s187, %s188
      %p197 = scmp.eq.s32.totalorder %s39, 0
      %p198 = por %p196, %p197
      %p199 = scmp.ne.s32.totalorder %s187, %s188
      %p200 = scmp.eq.s32.totalorder %s40, 1
      %p201 = por %p199, %p200
      %p203 = scmp.ne.s32.totalorder %s188, %s202
      %p204 = scmp.eq.s32.totalorder %s40, 0
      %p205 = por %p203, %p204
      %s207 = sadd.s32 %s206, 1
      %p210 = scmp.eq.s32.totalorder %s34, 1
      %p211 = scmp.ne.s32.totalorder %s206, %s208
      %p212 = scmp.eq.s32.totalorder %s34, 0
      %p213 = por %p211, %p212
      %p214 = scmp.ne.s32.totalorder %s206, %s208
      %p215 = scmp.eq.s32.totalorder %s39, 1
      %p216 = por %p214, %p215
      %p217 = scmp.ne.s32.totalorder %s208, %s209
      %p218 = scmp.eq.s32.totalorder %s39, 0
      %p219 = por %p217, %p218
      %p220 = scmp.ne.s32.totalorder %s208, %s209
      %p221 = scmp.eq.s32.totalorder %s40, 1
      %p222 = por %p220, %p221
      %p224 = scmp.ne.s32.totalorder %s209, %s223
      %p225 = scmp.eq.s32.totalorder %s40, 0
      %p226 = por %p224, %p225
      %s228 = sadd.s32 %s227, 1
      %p231 = scmp.eq.s32.totalorder %s34, 1
      %p232 = scmp.ne.s32.totalorder %s227, %s229
      %p233 = scmp.eq.s32.totalorder %s34, 0
      %p234 = por %p232, %p233
      %p235 = scmp.ne.s32.totalorder %s227, %s229
      %p236 = scmp.eq.s32.totalorder %s39, 1
      %p237 = por %p235, %p236
      %p238 = scmp.ne.s32.totalorder %s229, %s230
      %p239 = scmp.eq.s32.totalorder %s39, 0
      %p240 = por %p238, %p239
      %p241 = scmp.ne.s32.totalorder %s229, %s230
      %p242 = scmp.eq.s32.totalorder %s40, 1
      %p243 = por %p241, %p242
      %p245 = scmp.ne.s32.totalorder %s230, %s244
      %p246 = scmp.eq.s32.totalorder %s40, 0
      %p247 = por %p245, %p246
      %s249 = sadd.s32 %s248, 1
      %p252 = scmp.eq.s32.totalorder %s34, 1
      %p253 = scmp.ne.s32.totalorder %s248, %s250
      %p254 = scmp.eq.s32.totalorder %s34, 0
      %p255 = por %p253, %p254
      %p256 = scmp.ne.s32.totalorder %s248, %s250
      %p257 = scmp.eq.s32.totalorder %s39, 1
      %p258 = por %p256, %p257
      %p259 = scmp.ne.s32.totalorder %s250, %s251
      %p260 = scmp.eq.s32.totalorder %s39, 0
      %p261 = por %p259, %p260
      %p262 = scmp.ne.s32.totalorder %s250, %s251
      %p263 = scmp.eq.s32.totalorder %s40, 1
      %p264 = por %p262, %p263
      %p266 = scmp.ne.s32.totalorder %s251, %s265
      %p267 = scmp.eq.s32.totalorder %s40, 0
      %p268 = por %p266, %p267
      %s270 = sadd.s32 %s269, 1
      %p273 = scmp.eq.s32.totalorder %s34, 1
      %p274 = scmp.ne.s32.totalorder %s269, %s271
      %p275 = scmp.eq.s32.totalorder %s34, 0
      %p276 = por %p274, %p275
      %p277 = scmp.ne.s32.totalorder %s269, %s271
      %p278 = scmp.eq.s32.totalorder %s39, 1
      %p279 = por %p277, %p278
      %p280 = scmp.ne.s32.totalorder %s271, %s272
      %p281 = scmp.eq.s32.totalorder %s39, 0
      %p282 = por %p280, %p281
      %p283 = scmp.ne.s32.totalorder %s271, %s272
      %p284 = scmp.eq.s32.totalorder %s40, 1
      %p285 = por %p283, %p284
      %p287 = scmp.ne.s32.totalorder %s272, %s286
      %p288 = scmp.eq.s32.totalorder %s40, 0
      %p289 = por %p287, %p288
      %s291 = sadd.s32 %s290, 1
      %p294 = scmp.eq.s32.totalorder %s34, 1
      %p295 = scmp.ne.s32.totalorder %s290, %s292
      %p296 = scmp.eq.s32.totalorder %s34, 0
      %p297 = por %p295, %p296
      %p298 = scmp.ne.s32.totalorder %s290, %s292
      %p299 = scmp.eq.s32.totalorder %s39, 1
      %p300 = por %p298, %p299
      %p301 = scmp.ne.s32.totalorder %s292, %s293
      %p302 = scmp.eq.s32.totalorder %s39, 0
      %p303 = por %p301, %p302
      %p304 = scmp.ne.s32.totalorder %s292, %s293
      %p305 = scmp.eq.s32.totalorder %s40, 1
      %p306 = por %p304, %p305
      %p308 = scmp.ne.s32.totalorder %s293, %s307
      %p309 = scmp.eq.s32.totalorder %s40, 0
      %p310 = por %p308, %p309
      %s312 = sadd.s32 %s311, 1
      %p315 = scmp.eq.s32.totalorder %s34, 1
      %p316 = scmp.ne.s32.totalorder %s311, %s313
      %p317 = scmp.eq.s32.totalorder %s34, 0
      %p318 = por %p316, %p317
      %p319 = scmp.ne.s32.totalorder %s311, %s313
      %p320 = scmp.eq.s32.totalorder %s39, 1
      %p321 = por %p319, %p320
      %p322 = scmp.ne.s32.totalorder %s313, %s314
      %p323 = scmp.eq.s32.totalorder %s39, 0
      %p324 = por %p322, %p323
      %p325 = scmp.ne.s32.totalorder %s313, %s314
      %p326 = scmp.eq.s32.totalorder %s40, 1
      %p327 = por %p325, %p326
      %p329 = scmp.ne.s32.totalorder %s314, %s328
      %p330 = scmp.eq.s32.totalorder %s40, 0
      %p331 = por %p329, %p330
      %s333 = sadd.s32 %s332, 1
      %p336 = scmp.eq.s32.totalorder %s34, 1
      %p337 = scmp.ne.s32.totalorder %s332, %s334
      %p338 = scmp.eq.s32.totalorder %s34, 0
      %p339 = por %p337, %p338
      %p340 = scmp.ne.s32.totalorder %s332, %s334
      %p341 = scmp.eq.s32.totalorder %s39, 1
      %p342 = por %p340, %p341
      %p343 = scmp.ne.s32.totalorder %s334, %s335
      %p344 = scmp.eq.s32.totalorder %s39, 0
      %p345 = por %p343, %p344
      %p346 = scmp.ne.s32.totalorder %s334, %s335
      %p347 = scmp.eq.s32.totalorder %s40, 1
      %p348 = por %p346, %p347
      %p350 = scmp.ne.s32.totalorder %s335, %s349
      %p351 = scmp.eq.s32.totalorder %s40, 0
      %p352 = por %p350, %p351
      %s354 = sadd.s32 %s353, 1
      %p357 = scmp.eq.s32.totalorder %s34, 1
      %p358 = scmp.ne.s32.totalorder %s353, %s355
      %p359 = scmp.eq.s32.totalorder %s34, 0
      %p360 = por %p358, %p359
      %p361 = scmp.ne.s32.totalorder %s353, %s355
      %p362 = scmp.eq.s32.totalorder %s39, 1
      %p363 = por %p361, %p362
      %p364 = scmp.ne.s32.totalorder %s355, %s356
      %p365 = scmp.eq.s32.totalorder %s39, 0
      %p366 = por %p364, %p365
      %p367 = scmp.ne.s32.totalorder %s355, %s356
      %p368 = scmp.eq.s32.totalorder %s40, 1
      %p369 = por %p367, %p368
      %p371 = scmp.ne.s32.totalorder %s356, %s370
      %p372 = scmp.eq.s32.totalorder %s40, 0
      %p373 = por %p371, %p372
      %s375 = sadd.s32 %s374, 1
      %p378 = scmp.eq.s32.totalorder %s34, 1
      %p379 = scmp.ne.s32.totalorder %s374, %s376
      %p380 = scmp.eq.s32.totalorder %s34, 0
      %p381 = por %p379, %p380
      %p382 = scmp.ne.s32.totalorder %s374, %s376
      %p383 = scmp.eq.s32.totalorder %s39, 1
      %p384 = por %p382, %p383
      %p385 = scmp.ne.s32.totalorder %s376, %s377
      %p386 = scmp.eq.s32.totalorder %s39, 0
      %p387 = por %p385, %p386
      %p388 = scmp.ne.s32.totalorder %s376, %s377
      %p389 = scmp.eq.s32.totalorder %s40, 1
      %p390 = por %p388, %p389
      %p392 = scmp.ne.s32.totalorder %s377, %s391
      %p393 = scmp.eq.s32.totalorder %s40, 0
      %p394 = por %p392, %p393
      %s396 = sadd.s32 %s395, 1
      %p399 = scmp.eq.s32.totalorder %s34, 1
      %p400 = scmp.ne.s32.totalorder %s395, %s397
      %p401 = scmp.eq.s32.totalorder %s34, 0
      %p402 = por %p400, %p401
      %p403 = scmp.ne.s32.totalorder %s395, %s397
      %p404 = scmp.eq.s32.totalorder %s39, 1
      %p405 = por %p403, %p404
      %p406 = scmp.ne.s32.totalorder %s397, %s398
      %p407 = scmp.eq.s32.totalorder %s39, 0
      %p408 = por %p406, %p407
      %p409 = scmp.ne.s32.totalorder %s397, %s398
      %p410 = scmp.eq.s32.totalorder %s40, 1
      %p411 = por %p409, %p410
      %p413 = scmp.ne.s32.totalorder %s398, %s412
      %p414 = scmp.eq.s32.totalorder %s40, 0
      %p415 = por %p413, %p414
      %s416 = ssub.s32 %s41, %s53
      %s417 = ssub.s32 %s42, %s49
      %s418 = sor.u32 %s416, %s417
      %p419 = scmp.eq.s32.totalorder %s418, 0
      %s421 = sadd.s32 %s420, 1
      %s422 = scalar_select %p419, %s420, %s421
      %p425 = pneg %p419
      %p426 = scmp.eq.s32.totalorder %s34, 1
      %p427 = por %p425, %p426
      %p428 = scmp.ne.s32.totalorder %s420, %s423
      %p429 = scmp.eq.s32.totalorder %s34, 0
      %p430 = por %p428, %p429
      %p431 = scmp.ne.s32.totalorder %s420, %s423
      %p432 = scmp.eq.s32.totalorder %s39, 1
      %p433 = por %p431, %p432
      %p434 = scmp.ne.s32.totalorder %s423, %s424
      %p435 = scmp.eq.s32.totalorder %s39, 0
      %p436 = por %p434, %p435
      %p437 = scmp.ne.s32.totalorder %s423, %s424
      %p438 = scmp.eq.s32.totalorder %s40, 1
      %p439 = por %p437, %p438
      %p441 = scmp.ne.s32.totalorder %s424, %s440
      %p442 = scmp.eq.s32.totalorder %s40, 0
      %p443 = por %p441, %p442
      %s444 = ssub.s32 %s41, %s53
      %s445 = ssub.s32 %s42, %s49
      %s446 = sor.u32 %s444, %s445
      %p447 = scmp.eq.s32.totalorder %s446, 0
      %s449 = sadd.s32 %s448, 1
      %s450 = scalar_select %p447, %s448, %s449
      %p453 = pneg %p447
      %p454 = scmp.eq.s32.totalorder %s34, 1
      %p455 = por %p453, %p454
      %p456 = scmp.ne.s32.totalorder %s448, %s451
      %p457 = scmp.eq.s32.totalorder %s34, 0
      %p458 = por %p456, %p457
      %p459 = scmp.ne.s32.totalorder %s448, %s451
      %p460 = scmp.eq.s32.totalorder %s39, 1
      %p461 = por %p459, %p460
      %p462 = scmp.ne.s32.totalorder %s451, %s452
      %p463 = scmp.eq.s32.totalorder %s39, 0
      %p464 = por %p462, %p463
      %p465 = scmp.ne.s32.totalorder %s451, %s452
      %p466 = scmp.eq.s32.totalorder %s40, 1
      %p467 = por %p465, %p466
      %p469 = scmp.ne.s32.totalorder %s452, %s468
      %p470 = scmp.eq.s32.totalorder %s40, 0
      %p471 = por %p469, %p470
      %p472 = scmp.le.s32.totalorder 1, %s34
      %p473 = scmp.lt.s32.totalorder %s34, 3
      %p474 = pnand %p472, %p473
      %p475 = pneg %p474
      // Predicated region
      $region9: #{tpu_custom_call.1} parent=5 // pred_check
        _
      $region10: #{tpu_custom_call.1} parent=5 // pred_check_branch
        %477 = sbr.rel (%p474) target = $region12
      $region11: #{tpu_custom_call.1} parent=5 // pred_region
        %s478 = ssub.s32 %s34, 1
        // Predicated region
        $region13: #{tpu_custom_call.1} parent=11 // pred_check
          %p479 = pneg %p93
        $region14: #{tpu_custom_call.1} parent=11 // pred_check_branch
          %481 = sbr.rel (%p479) target = $region16
        $region15: #{tpu_custom_call.1} parent=11 // pred_region
          _
        $region16: #{tpu_custom_call.1} parent=11 // pred_fallthru
          _
        // Predicated region
        $region17: #{tpu_custom_call.1} parent=11 // pred_check
          %p482 = pneg %p114
        $region18: #{tpu_custom_call.1} parent=11 // pred_check_branch
          %484 = sbr.rel (%p482) target = $region20
        $region19: #{tpu_custom_call.1} parent=11 // pred_region
          _
        $region20: #{tpu_custom_call.1} parent=11 // pred_fallthru
          _
        // Predicated region
        $region21: #{tpu_custom_call.1} parent=11 // pred_check
          %p485 = pneg %p135
        $region22: #{tpu_custom_call.1} parent=11 // pred_check_branch
          %487 = sbr.rel (%p485) target = $region24
        $region23: #{tpu_custom_call.1} parent=11 // pred_region
          _
        $region24: #{tpu_custom_call.1} parent=11 // pred_fallthru
          _
        // Predicated region
        $region25: #{tpu_custom_call.1} parent=11 // pred_check
          %p488 = pneg %p156
        $region26: #{tpu_custom_call.1} parent=11 // pred_check_branch
          %490 = sbr.rel (%p488) target = $region28
        $region27: #{tpu_custom_call.1} parent=11 // pred_region
          _
        $region28: #{tpu_custom_call.1} parent=11 // pred_fallthru
          _
        // Predicated region
        $region29: #{tpu_custom_call.1} parent=11 // pred_check
          %p491 = pneg %p177
        $region30: #{tpu_custom_call.1} parent=11 // pred_check_branch
          %493 = sbr.rel (%p491) target = $region32
        $region31: #{tpu_custom_call.1} parent=11 // pred_region
          %s495 = ssub.s32 256, 256
          %496 = vsyncadd [#allocation5], %s495
          %s497 = sshll.u32 [#allocation4], 4
          %s498 = int_to_ptr.vmem [resolvable:$true] %s497
          %503 = dma.hbm_to_vmem [thread:$0]  %s5, 256, %s498, [#allocation5], 64, 64, 4
        $region32: #{tpu_custom_call.1} parent=11 // pred_fallthru
          _
        // Predicated region
        $region33: #{tpu_custom_call.1} parent=11 // pred_check
          %p504 = pneg %p198
        $region34: #{tpu_custom_call.1} parent=11 // pred_check_branch
          %506 = sbr.rel (%p504) target = $region36
        $region35: #{tpu_custom_call.1} parent=11 // pred_region
          %s508 = ssub.s32 16, 16
          %509 = vsyncadd [#allocation8], %s508
          %s511 = sshll.u32 [#allocation7], 4
          %s512 = int_to_ptr.vmem [resolvable:$true] %s511
          %514 = dma.hbm_to_vmem [thread:$0]  %s6, 16, %s512, [#allocation8]
        $region36: #{tpu_custom_call.1} parent=11 // pred_fallthru
          _
        // Predicated region
        $region37: #{tpu_custom_call.1} parent=11 // pred_check
          %p515 = pneg %p219
        $region38: #{tpu_custom_call.1} parent=11 // pred_check_branch
          %517 = sbr.rel (%p515) target = $region40
        $region39: #{tpu_custom_call.1} parent=11 // pred_region
          %s519 = ssub.s32 256, 256
          %520 = vsyncadd [#allocation8], %s519
          %s521 = sshll.u32 [#allocation9], 4
          %s522 = int_to_ptr.vmem [resolvable:$true] %s521
          %527 = dma.hbm_to_vmem [thread:$0]  %s7, 256, %s522, [#allocation8], 64, 64, 4
        $region40: #{tpu_custom_call.1} parent=11 // pred_fallthru
          _
        // Predicated region
        $region41: #{tpu_custom_call.1} parent=11 // pred_check
          %p528 = pneg %p240
        $region42: #{tpu_custom_call.1} parent=11 // pred_check_branch
          %530 = sbr.rel (%p528) target = $region44
        $region43: #{tpu_custom_call.1} parent=11 // pred_region
          %s532 = ssub.s32 16, 16
          %533 = vsyncadd [#allocation11], %s532
          %s535 = sshll.u32 [#allocation10], 4
          %s536 = int_to_ptr.vmem [resolvable:$true] %s535
          %538 = dma.hbm_to_vmem [thread:$0]  %s8, 16, %s536, [#allocation11]
        $region44: #{tpu_custom_call.1} parent=11 // pred_fallthru
          _
        // Predicated region
        $region45: #{tpu_custom_call.1} parent=11 // pred_check
          %p539 = pneg %p261
        $region46: #{tpu_custom_call.1} parent=11 // pred_check_branch
          %541 = sbr.rel (%p539) target = $region48
        $region47: #{tpu_custom_call.1} parent=11 // pred_region
          %s543 = ssub.s32 16, 16
          %544 = vsyncadd [#allocation11], %s543
          %s546 = sshll.u32 [#allocation12], 4
          %s547 = int_to_ptr.vmem [resolvable:$true] %s546
          %549 = dma.hbm_to_vmem [thread:$0]  %s9, 16, %s547, [#allocation11]
        $region48: #{tpu_custom_call.1} parent=11 // pred_fallthru
          _
        // Predicated region
        $region49: #{tpu_custom_call.1} parent=11 // pred_check
          %p550 = pneg %p282
        $region50: #{tpu_custom_call.1} parent=11 // pred_check_branch
          %552 = sbr.rel (%p550) target = $region52
        $region51: #{tpu_custom_call.1} parent=11 // pred_region
          _
        $region52: #{tpu_custom_call.1} parent=11 // pred_fallthru
          _
        // Predicated region
        $region53: #{tpu_custom_call.1} parent=11 // pred_check
          %p553 = pneg %p303
        $region54: #{tpu_custom_call.1} parent=11 // pred_check_branch
          %555 = sbr.rel (%p553) target = $region56
        $region55: #{tpu_custom_call.1} parent=11 // pred_region
          _
        $region56: #{tpu_custom_call.1} parent=11 // pred_fallthru
          _
        // Predicated region
        $region57: #{tpu_custom_call.1} parent=11 // pred_check
          %p556 = pneg %p324
        $region58: #{tpu_custom_call.1} parent=11 // pred_check_branch
          %558 = sbr.rel (%p556) target = $region60
        $region59: #{tpu_custom_call.1} parent=11 // pred_region
          _
        $region60: #{tpu_custom_call.1} parent=11 // pred_fallthru
          _
        // Predicated region
        $region61: #{tpu_custom_call.1} parent=11 // pred_check
          %p559 = pneg %p345
        $region62: #{tpu_custom_call.1} parent=11 // pred_check_branch
          %561 = sbr.rel (%p559) target = $region64
        $region63: #{tpu_custom_call.1} parent=11 // pred_region
          _
        $region64: #{tpu_custom_call.1} parent=11 // pred_fallthru
          _
        // Predicated region
        $region65: #{tpu_custom_call.1} parent=11 // pred_check
          %p562 = pneg %p366
        $region66: #{tpu_custom_call.1} parent=11 // pred_check_branch
          %564 = sbr.rel (%p562) target = $region68
        $region67: #{tpu_custom_call.1} parent=11 // pred_region
          _
        $region68: #{tpu_custom_call.1} parent=11 // pred_fallthru
          _
        // Predicated region
        $region69: #{tpu_custom_call.1} parent=11 // pred_check
          %p565 = pneg %p387
        $region70: #{tpu_custom_call.1} parent=11 // pred_check_branch
          %567 = sbr.rel (%p565) target = $region72
        $region71: #{tpu_custom_call.1} parent=11 // pred_region
          _
        $region72: #{tpu_custom_call.1} parent=11 // pred_fallthru
          _
        // Predicated region
        $region73: #{tpu_custom_call.1} parent=11 // pred_check
          %p568 = pneg %p408
        $region74: #{tpu_custom_call.1} parent=11 // pred_check_branch
          %570 = sbr.rel (%p568) target = $region76
        $region75: #{tpu_custom_call.1} parent=11 // pred_region
          _
        $region76: #{tpu_custom_call.1} parent=11 // pred_fallthru
          _
      $region12: #{tpu_custom_call.1} parent=5 // pred_fallthru
        _
      %p571 = scmp.lt.s32.totalorder %s34, 2
      // Predicated region
      $region77: #{tpu_custom_call.1} parent=5 // pred_check
        %p572 = pneg %p571
      $region78: #{tpu_custom_call.1} parent=5 // pred_check_branch
        %574 = sbr.rel (%p572) target = $region80
      $region79: #{tpu_custom_call.1} parent=5 // pred_region
        // Predicated region
        $region81: #{tpu_custom_call.1} parent=79 // pred_check
          %p575 = pneg %p66
        $region82: #{tpu_custom_call.1} parent=79 // pred_check_branch
          %577 = sbr.rel (%p575) target = $region84
        $region83: #{tpu_custom_call.1} parent=79 // pred_region
          %p578 = scmp.lt.s32.totalorder %s41, 1
          %s579 = scalar_select %p578, %s41, 1
          %s580 = smul.addr %s579, 8
          %s581 = scalar_lea.vmem %s0, %s580
        $region84: #{tpu_custom_call.1} parent=79 // pred_fallthru
          _
      $region80: #{tpu_custom_call.1} parent=5 // pred_fallthru
        _
      %p582 = scmp.le.s32.totalorder 1, %s34
      %p583 = scmp.lt.s32.totalorder %s34, 3
      %p584 = pnand %p582, %p583
      %p585 = pneg %p584
      // Predicated region
      $region85: #{tpu_custom_call.1} parent=5 // pred_check
        _
      $region86: #{tpu_custom_call.1} parent=5 // pred_check_branch
        %587 = sbr.rel (%p584) target = $region88
      $region87: #{tpu_custom_call.1} parent=5 // pred_region
        %s588 = ssub.s32 %s34, 1
        // Predicated region
        $region89: #{tpu_custom_call.1} parent=87 // pred_check
          %p589 = pneg %p177
        $region90: #{tpu_custom_call.1} parent=87 // pred_check_branch
          %591 = sbr.rel (%p589) target = $region92
        $region91: #{tpu_custom_call.1} parent=87 // pred_region
          %592 = dma.done [#allocation5], 256
        $region92: #{tpu_custom_call.1} parent=87 // pred_fallthru
          _
        // Predicated region
        $region93: #{tpu_custom_call.1} parent=87 // pred_check
          %p593 = pneg %p198
        $region94: #{tpu_custom_call.1} parent=87 // pred_check_branch
          %595 = sbr.rel (%p593) target = $region96
        $region95: #{tpu_custom_call.1} parent=87 // pred_region
          %596 = dma.done [#allocation8], 16
        $region96: #{tpu_custom_call.1} parent=87 // pred_fallthru
          _
        // Predicated region
        $region97: #{tpu_custom_call.1} parent=87 // pred_check
          %p597 = pneg %p219
        $region98: #{tpu_custom_call.1} parent=87 // pred_check_branch
          %599 = sbr.rel (%p597) target = $region100
        $region99: #{tpu_custom_call.1} parent=87 // pred_region
          %600 = dma.done [#allocation8], 256
        $region100: #{tpu_custom_call.1} parent=87 // pred_fallthru
          _
        // Predicated region
        $region101: #{tpu_custom_call.1} parent=87 // pred_check
          %p601 = pneg %p240
        $region102: #{tpu_custom_call.1} parent=87 // pred_check_branch
          %603 = sbr.rel (%p601) target = $region104
        $region103: #{tpu_custom_call.1} parent=87 // pred_region
          %604 = dma.done [#allocation11], 16
        $region104: #{tpu_custom_call.1} parent=87 // pred_fallthru
          _
        // Predicated region
        $region105: #{tpu_custom_call.1} parent=87 // pred_check
          %p605 = pneg %p261
        $region106: #{tpu_custom_call.1} parent=87 // pred_check_branch
          %607 = sbr.rel (%p605) target = $region108
        $region107: #{tpu_custom_call.1} parent=87 // pred_region
          %608 = dma.done [#allocation11], 16
        $region108: #{tpu_custom_call.1} parent=87 // pred_fallthru
          _
        %p609 = scmp.lt.s32.totalorder %s43, 1
        %s610 = scalar_select %p609, %s43, 1
        %s611 = smul.addr %s610, 8
        %s612 = scalar_lea.vmem %s0, %s611
        %p613 = pneg %p72
        %p614 = pneg %p69
        %p615 = pneg %p93
        %p616 = pneg %p90
        %p617 = pneg %p114
        %p618 = pneg %p111
        %p619 = pneg %p135
        %p620 = pneg %p132
        %p621 = pneg %p156
        %p622 = pneg %p153
        %p623 = pneg %p177
        %p624 = pneg %p174
        %p625 = pneg %p198
        %p626 = pneg %p195
        %p627 = pneg %p219
        %p628 = pneg %p216
        %p629 = pneg %p240
        %p630 = pneg %p237
        %p631 = pneg %p261
        %p632 = pneg %p258
        %p633 = pneg %p282
        %p634 = pneg %p279
        %p635 = pneg %p303
        %p636 = pneg %p300
        %p637 = pneg %p324
        %p638 = pneg %p321
        %p639 = pneg %p345
        %p640 = pneg %p342
        %p641 = pneg %p366
        %p642 = pneg %p363
        %p643 = pneg %p387
        %p644 = pneg %p384
        %p645 = pneg %p408
        %p646 = pneg %p405
        %p647 = pneg %p436
        %p648 = pneg %p433
        %s649 = sand.u32 %s423, 1
        %s650 = scalar_lea.sflag [#allocation6], %s649
        %s651 = sand.u32 %s423, 1
        %s652 = smul.addr %s651, 8
        %s653 = scalar_lea.vmem [#allocation13], %s652
        %p654 = pneg %p464
        %p655 = pneg %p461
        %s656 = sand.u32 %s451, 1
        %s657 = scalar_lea.sflag [#allocation15], %s656
        %s658 = sand.u32 %s451, 1
        %s659 = smul.addr %s658, 16
        %s660 = scalar_lea.vmem [#allocation14], %s659
        %p661 = scmp.lt.s32.totalorder %s43, 1
        %s662 = scalar_select %p661, %s43, 1
        %s663 = smul.addr %s662, 8
        %s664 = scalar_lea.vmem %s0, %s663
        %p666 = scmp.eq.s32.totalorder %s44, 0
        // Predicated region
        $region109: #{tpu_custom_call.1} parent=87 // pred_check
          %p667 = pneg %p666
        $region110: #{tpu_custom_call.1} parent=87 // pred_check_branch
          %669 = sbr.rel (%p667) target = $region112
        $region111: #{tpu_custom_call.1} parent=87 // pred_region
          %v670 = vld [vmem:[%s664] sm:$0xff]
          %v671 = vpack.c.bf16 %v670, %v670
          %v672 = vld [vmem:[%s3] sm:$0xf]
          %v673 = vld [vmem:[%s3 + $0x4] sm:$0xf]
          %v674 = vld [vmem:[%s3 + $0x8] sm:$0xf]
          %v675 = vld [vmem:[%s3 + $0xc] sm:$0xf]
          %v676 = vld [vmem:[%s4] sm:$0x1]
          %v678 = vlaneseq
          %v679 = vshrl.u32 %v678, 7
          %v680 = vsub.s32 0, %v679
          %v681 = vrot.slane %v676, %v680
          %v687 = vunpack.c.l.b16 %v672
          %v688 = vunpack.c.l.b16 %v673
          %v689 = vunpack.c.l.b16 %v674
          %v690 = vunpack.c.l.b16 %v675
          %v691 = vpack.c.b16 %v688, %v687
          %v692 = vpack.c.b16 %v690, %v689
          %vm695 = vcmask 261120
          %v697 = vsel %vm695, %v671, 0
          %699 = vmatprep.subr.bf16.mxu0 0
          %700 = vmatpush1.bf16.msra.mxu0 %v691
          %701 = vmatprep.subr.bf16.mxu0 0
          %702 = vmatpush1.bf16.msra.mxu0 %v692
          %703 = vmatprep.subr.bf16.mxu0 0
          %704 = vmatpush1.bf16.msra.mxu0 0
          %705 = vmatprep.subr.bf16.mxu0 0
          %706 = vmatpush1.bf16.msra.mxu0 0
          %707 = vmatprep.subr.bf16.mxu0 0
          %708 = vmatpush1.bf16.msra.mxu0 0
          %709 = vmatprep.subr.bf16.mxu0 0
          %710 = vmatpush1.bf16.msra.mxu0 0
          %711 = vmatprep.subr.bf16.mxu0 0
          %712 = vmatpush1.bf16.msra.mxu0 0
          %713 = vmatprep.subr.bf16.mxu0 0
          %714 = vmatpush1.bf16.msra.mxu0 0
          %715 = vmatprep.subr.bf16.mxu0 0
          %716 = vmatpush1.bf16.msra.mxu0 0
          %717 = vmatprep.subr.bf16.mxu0 0
          %718 = vmatpush1.bf16.msra.mxu0 0
          %719 = vmatprep.subr.bf16.mxu0 0
          %720 = vmatpush1.bf16.msra.mxu0 0
          %721 = vmatprep.subr.bf16.mxu0 0
          %722 = vmatpush1.bf16.msra.mxu0 0
          %723 = vmatprep.subr.bf16.mxu0 0
          %724 = vmatpush1.bf16.msra.mxu0 0
          %725 = vmatprep.subr.bf16.mxu0 0
          %726 = vmatpush1.bf16.msra.mxu0 0
          %727 = vmatprep.subr.bf16.mxu0 0
          %728 = vmatpush1.bf16.msra.mxu0 0
          %729 = vmatprep.subr.bf16.mxu0 0
          %730 = vmatpush1.bf16.msra.mxu0 0
          %731 = vmatprep.mubr.bf16.mxu0 0
          %732 = vmatmul.mubr.bf16.gmra.mrb[0].mxu0 %v697
          %v733 = vpop.f32.mrb[0].mxu0
          %v734 = vadd.f32 %v681, %v733
          %v735 = vpop.f32.mrb[0].mxu0
          %v736 = vpop.f32.mrb[0].mxu0
          %v737 = vpop.f32.mrb[0].mxu0
          %738 = vdwg.mxu0
          %v739 = vld [vmem:[#allocation4] sm:$0xf]
          %v740 = vld [vmem:[#allocation4 + $0x4] sm:$0xf]
          %v741 = vld [vmem:[#allocation4 + $0x8] sm:$0xf]
          %v742 = vld [vmem:[#allocation4 + $0xc] sm:$0xf]
          %v743 = vld [vmem:[#allocation7] sm:$0x1]
          %v745 = vlaneseq
          %v746 = vshrl.u32 %v745, 7
          %v747 = vsub.s32 0, %v746
          %v748 = vrot.slane %v743, %v747
          %v754 = vunpack.c.l.b16 %v739
          %v755 = vunpack.c.l.b16 %v740
          %v756 = vunpack.c.l.b16 %v741
          %v757 = vunpack.c.l.b16 %v742
          %v758 = vpack.c.b16 %v755, %v754
          %v759 = vpack.c.b16 %v757, %v756
          %762 = vmatprep.subr.bf16.mxu0 0
          %763 = vmatpush1.bf16.msra.mxu0 %v758
          %764 = vmatprep.subr.bf16.mxu0 0
          %765 = vmatpush1.bf16.msra.mxu0 %v759
          %766 = vmatprep.subr.bf16.mxu0 0
          %767 = vmatpush1.bf16.msra.mxu0 0
          %768 = vmatprep.subr.bf16.mxu0 0
          %769 = vmatpush1.bf16.msra.mxu0 0
          %770 = vmatprep.subr.bf16.mxu0 0
          %771 = vmatpush1.bf16.msra.mxu0 0
          %772 = vmatprep.subr.bf16.mxu0 0
          %773 = vmatpush1.bf16.msra.mxu0 0
          %774 = vmatprep.subr.bf16.mxu0 0
          %775 = vmatpush1.bf16.msra.mxu0 0
          %776 = vmatprep.subr.bf16.mxu0 0
          %777 = vmatpush1.bf16.msra.mxu0 0
          %778 = vmatprep.subr.bf16.mxu0 0
          %779 = vmatpush1.bf16.msra.mxu0 0
          %780 = vmatprep.subr.bf16.mxu0 0
          %781 = vmatpush1.bf16.msra.mxu0 0
          %782 = vmatprep.subr.bf16.mxu0 0
          %783 = vmatpush1.bf16.msra.mxu0 0
          %784 = vmatprep.subr.bf16.mxu0 0
          %785 = vmatpush1.bf16.msra.mxu0 0
          %786 = vmatprep.subr.bf16.mxu0 0
          %787 = vmatpush1.bf16.msra.mxu0 0
          %788 = vmatprep.subr.bf16.mxu0 0
          %789 = vmatpush1.bf16.msra.mxu0 0
          %790 = vmatprep.subr.bf16.mxu0 0
          %791 = vmatpush1.bf16.msra.mxu0 0
          %792 = vmatprep.subr.bf16.mxu0 0
          %793 = vmatpush1.bf16.msra.mxu0 0
          %794 = vmatprep.mubr.bf16.mxu0 0
          %795 = vmatmul.mubr.bf16.gmra.mrb[0].mxu0 %v697
          %v796 = vpop.f32.mrb[0].mxu0
          %v797 = vadd.f32 %v748, %v796
          %v798 = vpop.f32.mrb[0].mxu0
          %v799 = vpop.f32.mrb[0].mxu0
          %v800 = vpop.f32.mrb[0].mxu0
          %801 = vdwg.mxu0
          %v802 = vpack.c.bf16 %v734, %v734
          %804 = vrot.lane.b32.xlu0 %v802, 120
          %v805 = vpop.permute.xlu0 %804
          %806 = vrot.lane.b32.xlu0 %v802, 112
          %v807 = vpop.permute.xlu0 %806
          %808 = vrot.lane.b32.xlu0 %v802, 104
          %v809 = vpop.permute.xlu0 %808
          %v811 = vunpack.c.l.s4 1983009808
          %v812 = vunpack.c.0.s8 %v811
          %v813 = vlaneseq
          %v814 = vshrl.u32 %v813, 7
          %v815 = vsub.s32 %v812, %v814
          %v816 = vrot.slane %v802, %v815
          %v819 = vunpack.c.l.s4 1983009808
          %v820 = vunpack.c.0.s8 %v819
          %v821 = vlaneseq
          %v822 = vshrl.u32 %v821, 7
          %v823 = vsub.s32 %v820, %v822
          %v824 = vrot.slane %v807, %v823
          %v825 = vcombine.low %v816, %v824
          %v826 = vcombine.high %v816, %v824
          %v828 = vunpack.c.l.s4 1934713408
          %v829 = vunpack.c.0.s8 %v828
          %v830 = vlaneseq
          %v831 = vshrl.u32 %v830, 7
          %v832 = vsub.s32 %v829, %v831
          %v833 = vrot.slane %v825, %v832
          %v835 = vunpack.c.l.s4 1934713408
          %v836 = vunpack.c.0.s8 %v835
          %v837 = vlaneseq
          %v838 = vshrl.u32 %v837, 7
          %v839 = vsub.s32 %v836, %v838
          %v840 = vrot.slane %v826, %v839
          %v841 = vcombine.high %v833, 0
          %v842 = vcombine.high %v840, 0
          %v845 = vunpack.c.l.s4 1983009808
          %v846 = vunpack.c.0.s8 %v845
          %v847 = vlaneseq
          %v848 = vshrl.u32 %v847, 7
          %v849 = vsub.s32 %v846, %v848
          %v850 = vrot.slane %v805, %v849
          %v853 = vunpack.c.l.s4 1983009808
          %v854 = vunpack.c.0.s8 %v853
          %v855 = vlaneseq
          %v856 = vshrl.u32 %v855, 7
          %v857 = vsub.s32 %v854, %v856
          %v858 = vrot.slane %v809, %v857
          %v859 = vcombine.low %v850, %v858
          %v860 = vcombine.high %v850, %v858
          %v862 = vunpack.c.l.s4 1934713408
          %v863 = vunpack.c.0.s8 %v862
          %v864 = vlaneseq
          %v865 = vshrl.u32 %v864, 7
          %v866 = vsub.s32 %v863, %v865
          %v867 = vrot.slane %v859, %v866
          %v869 = vunpack.c.l.s4 1934713408
          %v870 = vunpack.c.0.s8 %v869
          %v871 = vlaneseq
          %v872 = vshrl.u32 %v871, 7
          %v873 = vsub.s32 %v870, %v872
          %v874 = vrot.slane %v860, %v873
          %v875 = vcombine.high %v867, 0
          %v876 = vcombine.high %v874, 0
          %v879 = vpack.i.b16 %v867, %v833
          %v881 = vshrl.u32 %v833, 16
          %v882 = vshrl.u32 %v867, 16
          %v883 = vpack.i.b16 %v882, %v881
          %v887 = vpack.i.b16 %v875, %v841
          %v889 = vshrl.u32 %v841, 16
          %v890 = vshrl.u32 %v875, 16
          %v891 = vpack.i.b16 %v890, %v889
          %v895 = vpack.i.b16 %v874, %v840
          %v897 = vshrl.u32 %v840, 16
          %v898 = vshrl.u32 %v874, 16
          %v899 = vpack.i.b16 %v898, %v897
          %v903 = vpack.i.b16 %v876, %v842
          %v905 = vshrl.u32 %v842, 16
          %v906 = vshrl.u32 %v876, 16
          %v907 = vpack.i.b16 %v906, %v905
          %v909 = vcombine.low %v879, %v895
          %v911 = vunpack.c.l.s4 1983009808
          %v912 = vunpack.c.0.s8 %v911
          %v913 = vlaneseq
          %v914 = vshrl.u32 %v913, 7
          %v915 = vsub.s32 %v912, %v914
          %v916 = vrot.slane %v909, %v915
          %v917 = vcombine.low %v887, %v903
          %v919 = vunpack.c.l.s4 1983009808
          %v920 = vunpack.c.0.s8 %v919
          %v921 = vlaneseq
          %v922 = vshrl.u32 %v921, 7
          %v923 = vsub.s32 %v920, %v922
          %v924 = vrot.slane %v917, %v923
          %v925 = vcombine.low %v916, %v924
          %v927 = vunpack.c.l.s4 1934713408
          %v928 = vunpack.c.0.s8 %v927
          %v929 = vlaneseq
          %v930 = vshrl.u32 %v929, 7
          %v931 = vsub.s32 %v928, %v930
          %v932 = vrot.slane %v925, %v931
          %v933 = vcombine.high %v932, 0
          %v934 = vcombine.low %v883, %v899
          %v936 = vunpack.c.l.s4 1983009808
          %v937 = vunpack.c.0.s8 %v936
          %v938 = vlaneseq
          %v939 = vshrl.u32 %v938, 7
          %v940 = vsub.s32 %v937, %v939
          %v941 = vrot.slane %v934, %v940
          %v942 = vcombine.low %v891, %v907
          %v944 = vunpack.c.l.s4 1983009808
          %v945 = vunpack.c.0.s8 %v944
          %v946 = vlaneseq
          %v947 = vshrl.u32 %v946, 7
          %v948 = vsub.s32 %v945, %v947
          %v949 = vrot.slane %v942, %v948
          %v950 = vcombine.low %v941, %v949
          %v952 = vunpack.c.l.s4 1934713408
          %v953 = vunpack.c.0.s8 %v952
          %v954 = vlaneseq
          %v955 = vshrl.u32 %v954, 7
          %v956 = vsub.s32 %v953, %v955
          %v957 = vrot.slane %v950, %v956
          %v958 = vcombine.high %v957, 0
          %v961 = vpack.i.b16 %v957, %v932
          %v963 = vshrl.u32 %v932, 16
          %v964 = vshrl.u32 %v957, 16
          %v965 = vpack.i.b16 %v964, %v963
          %v969 = vpack.i.b16 %v958, %v933
          %v971 = vshrl.u32 %v933, 16
          %v972 = vshrl.u32 %v958, 16
          %v973 = vpack.i.b16 %v972, %v971
          %vm975 = vcmask 60416
          %976 = vst.msk [vmem:[#allocation2] sm:$0xf] %vm975, %v961
          %977 = vst.msk [vmem:[#allocation2 + $0x4] sm:$0xf] %vm975, %v965
          %978 = vst.msk [vmem:[#allocation2 + $0x8] sm:$0xf] %vm975, %v969
          %979 = vst.msk [vmem:[#allocation2 + $0xc] sm:$0xf] %vm975, %v973
          %v980 = vpack.c.bf16 %v797, %v797
          %982 = vrot.lane.b32.xlu0 %v980, 120
          %v983 = vpop.permute.xlu0 %982
          %984 = vrot.lane.b32.xlu0 %v980, 112
          %v985 = vpop.permute.xlu0 %984
          %986 = vrot.lane.b32.xlu0 %v980, 104
          %v987 = vpop.permute.xlu0 %986
          %v989 = vunpack.c.l.s4 1983009808
          %v990 = vunpack.c.0.s8 %v989
          %v991 = vlaneseq
          %v992 = vshrl.u32 %v991, 7
          %v993 = vsub.s32 %v990, %v992
          %v994 = vrot.slane %v980, %v993
          %v997 = vunpack.c.l.s4 1983009808
          %v998 = vunpack.c.0.s8 %v997
          %v999 = vlaneseq
          %v1000 = vshrl.u32 %v999, 7
          %v1001 = vsub.s32 %v998, %v1000
          %v1002 = vrot.slane %v985, %v1001
          %v1003 = vcombine.low %v994, %v1002
          %v1004 = vcombine.high %v994, %v1002
          %v1006 = vunpack.c.l.s4 1934713408
          %v1007 = vunpack.c.0.s8 %v1006
          %v1008 = vlaneseq
          %v1009 = vshrl.u32 %v1008, 7
          %v1010 = vsub.s32 %v1007, %v1009
          %v1011 = vrot.slane %v1003, %v1010
          %v1013 = vunpack.c.l.s4 1934713408
          %v1014 = vunpack.c.0.s8 %v1013
          %v1015 = vlaneseq
          %v1016 = vshrl.u32 %v1015, 7
          %v1017 = vsub.s32 %v1014, %v1016
          %v1018 = vrot.slane %v1004, %v1017
          %v1019 = vcombine.high %v1011, 0
          %v1020 = vcombine.high %v1018, 0
          %v1023 = vunpack.c.l.s4 1983009808
          %v1024 = vunpack.c.0.s8 %v1023
          %v1025 = vlaneseq
          %v1026 = vshrl.u32 %v1025, 7
          %v1027 = vsub.s32 %v1024, %v1026
          %v1028 = vrot.slane %v983, %v1027
          %v1031 = vunpack.c.l.s4 1983009808
          %v1032 = vunpack.c.0.s8 %v1031
          %v1033 = vlaneseq
          %v1034 = vshrl.u32 %v1033, 7
          %v1035 = vsub.s32 %v1032, %v1034
          %v1036 = vrot.slane %v987, %v1035
          %v1037 = vcombine.low %v1028, %v1036
          %v1038 = vcombine.high %v1028, %v1036
          %v1040 = vunpack.c.l.s4 1934713408
          %v1041 = vunpack.c.0.s8 %v1040
          %v1042 = vlaneseq
          %v1043 = vshrl.u32 %v1042, 7
          %v1044 = vsub.s32 %v1041, %v1043
          %v1045 = vrot.slane %v1037, %v1044
          %v1047 = vunpack.c.l.s4 1934713408
          %v1048 = vunpack.c.0.s8 %v1047
          %v1049 = vlaneseq
          %v1050 = vshrl.u32 %v1049, 7
          %v1051 = vsub.s32 %v1048, %v1050
          %v1052 = vrot.slane %v1038, %v1051
          %v1053 = vcombine.high %v1045, 0
          %v1054 = vcombine.high %v1052, 0
          %v1057 = vpack.i.b16 %v1045, %v1011
          %v1059 = vshrl.u32 %v1011, 16
          %v1060 = vshrl.u32 %v1045, 16
          %v1061 = vpack.i.b16 %v1060, %v1059
          %v1065 = vpack.i.b16 %v1053, %v1019
          %v1067 = vshrl.u32 %v1019, 16
          %v1068 = vshrl.u32 %v1053, 16
          %v1069 = vpack.i.b16 %v1068, %v1067
          %v1073 = vpack.i.b16 %v1052, %v1018
          %v1075 = vshrl.u32 %v1018, 16
          %v1076 = vshrl.u32 %v1052, 16
          %v1077 = vpack.i.b16 %v1076, %v1075
          %v1081 = vpack.i.b16 %v1054, %v1020
          %v1083 = vshrl.u32 %v1020, 16
          %v1084 = vshrl.u32 %v1054, 16
          %v1085 = vpack.i.b16 %v1084, %v1083
          %v1087 = vcombine.low %v1057, %v1073
          %v1089 = vunpack.c.l.s4 1983009808
          %v1090 = vunpack.c.0.s8 %v1089
          %v1091 = vlaneseq
          %v1092 = vshrl.u32 %v1091, 7
          %v1093 = vsub.s32 %v1090, %v1092
          %v1094 = vrot.slane %v1087, %v1093
          %v1095 = vcombine.low %v1065, %v1081
          %v1097 = vunpack.c.l.s4 1983009808
          %v1098 = vunpack.c.0.s8 %v1097
          %v1099 = vlaneseq
          %v1100 = vshrl.u32 %v1099, 7
          %v1101 = vsub.s32 %v1098, %v1100
          %v1102 = vrot.slane %v1095, %v1101
          %v1103 = vcombine.low %v1094, %v1102
          %v1105 = vunpack.c.l.s4 1934713408
          %v1106 = vunpack.c.0.s8 %v1105
          %v1107 = vlaneseq
          %v1108 = vshrl.u32 %v1107, 7
          %v1109 = vsub.s32 %v1106, %v1108
          %v1110 = vrot.slane %v1103, %v1109
          %v1111 = vcombine.high %v1110, 0
          %v1112 = vcombine.low %v1061, %v1077
          %v1114 = vunpack.c.l.s4 1983009808
          %v1115 = vunpack.c.0.s8 %v1114
          %v1116 = vlaneseq
          %v1117 = vshrl.u32 %v1116, 7
          %v1118 = vsub.s32 %v1115, %v1117
          %v1119 = vrot.slane %v1112, %v1118
          %v1120 = vcombine.low %v1069, %v1085
          %v1122 = vunpack.c.l.s4 1983009808
          %v1123 = vunpack.c.0.s8 %v1122
          %v1124 = vlaneseq
          %v1125 = vshrl.u32 %v1124, 7
          %v1126 = vsub.s32 %v1123, %v1125
          %v1127 = vrot.slane %v1120, %v1126
          %v1128 = vcombine.low %v1119, %v1127
          %v1130 = vunpack.c.l.s4 1934713408
          %v1131 = vunpack.c.0.s8 %v1130
          %v1132 = vlaneseq
          %v1133 = vshrl.u32 %v1132, 7
          %v1134 = vsub.s32 %v1131, %v1133
          %v1135 = vrot.slane %v1128, %v1134
          %v1136 = vcombine.high %v1135, 0
          %v1139 = vpack.i.b16 %v1135, %v1110
          %v1141 = vshrl.u32 %v1110, 16
          %v1142 = vshrl.u32 %v1135, 16
          %v1143 = vpack.i.b16 %v1142, %v1141
          %v1147 = vpack.i.b16 %v1136, %v1111
          %v1149 = vshrl.u32 %v1111, 16
          %v1150 = vshrl.u32 %v1136, 16
          %v1151 = vpack.i.b16 %v1150, %v1149
          %1153 = vst.msk [vmem:[#allocation3] sm:$0xf] %vm975, %v1139
          %1154 = vst.msk [vmem:[#allocation3 + $0x4] sm:$0xf] %vm975, %v1143
          %1155 = vst.msk [vmem:[#allocation3 + $0x8] sm:$0xf] %vm975, %v1147
          %1156 = vst.msk [vmem:[#allocation3 + $0xc] sm:$0xf] %vm975, %v1151
        $region112: #{tpu_custom_call.1} parent=87 // pred_fallthru
          _
        %s1157 = smul.u32 %s44, 8
        %s1158 = scalar_lea.vmem %s664, %s1157
        %v1159 = vld [vmem:[%s1158] sm:$0xff]
        %v1160 = vpack.c.bf16 %v1159, %v1159
        %v1161 = vld [vmem:[%s1] sm:$0xf]
        %v1162 = vld [vmem:[%s1 + $0x4] sm:$0xf]
        %v1163 = vld [vmem:[%s1 + $0x8] sm:$0xf]
        %v1164 = vld [vmem:[%s1 + $0xc] sm:$0xf]
        %v1165 = vld [vmem:[%s2] sm:$0x1]
        %v1167 = vlaneseq
        %v1168 = vshrl.u32 %v1167, 7
        %v1169 = vsub.s32 0, %v1168
        %v1170 = vrot.slane %v1165, %v1169
        %v1176 = vunpack.c.l.b16 %v1161
        %v1177 = vunpack.c.l.b16 %v1162
        %v1178 = vunpack.c.l.b16 %v1163
        %v1179 = vunpack.c.l.b16 %v1164
        %v1180 = vpack.c.b16 %v1177, %v1176
        %v1181 = vpack.c.b16 %v1179, %v1178
        %vm1184 = vcmask 261120
        %v1186 = vsel %vm1184, %v1160, 0
        %1188 = vmatprep.subr.bf16.mxu0 0
        %1189 = vmatpush1.bf16.msra.mxu0 %v1180
        %1190 = vmatprep.subr.bf16.mxu0 0
        %1191 = vmatpush1.bf16.msra.mxu0 %v1181
        %1192 = vmatprep.subr.bf16.mxu0 0
        %1193 = vmatpush1.bf16.msra.mxu0 0
        %1194 = vmatprep.subr.bf16.mxu0 0
        %1195 = vmatpush1.bf16.msra.mxu0 0
        %1196 = vmatprep.subr.bf16.mxu0 0
        %1197 = vmatpush1.bf16.msra.mxu0 0
        %1198 = vmatprep.subr.bf16.mxu0 0
        %1199 = vmatpush1.bf16.msra.mxu0 0
        %1200 = vmatprep.subr.bf16.mxu0 0
        %1201 = vmatpush1.bf16.msra.mxu0 0
        %1202 = vmatprep.subr.bf16.mxu0 0
        %1203 = vmatpush1.bf16.msra.mxu0 0
        %1204 = vmatprep.subr.bf16.mxu0 0
        %1205 = vmatpush1.bf16.msra.mxu0 0
        %1206 = vmatprep.subr.bf16.mxu0 0
        %1207 = vmatpush1.bf16.msra.mxu0 0
        %1208 = vmatprep.subr.bf16.mxu0 0
        %1209 = vmatpush1.bf16.msra.mxu0 0
        %1210 = vmatprep.subr.bf16.mxu0 0
        %1211 = vmatpush1.bf16.msra.mxu0 0
        %1212 = vmatprep.subr.bf16.mxu0 0
        %1213 = vmatpush1.bf16.msra.mxu0 0
        %1214 = vmatprep.subr.bf16.mxu0 0
        %1215 = vmatpush1.bf16.msra.mxu0 0
        %1216 = vmatprep.subr.bf16.mxu0 0
        %1217 = vmatpush1.bf16.msra.mxu0 0
        %1218 = vmatprep.subr.bf16.mxu0 0
        %1219 = vmatpush1.bf16.msra.mxu0 0
        %1220 = vmatprep.mubr.bf16.mxu0 0
        %1221 = vmatmul.mubr.bf16.gmra.mrb[0].mxu0 %v1186
        %v1222 = vpop.f32.mrb[0].mxu0
        %v1223 = vadd.f32 %v1170, %v1222
        %v1224 = vpop.f32.mrb[0].mxu0
        %v1225 = vpop.f32.mrb[0].mxu0
        %v1226 = vpop.f32.mrb[0].mxu0
        %1227 = vdwg.mxu0
        %v1228 = vpack.c.bf16 %v1223, %v1223
        %1230 = vrot.lane.b32.xlu0 %v1228, 120
        %v1231 = vpop.permute.xlu0 %1230
        %1232 = vrot.lane.b32.xlu0 %v1228, 112
        %v1233 = vpop.permute.xlu0 %1232
        %1234 = vrot.lane.b32.xlu0 %v1228, 104
        %v1235 = vpop.permute.xlu0 %1234
        %v1237 = vunpack.c.l.s4 1983009808
        %v1238 = vunpack.c.0.s8 %v1237
        %v1239 = vlaneseq
        %v1240 = vshrl.u32 %v1239, 7
        %v1241 = vsub.s32 %v1238, %v1240
        %v1242 = vrot.slane %v1228, %v1241
        %v1245 = vunpack.c.l.s4 1983009808
        %v1246 = vunpack.c.0.s8 %v1245
        %v1247 = vlaneseq
        %v1248 = vshrl.u32 %v1247, 7
        %v1249 = vsub.s32 %v1246, %v1248
        %v1250 = vrot.slane %v1233, %v1249
        %v1251 = vcombine.low %v1242, %v1250
        %v1252 = vcombine.high %v1242, %v1250
        %v1254 = vunpack.c.l.s4 1934713408
        %v1255 = vunpack.c.0.s8 %v1254
        %v1256 = vlaneseq
        %v1257 = vshrl.u32 %v1256, 7
        %v1258 = vsub.s32 %v1255, %v1257
        %v1259 = vrot.slane %v1251, %v1258
        %v1261 = vunpack.c.l.s4 1934713408
        %v1262 = vunpack.c.0.s8 %v1261
        %v1263 = vlaneseq
        %v1264 = vshrl.u32 %v1263, 7
        %v1265 = vsub.s32 %v1262, %v1264
        %v1266 = vrot.slane %v1252, %v1265
        %v1267 = vcombine.high %v1259, 0
        %v1268 = vcombine.high %v1266, 0
        %v1271 = vunpack.c.l.s4 1983009808
        %v1272 = vunpack.c.0.s8 %v1271
        %v1273 = vlaneseq
        %v1274 = vshrl.u32 %v1273, 7
        %v1275 = vsub.s32 %v1272, %v1274
        %v1276 = vrot.slane %v1231, %v1275
        %v1279 = vunpack.c.l.s4 1983009808
        %v1280 = vunpack.c.0.s8 %v1279
        %v1281 = vlaneseq
        %v1282 = vshrl.u32 %v1281, 7
        %v1283 = vsub.s32 %v1280, %v1282
        %v1284 = vrot.slane %v1235, %v1283
        %v1285 = vcombine.low %v1276, %v1284
        %v1286 = vcombine.high %v1276, %v1284
        %v1288 = vunpack.c.l.s4 1934713408
        %v1289 = vunpack.c.0.s8 %v1288
        %v1290 = vlaneseq
        %v1291 = vshrl.u32 %v1290, 7
        %v1292 = vsub.s32 %v1289, %v1291
        %v1293 = vrot.slane %v1285, %v1292
        %v1295 = vunpack.c.l.s4 1934713408
        %v1296 = vunpack.c.0.s8 %v1295
        %v1297 = vlaneseq
        %v1298 = vshrl.u32 %v1297, 7
        %v1299 = vsub.s32 %v1296, %v1298
        %v1300 = vrot.slane %v1286, %v1299
        %v1301 = vcombine.high %v1293, 0
        %v1302 = vcombine.high %v1300, 0
        %v1305 = vpack.i.b16 %v1293, %v1259
        %v1307 = vshrl.u32 %v1259, 16
        %v1308 = vshrl.u32 %v1293, 16
        %v1309 = vpack.i.b16 %v1308, %v1307
        %v1313 = vpack.i.b16 %v1301, %v1267
        %v1315 = vshrl.u32 %v1267, 16
        %v1316 = vshrl.u32 %v1301, 16
        %v1317 = vpack.i.b16 %v1316, %v1315
        %v1321 = vpack.i.b16 %v1300, %v1266
        %v1323 = vshrl.u32 %v1266, 16
        %v1324 = vshrl.u32 %v1300, 16
        %v1325 = vpack.i.b16 %v1324, %v1323
        %v1329 = vpack.i.b16 %v1302, %v1268
        %v1331 = vshrl.u32 %v1268, 16
        %v1332 = vshrl.u32 %v1302, 16
        %v1333 = vpack.i.b16 %v1332, %v1331
        %v1335 = vcombine.low %v1305, %v1321
        %v1337 = vunpack.c.l.s4 1983009808
        %v1338 = vunpack.c.0.s8 %v1337
        %v1339 = vlaneseq
        %v1340 = vshrl.u32 %v1339, 7
        %v1341 = vsub.s32 %v1338, %v1340
        %v1342 = vrot.slane %v1335, %v1341
        %v1343 = vcombine.low %v1313, %v1329
        %v1345 = vunpack.c.l.s4 1983009808
        %v1346 = vunpack.c.0.s8 %v1345
        %v1347 = vlaneseq
        %v1348 = vshrl.u32 %v1347, 7
        %v1349 = vsub.s32 %v1346, %v1348
        %v1350 = vrot.slane %v1343, %v1349
        %v1351 = vcombine.low %v1342, %v1350
        %v1353 = vunpack.c.l.s4 1934713408
        %v1354 = vunpack.c.0.s8 %v1353
        %v1355 = vlaneseq
        %v1356 = vshrl.u32 %v1355, 7
        %v1357 = vsub.s32 %v1354, %v1356
        %v1358 = vrot.slane %v1351, %v1357
        %v1359 = vcombine.high %v1358, 0
        %v1360 = vcombine.low %v1309, %v1325
        %v1362 = vunpack.c.l.s4 1983009808
        %v1363 = vunpack.c.0.s8 %v1362
        %v1364 = vlaneseq
        %v1365 = vshrl.u32 %v1364, 7
        %v1366 = vsub.s32 %v1363, %v1365
        %v1367 = vrot.slane %v1360, %v1366
        %v1368 = vcombine.low %v1317, %v1333
        %v1370 = vunpack.c.l.s4 1983009808
        %v1371 = vunpack.c.0.s8 %v1370
        %v1372 = vlaneseq
        %v1373 = vshrl.u32 %v1372, 7
        %v1374 = vsub.s32 %v1371, %v1373
        %v1375 = vrot.slane %v1368, %v1374
        %v1376 = vcombine.low %v1367, %v1375
        %v1378 = vunpack.c.l.s4 1934713408
        %v1379 = vunpack.c.0.s8 %v1378
        %v1380 = vlaneseq
        %v1381 = vshrl.u32 %v1380, 7
        %v1382 = vsub.s32 %v1379, %v1381
        %v1383 = vrot.slane %v1376, %v1382
        %v1384 = vcombine.high %v1383, 0
        %v1387 = vpack.i.b16 %v1383, %v1358
        %v1388 = vshrl.u32 %v1358, 16
        %v1389 = vshrl.u32 %v1383, 16
        %v1390 = vpack.i.b16 %v1389, %v1388
        %v1393 = vpack.i.b16 %v1384, %v1359
        %v1394 = vshrl.u32 %v1359, 16
        %v1395 = vshrl.u32 %v1384, 16
        %v1396 = vpack.i.b16 %v1395, %v1394
        %v1397 = vld [vmem:[#allocation2] sm:$0xf]
        %v1398 = vld [vmem:[#allocation2 + $0x4] sm:$0xf]
        %v1399 = vld [vmem:[#allocation2 + $0x8] sm:$0xf]
        %v1400 = vld [vmem:[#allocation2 + $0xc] sm:$0xf]
        %vm1401 = vcmask 64512
        %v1403 = vsel %vm1401, %v1387, 0
        %v1406 = vsel %vm1401, %v1397, 0
        %1408 = vmatprep.subr.bf16.mxu0 0
        %1409 = vmatpush1.bf16.xpose.msra.mxu0 %v1406
        %1410 = vmatprep.subr.bf16.mxu0 0
        %1411 = vmatpush1.bf16.xpose.msra.mxu0 0
        %1412 = vmatprep.subr.bf16.mxu0 0
        %1413 = vmatpush1.bf16.xpose.msra.mxu0 0
        %1414 = vmatprep.subr.bf16.mxu0 0
        %1415 = vmatpush1.bf16.xpose.msra.mxu0 0
        %1416 = vmatprep.subr.bf16.mxu0 0
        %1417 = vmatpush1.bf16.xpose.msra.mxu0 0
        %1418 = vmatprep.subr.bf16.mxu0 0
        %1419 = vmatpush1.bf16.xpose.msra.mxu0 0
        %1420 = vmatprep.subr.bf16.mxu0 0
        %1421 = vmatpush1.bf16.xpose.msra.mxu0 0
        %1422 = vmatprep.subr.bf16.mxu0 0
        %1423 = vmatpush1.bf16.xpose.msra.mxu0 0
        %1424 = vmatprep.subr.bf16.mxu0 0
        %1425 = vmatpush1.bf16.xpose.msra.mxu0 0
        %1426 = vmatprep.subr.bf16.mxu0 0
        %1427 = vmatpush1.bf16.xpose.msra.mxu0 0
        %1428 = vmatprep.subr.bf16.mxu0 0
        %1429 = vmatpush1.bf16.xpose.msra.mxu0 0
        %1430 = vmatprep.subr.bf16.mxu0 0
        %1431 = vmatpush1.bf16.xpose.msra.mxu0 0
        %1432 = vmatprep.subr.bf16.mxu0 0
        %1433 = vmatpush1.bf16.xpose.msra.mxu0 0
        %1434 = vmatprep.subr.bf16.mxu0 0
        %1435 = vmatpush1.bf16.xpose.msra.mxu0 0
        %1436 = vmatprep.subr.bf16.mxu0 0
        %1437 = vmatpush1.bf16.xpose.msra.mxu0 0
        %1438 = vmatprep.subr.bf16.mxu0 0
        %1439 = vmatpush1.bf16.xpose.msra.mxu0 0
        %1440 = vmatprep.mubr.bf16.mxu0 0
        %1441 = vmatmul.mubr.bf16.gmra.mrb[0].mxu0 %v1403
        %v1442 = vpop.f32.mrb[0].mxu0
        %v1443 = vadd.f32 0.0, %v1442
        %v1444 = vpop.f32.mrb[0].mxu0
        %v1445 = vpop.f32.mrb[0].mxu0
        %v1446 = vpop.f32.mrb[0].mxu0
        %1447 = vdwg.mxu0
        %v1449 = vsel %vm1401, %v1390, 0
        %v1452 = vsel %vm1401, %v1398, 0
        %1454 = vmatprep.subr.bf16.mxu0 0
        %1455 = vmatpush1.bf16.xpose.msra.mxu0 %v1452
        %1456 = vmatprep.subr.bf16.mxu0 0
        %1457 = vmatpush1.bf16.xpose.msra.mxu0 0
        %1458 = vmatprep.subr.bf16.mxu0 0
        %1459 = vmatpush1.bf16.xpose.msra.mxu0 0
        %1460 = vmatprep.subr.bf16.mxu0 0
        %1461 = vmatpush1.bf16.xpose.msra.mxu0 0
        %1462 = vmatprep.subr.bf16.mxu0 0
        %1463 = vmatpush1.bf16.xpose.msra.mxu0 0
        %1464 = vmatprep.subr.bf16.mxu0 0
        %1465 = vmatpush1.bf16.xpose.msra.mxu0 0
        %1466 = vmatprep.subr.bf16.mxu0 0
        %1467 = vmatpush1.bf16.xpose.msra.mxu0 0
        %1468 = vmatprep.subr.bf16.mxu0 0
        %1469 = vmatpush1.bf16.xpose.msra.mxu0 0
        %1470 = vmatprep.subr.bf16.mxu0 0
        %1471 = vmatpush1.bf16.xpose.msra.mxu0 0
        %1472 = vmatprep.subr.bf16.mxu0 0
        %1473 = vmatpush1.bf16.xpose.msra.mxu0 0
        %1474 = vmatprep.subr.bf16.mxu0 0
        %1475 = vmatpush1.bf16.xpose.msra.mxu0 0
        %1476 = vmatprep.subr.bf16.mxu0 0
        %1477 = vmatpush1.bf16.xpose.msra.mxu0 0
        %1478 = vmatprep.subr.bf16.mxu0 0
        %1479 = vmatpush1.bf16.xpose.msra.mxu0 0
        %1480 = vmatprep.subr.bf16.mxu0 0
        %1481 = vmatpush1.bf16.xpose.msra.mxu0 0
        %1482 = vmatprep.subr.bf16.mxu0 0
        %1483 = vmatpush1.bf16.xpose.msra.mxu0 0
        %1484 = vmatprep.subr.bf16.mxu0 0
        %1485 = vmatpush1.bf16.xpose.msra.mxu0 0
        %1486 = vmatprep.mubr.bf16.mxu0 0
        %1487 = vmatmul.mubr.bf16.gmra.mrb[0].mxu0 %v1449
        %v1488 = vpop.f32.mrb[0].mxu0
        %v1489 = vadd.f32 0.0, %v1488
        %v1490 = vpop.f32.mrb[0].mxu0
        %v1491 = vpop.f32.mrb[0].mxu0
        %v1492 = vpop.f32.mrb[0].mxu0
        %1493 = vdwg.mxu0
        %v1495 = vsel %vm1401, %v1393, 0
        %v1498 = vsel %vm1401, %v1399, 0
        %1500 = vmatprep.subr.bf16.mxu0 0
        %1501 = vmatpush1.bf16.xpose.msra.mxu0 %v1498
        %1502 = vmatprep.subr.bf16.mxu0 0
        %1503 = vmatpush1.bf16.xpose.msra.mxu0 0
        %1504 = vmatprep.subr.bf16.mxu0 0
        %1505 = vmatpush1.bf16.xpose.msra.mxu0 0
        %1506 = vmatprep.subr.bf16.mxu0 0
        %1507 = vmatpush1.bf16.xpose.msra.mxu0 0
        %1508 = vmatprep.subr.bf16.mxu0 0
        %1509 = vmatpush1.bf16.xpose.msra.mxu0 0
        %1510 = vmatprep.subr.bf16.mxu0 0
        %1511 = vmatpush1.bf16.xpose.msra.mxu0 0
        %1512 = vmatprep.subr.bf16.mxu0 0
        %1513 = vmatpush1.bf16.xpose.msra.mxu0 0
        %1514 = vmatprep.subr.bf16.mxu0 0
        %1515 = vmatpush1.bf16.xpose.msra.mxu0 0
        %1516 = vmatprep.subr.bf16.mxu0 0
        %1517 = vmatpush1.bf16.xpose.msra.mxu0 0
        %1518 = vmatprep.subr.bf16.mxu0 0
        %1519 = vmatpush1.bf16.xpose.msra.mxu0 0
        %1520 = vmatprep.subr.bf16.mxu0 0
        %1521 = vmatpush1.bf16.xpose.msra.mxu0 0
        %1522 = vmatprep.subr.bf16.mxu0 0
        %1523 = vmatpush1.bf16.xpose.msra.mxu0 0
        %1524 = vmatprep.subr.bf16.mxu0 0
        %1525 = vmatpush1.bf16.xpose.msra.mxu0 0
        %1526 = vmatprep.subr.bf16.mxu0 0
        %1527 = vmatpush1.bf16.xpose.msra.mxu0 0
        %1528 = vmatprep.subr.bf16.mxu0 0
        %1529 = vmatpush1.bf16.xpose.msra.mxu0 0
        %1530 = vmatprep.subr.bf16.mxu0 0
        %1531 = vmatpush1.bf16.xpose.msra.mxu0 0
        %1532 = vmatprep.mubr.bf16.mxu0 0
        %1533 = vmatmul.mubr.bf16.gmra.mrb[0].mxu0 %v1495
        %v1534 = vpop.f32.mrb[0].mxu0
        %v1535 = vadd.f32 0.0, %v1534
        %v1536 = vpop.f32.mrb[0].mxu0
        %v1537 = vpop.f32.mrb[0].mxu0
        %v1538 = vpop.f32.mrb[0].mxu0
        %1539 = vdwg.mxu0
        %v1541 = vsel %vm1401, %v1396, 0
        %v1544 = vsel %vm1401, %v1400, 0
        %1546 = vmatprep.subr.bf16.mxu0 0
        %1547 = vmatpush1.bf16.xpose.msra.mxu0 %v1544
        %1548 = vmatprep.subr.bf16.mxu0 0
        %1549 = vmatpush1.bf16.xpose.msra.mxu0 0
        %1550 = vmatprep.subr.bf16.mxu0 0
        %1551 = vmatpush1.bf16.xpose.msra.mxu0 0
        %1552 = vmatprep.subr.bf16.mxu0 0
        %1553 = vmatpush1.bf16.xpose.msra.mxu0 0
        %1554 = vmatprep.subr.bf16.mxu0 0
        %1555 = vmatpush1.bf16.xpose.msra.mxu0 0
        %1556 = vmatprep.subr.bf16.mxu0 0
        %1557 = vmatpush1.bf16.xpose.msra.mxu0 0
        %1558 = vmatprep.subr.bf16.mxu0 0
        %1559 = vmatpush1.bf16.xpose.msra.mxu0 0
        %1560 = vmatprep.subr.bf16.mxu0 0
        %1561 = vmatpush1.bf16.xpose.msra.mxu0 0
        %1562 = vmatprep.subr.bf16.mxu0 0
        %1563 = vmatpush1.bf16.xpose.msra.mxu0 0
        %1564 = vmatprep.subr.bf16.mxu0 0
        %1565 = vmatpush1.bf16.xpose.msra.mxu0 0
        %1566 = vmatprep.subr.bf16.mxu0 0
        %1567 = vmatpush1.bf16.xpose.msra.mxu0 0
        %1568 = vmatprep.subr.bf16.mxu0 0
        %1569 = vmatpush1.bf16.xpose.msra.mxu0 0
        %1570 = vmatprep.subr.bf16.mxu0 0
        %1571 = vmatpush1.bf16.xpose.msra.mxu0 0
        %1572 = vmatprep.subr.bf16.mxu0 0
        %1573 = vmatpush1.bf16.xpose.msra.mxu0 0
        %1574 = vmatprep.subr.bf16.mxu0 0
        %1575 = vmatpush1.bf16.xpose.msra.mxu0 0
        %1576 = vmatprep.subr.bf16.mxu0 0
        %1577 = vmatpush1.bf16.xpose.msra.mxu0 0
        %1578 = vmatprep.mubr.bf16.mxu0 0
        %1579 = vmatmul.mubr.bf16.gmra.mrb[0].mxu0 %v1541
        %v1580 = vpop.f32.mrb[0].mxu0
        %v1581 = vadd.f32 0.0, %v1580
        %v1582 = vpop.f32.mrb[0].mxu0
        %v1583 = vpop.f32.mrb[0].mxu0
        %v1584 = vpop.f32.mrb[0].mxu0
        %1585 = vdwg.mxu0
        %v1586 = vsel %vm1401, %v1443, -inf
        %1587 = vmax.xlane.f32.xlu0 %v1586
        %v1588 = vpop.xlane.xlu0 %1587
        %v1589 = vsel %vm1401, %v1489, -inf
        %1590 = vmax.xlane.f32.xlu0 %v1589
        %v1591 = vpop.xlane.xlu0 %1590
        %v1592 = vsel %vm1401, %v1535, -inf
        %1593 = vmax.xlane.f32.xlu0 %v1592
        %v1594 = vpop.xlane.xlu0 %1593
        %v1595 = vsel %vm1401, %v1581, -inf
        %1596 = vmax.xlane.f32.xlu0 %v1595
        %v1597 = vpop.xlane.xlu0 %1596
        %v1598 = vsub.f32 %v1443, %v1588
        %v1599 = vsub.f32 %v1489, %v1591
        %v1600 = vsub.f32 %v1535, %v1594
        %v1601 = vsub.f32 %v1581, %v1597
        %v1602 = vmul.f32 %v1598, 1.442695
        %v1603 = vpow.pop %v1602
        %v1604 = vmul.f32 %v1599, 1.442695
        %v1605 = vpow.pop %v1604
        %v1606 = vmul.f32 %v1600, 1.442695
        %v1607 = vpow.pop %v1606
        %v1608 = vmul.f32 %v1601, 1.442695
        %v1609 = vpow.pop %v1608
        %v1610 = vsel %vm1401, %v1603, 0.0
        %1611 = vadd.xlane.f32.xlu0 %v1610
        %v1612 = vpop.xlane.xlu0 %1611
        %v1613 = vsel %vm1401, %v1605, 0.0
        %1614 = vadd.xlane.f32.xlu0 %v1613
        %v1615 = vpop.xlane.xlu0 %1614
        %v1616 = vsel %vm1401, %v1607, 0.0
        %1617 = vadd.xlane.f32.xlu0 %v1616
        %v1618 = vpop.xlane.xlu0 %1617
        %v1619 = vsel %vm1401, %v1609, 0.0
        %1620 = vadd.xlane.f32.xlu0 %v1619
        %v1621 = vpop.xlane.xlu0 %1620
        %v1622 = vrcp.pop %v1612
        %v1623 = vrcp.pop %v1615
        %v1624 = vrcp.pop %v1618
        %v1625 = vrcp.pop %v1621
        %v1626 = vmul.f32 %v1603, %v1622
        %v1627 = vmul.f32 %v1605, %v1623
        %v1628 = vmul.f32 %v1607, %v1624
        %v1629 = vmul.f32 %v1609, %v1625
        %v1630 = vpack.c.bf16 %v1626, %v1626
        %v1631 = vpack.c.bf16 %v1627, %v1627
        %v1632 = vpack.c.bf16 %v1628, %v1628
        %v1633 = vpack.c.bf16 %v1629, %v1629
        %vm1634 = vcmask 60416
        %1635 = vst.msk [vmem:[%s660] sm:$0xf] %vm1634, %v1630
        %1636 = vst.msk [vmem:[%s660 + $0x4] sm:$0xf] %vm1634, %v1631
        %1637 = vst.msk [vmem:[%s660 + $0x8] sm:$0xf] %vm1634, %v1632
        %1638 = vst.msk [vmem:[%s660 + $0xc] sm:$0xf] %vm1634, %v1633
        %v1639 = vld [vmem:[#allocation3] sm:$0xf]
        %v1640 = vld [vmem:[#allocation3 + $0x4] sm:$0xf]
        %v1641 = vld [vmem:[#allocation3 + $0x8] sm:$0xf]
        %v1642 = vld [vmem:[#allocation3 + $0xc] sm:$0xf]
        %v1644 = vsel %vm1401, %v1630, 0
        %vm1646 = vcmask 1043456
        %v1648 = vsel %vm1646, %v1639, 0
        %1650 = vmatprep.subr.bf16.mxu0 0
        %1651 = vmatpush1.bf16.msra.mxu0 %v1648
        %1652 = vmatprep.subr.bf16.mxu0 0
        %1653 = vmatpush1.bf16.msra.mxu0 0
        %1654 = vmatprep.subr.bf16.mxu0 0
        %1655 = vmatpush1.bf16.msra.mxu0 0
        %1656 = vmatprep.subr.bf16.mxu0 0
        %1657 = vmatpush1.bf16.msra.mxu0 0
        %1658 = vmatprep.subr.bf16.mxu0 0
        %1659 = vmatpush1.bf16.msra.mxu0 0
        %1660 = vmatprep.subr.bf16.mxu0 0
        %1661 = vmatpush1.bf16.msra.mxu0 0
        %1662 = vmatprep.subr.bf16.mxu0 0
        %1663 = vmatpush1.bf16.msra.mxu0 0
        %1664 = vmatprep.subr.bf16.mxu0 0
        %1665 = vmatpush1.bf16.msra.mxu0 0
        %1666 = vmatprep.subr.bf16.mxu0 0
        %1667 = vmatpush1.bf16.msra.mxu0 0
        %1668 = vmatprep.subr.bf16.mxu0 0
        %1669 = vmatpush1.bf16.msra.mxu0 0
        %1670 = vmatprep.subr.bf16.mxu0 0
        %1671 = vmatpush1.bf16.msra.mxu0 0
        %1672 = vmatprep.subr.bf16.mxu0 0
        %1673 = vmatpush1.bf16.msra.mxu0 0
        %1674 = vmatprep.subr.bf16.mxu0 0
        %1675 = vmatpush1.bf16.msra.mxu0 0
        %1676 = vmatprep.subr.bf16.mxu0 0
        %1677 = vmatpush1.bf16.msra.mxu0 0
        %1678 = vmatprep.subr.bf16.mxu0 0
        %1679 = vmatpush1.bf16.msra.mxu0 0
        %1680 = vmatprep.subr.bf16.mxu0 0
        %1681 = vmatpush1.bf16.msra.mxu0 0
        %1682 = vmatprep.mubr.bf16.mxu0 0
        %1683 = vmatmul.mubr.bf16.gmra.mrb[0].mxu0 %v1644
        %v1684 = vpop.f32.mrb[0].mxu0
        %v1685 = vadd.f32 0.0, %v1684
        %v1686 = vpop.f32.mrb[0].mxu0
        %v1687 = vpop.f32.mrb[0].mxu0
        %v1688 = vpop.f32.mrb[0].mxu0
        %1689 = vdwg.mxu0
        %v1691 = vsel %vm1401, %v1631, 0
        %v1694 = vsel %vm1646, %v1640, 0
        %1696 = vmatprep.subr.bf16.mxu0 0
        %1697 = vmatpush1.bf16.msra.mxu0 %v1694
        %1698 = vmatprep.subr.bf16.mxu0 0
        %1699 = vmatpush1.bf16.msra.mxu0 0
        %1700 = vmatprep.subr.bf16.mxu0 0
        %1701 = vmatpush1.bf16.msra.mxu0 0
        %1702 = vmatprep.subr.bf16.mxu0 0
        %1703 = vmatpush1.bf16.msra.mxu0 0
        %1704 = vmatprep.subr.bf16.mxu0 0
        %1705 = vmatpush1.bf16.msra.mxu0 0
        %1706 = vmatprep.subr.bf16.mxu0 0
        %1707 = vmatpush1.bf16.msra.mxu0 0
        %1708 = vmatprep.subr.bf16.mxu0 0
        %1709 = vmatpush1.bf16.msra.mxu0 0
        %1710 = vmatprep.subr.bf16.mxu0 0
        %1711 = vmatpush1.bf16.msra.mxu0 0
        %1712 = vmatprep.subr.bf16.mxu0 0
        %1713 = vmatpush1.bf16.msra.mxu0 0
        %1714 = vmatprep.subr.bf16.mxu0 0
        %1715 = vmatpush1.bf16.msra.mxu0 0
        %1716 = vmatprep.subr.bf16.mxu0 0
        %1717 = vmatpush1.bf16.msra.mxu0 0
        %1718 = vmatprep.subr.bf16.mxu0 0
        %1719 = vmatpush1.bf16.msra.mxu0 0
        %1720 = vmatprep.subr.bf16.mxu0 0
        %1721 = vmatpush1.bf16.msra.mxu0 0
        %1722 = vmatprep.subr.bf16.mxu0 0
        %1723 = vmatpush1.bf16.msra.mxu0 0
        %1724 = vmatprep.subr.bf16.mxu0 0
        %1725 = vmatpush1.bf16.msra.mxu0 0
        %1726 = vmatprep.subr.bf16.mxu0 0
        %1727 = vmatpush1.bf16.msra.mxu0 0
        %1728 = vmatprep.mubr.bf16.mxu0 0
        %1729 = vmatmul.mubr.bf16.gmra.mrb[0].mxu0 %v1691
        %v1730 = vpop.f32.mrb[0].mxu0
        %v1731 = vadd.f32 0.0, %v1730
        %v1732 = vpop.f32.mrb[0].mxu0
        %v1733 = vpop.f32.mrb[0].mxu0
        %v1734 = vpop.f32.mrb[0].mxu0
        %1735 = vdwg.mxu0
        %v1737 = vsel %vm1401, %v1632, 0
        %v1740 = vsel %vm1646, %v1641, 0
        %1742 = vmatprep.subr.bf16.mxu0 0
        %1743 = vmatpush1.bf16.msra.mxu0 %v1740
        %1744 = vmatprep.subr.bf16.mxu0 0
        %1745 = vmatpush1.bf16.msra.mxu0 0
        %1746 = vmatprep.subr.bf16.mxu0 0
        %1747 = vmatpush1.bf16.msra.mxu0 0
        %1748 = vmatprep.subr.bf16.mxu0 0
        %1749 = vmatpush1.bf16.msra.mxu0 0
        %1750 = vmatprep.subr.bf16.mxu0 0
        %1751 = vmatpush1.bf16.msra.mxu0 0
        %1752 = vmatprep.subr.bf16.mxu0 0
        %1753 = vmatpush1.bf16.msra.mxu0 0
        %1754 = vmatprep.subr.bf16.mxu0 0
        %1755 = vmatpush1.bf16.msra.mxu0 0
        %1756 = vmatprep.subr.bf16.mxu0 0
        %1757 = vmatpush1.bf16.msra.mxu0 0
        %1758 = vmatprep.subr.bf16.mxu0 0
        %1759 = vmatpush1.bf16.msra.mxu0 0
        %1760 = vmatprep.subr.bf16.mxu0 0
        %1761 = vmatpush1.bf16.msra.mxu0 0
        %1762 = vmatprep.subr.bf16.mxu0 0
        %1763 = vmatpush1.bf16.msra.mxu0 0
        %1764 = vmatprep.subr.bf16.mxu0 0
        %1765 = vmatpush1.bf16.msra.mxu0 0
        %1766 = vmatprep.subr.bf16.mxu0 0
        %1767 = vmatpush1.bf16.msra.mxu0 0
        %1768 = vmatprep.subr.bf16.mxu0 0
        %1769 = vmatpush1.bf16.msra.mxu0 0
        %1770 = vmatprep.subr.bf16.mxu0 0
        %1771 = vmatpush1.bf16.msra.mxu0 0
        %1772 = vmatprep.subr.bf16.mxu0 0
        %1773 = vmatpush1.bf16.msra.mxu0 0
        %1774 = vmatprep.mubr.bf16.mxu0 0
        %1775 = vmatmul.mubr.bf16.gmra.mrb[0].mxu0 %v1737
        %v1776 = vpop.f32.mrb[0].mxu0
        %v1777 = vadd.f32 0.0, %v1776
        %v1778 = vpop.f32.mrb[0].mxu0
        %v1779 = vpop.f32.mrb[0].mxu0
        %v1780 = vpop.f32.mrb[0].mxu0
        %1781 = vdwg.mxu0
        %v1783 = vsel %vm1401, %v1633, 0
        %v1786 = vsel %vm1646, %v1642, 0
        %1788 = vmatprep.subr.bf16.mxu0 0
        %1789 = vmatpush1.bf16.msra.mxu0 %v1786
        %1790 = vmatprep.subr.bf16.mxu0 0
        %1791 = vmatpush1.bf16.msra.mxu0 0
        %1792 = vmatprep.subr.bf16.mxu0 0
        %1793 = vmatpush1.bf16.msra.mxu0 0
        %1794 = vmatprep.subr.bf16.mxu0 0
        %1795 = vmatpush1.bf16.msra.mxu0 0
        %1796 = vmatprep.subr.bf16.mxu0 0
        %1797 = vmatpush1.bf16.msra.mxu0 0
        %1798 = vmatprep.subr.bf16.mxu0 0
        %1799 = vmatpush1.bf16.msra.mxu0 0
        %1800 = vmatprep.subr.bf16.mxu0 0
        %1801 = vmatpush1.bf16.msra.mxu0 0
        %1802 = vmatprep.subr.bf16.mxu0 0
        %1803 = vmatpush1.bf16.msra.mxu0 0
        %1804 = vmatprep.subr.bf16.mxu0 0
        %1805 = vmatpush1.bf16.msra.mxu0 0
        %1806 = vmatprep.subr.bf16.mxu0 0
        %1807 = vmatpush1.bf16.msra.mxu0 0
        %1808 = vmatprep.subr.bf16.mxu0 0
        %1809 = vmatpush1.bf16.msra.mxu0 0
        %1810 = vmatprep.subr.bf16.mxu0 0
        %1811 = vmatpush1.bf16.msra.mxu0 0
        %1812 = vmatprep.subr.bf16.mxu0 0
        %1813 = vmatpush1.bf16.msra.mxu0 0
        %1814 = vmatprep.subr.bf16.mxu0 0
        %1815 = vmatpush1.bf16.msra.mxu0 0
        %1816 = vmatprep.subr.bf16.mxu0 0
        %1817 = vmatpush1.bf16.msra.mxu0 0
        %1818 = vmatprep.subr.bf16.mxu0 0
        %1819 = vmatpush1.bf16.msra.mxu0 0
        %1820 = vmatprep.mubr.bf16.mxu0 0
        %1821 = vmatmul.mubr.bf16.gmra.mrb[0].mxu0 %v1783
        %v1822 = vpop.f32.mrb[0].mxu0
        %v1823 = vadd.f32 0.0, %v1822
        %v1824 = vpop.f32.mrb[0].mxu0
        %v1825 = vpop.f32.mrb[0].mxu0
        %v1826 = vpop.f32.mrb[0].mxu0
        %1827 = vdwg.mxu0
        %v1828 = vpack.c.bf16 %v1685, %v1685
        %v1830 = vunpack.c.l.s4 1983009808
        %v1831 = vunpack.c.0.s8 %v1830
        %v1832 = vlaneseq
        %v1833 = vshrl.u32 %v1832, 7
        %v1834 = vsub.s32 %v1831, %v1833
        %v1835 = vrot.slane %v1828, %v1834
        %v1836 = vpack.c.bf16 %v1777, %v1777
        %v1838 = vunpack.c.l.s4 1983009808
        %v1839 = vunpack.c.0.s8 %v1838
        %v1840 = vlaneseq
        %v1841 = vshrl.u32 %v1840, 7
        %v1842 = vsub.s32 %v1839, %v1841
        %v1843 = vrot.slane %v1836, %v1842
        %v1844 = vcombine.low %v1835, %v1843
        %v1845 = vcombine.high %v1835, %v1843
        %v1847 = vunpack.c.l.s4 1934713408
        %v1848 = vunpack.c.0.s8 %v1847
        %v1849 = vlaneseq
        %v1850 = vshrl.u32 %v1849, 7
        %v1851 = vsub.s32 %v1848, %v1850
        %v1852 = vrot.slane %v1844, %v1851
        %v1854 = vunpack.c.l.s4 1934713408
        %v1855 = vunpack.c.0.s8 %v1854
        %v1856 = vlaneseq
        %v1857 = vshrl.u32 %v1856, 7
        %v1858 = vsub.s32 %v1855, %v1857
        %v1859 = vrot.slane %v1845, %v1858
        %v1860 = vcombine.high %v1852, 0
        %v1861 = vcombine.high %v1859, 0
        %v1862 = vpack.c.bf16 %v1731, %v1731
        %v1864 = vunpack.c.l.s4 1983009808
        %v1865 = vunpack.c.0.s8 %v1864
        %v1866 = vlaneseq
        %v1867 = vshrl.u32 %v1866, 7
        %v1868 = vsub.s32 %v1865, %v1867
        %v1869 = vrot.slane %v1862, %v1868
        %v1870 = vpack.c.bf16 %v1823, %v1823
        %v1872 = vunpack.c.l.s4 1983009808
        %v1873 = vunpack.c.0.s8 %v1872
        %v1874 = vlaneseq
        %v1875 = vshrl.u32 %v1874, 7
        %v1876 = vsub.s32 %v1873, %v1875
        %v1877 = vrot.slane %v1870, %v1876
        %v1878 = vcombine.low %v1869, %v1877
        %v1879 = vcombine.high %v1869, %v1877
        %v1881 = vunpack.c.l.s4 1934713408
        %v1882 = vunpack.c.0.s8 %v1881
        %v1883 = vlaneseq
        %v1884 = vshrl.u32 %v1883, 7
        %v1885 = vsub.s32 %v1882, %v1884
        %v1886 = vrot.slane %v1878, %v1885
        %v1888 = vunpack.c.l.s4 1934713408
        %v1889 = vunpack.c.0.s8 %v1888
        %v1890 = vlaneseq
        %v1891 = vshrl.u32 %v1890, 7
        %v1892 = vsub.s32 %v1889, %v1891
        %v1893 = vrot.slane %v1879, %v1892
        %v1894 = vcombine.high %v1886, 0
        %v1895 = vcombine.high %v1893, 0
        %v1898 = vpack.i.b16 %v1886, %v1852
        %v1900 = vshrl.u32 %v1852, 16
        %v1901 = vshrl.u32 %v1886, 16
        %v1902 = vpack.i.b16 %v1901, %v1900
        %v1906 = vpack.i.b16 %v1894, %v1860
        %v1908 = vshrl.u32 %v1860, 16
        %v1909 = vshrl.u32 %v1894, 16
        %v1910 = vpack.i.b16 %v1909, %v1908
        %v1914 = vpack.i.b16 %v1893, %v1859
        %v1916 = vshrl.u32 %v1859, 16
        %v1917 = vshrl.u32 %v1893, 16
        %v1918 = vpack.i.b16 %v1917, %v1916
        %v1922 = vpack.i.b16 %v1895, %v1861
        %v1924 = vshrl.u32 %v1861, 16
        %v1925 = vshrl.u32 %v1895, 16
        %v1926 = vpack.i.b16 %v1925, %v1924
        %v1928 = vcombine.low %v1898, %v1914
        %v1930 = vunpack.c.l.s4 1983009808
        %v1931 = vunpack.c.0.s8 %v1930
        %v1932 = vlaneseq
        %v1933 = vshrl.u32 %v1932, 7
        %v1934 = vsub.s32 %v1931, %v1933
        %v1935 = vrot.slane %v1928, %v1934
        %v1936 = vcombine.low %v1906, %v1922
        %v1938 = vunpack.c.l.s4 1983009808
        %v1939 = vunpack.c.0.s8 %v1938
        %v1940 = vlaneseq
        %v1941 = vshrl.u32 %v1940, 7
        %v1942 = vsub.s32 %v1939, %v1941
        %v1943 = vrot.slane %v1936, %v1942
        %v1944 = vcombine.low %v1935, %v1943
        %v1946 = vunpack.c.l.s4 1934713408
        %v1947 = vunpack.c.0.s8 %v1946
        %v1948 = vlaneseq
        %v1949 = vshrl.u32 %v1948, 7
        %v1950 = vsub.s32 %v1947, %v1949
        %v1951 = vrot.slane %v1944, %v1950
        %v1952 = vcombine.high %v1951, 0
        %v1953 = vcombine.low %v1902, %v1918
        %v1955 = vunpack.c.l.s4 1983009808
        %v1956 = vunpack.c.0.s8 %v1955
        %v1957 = vlaneseq
        %v1958 = vshrl.u32 %v1957, 7
        %v1959 = vsub.s32 %v1956, %v1958
        %v1960 = vrot.slane %v1953, %v1959
        %v1961 = vcombine.low %v1910, %v1926
        %v1963 = vunpack.c.l.s4 1983009808
        %v1964 = vunpack.c.0.s8 %v1963
        %v1965 = vlaneseq
        %v1966 = vshrl.u32 %v1965, 7
        %v1967 = vsub.s32 %v1964, %v1966
        %v1968 = vrot.slane %v1961, %v1967
        %v1969 = vcombine.low %v1960, %v1968
        %v1971 = vunpack.c.l.s4 1934713408
        %v1972 = vunpack.c.0.s8 %v1971
        %v1973 = vlaneseq
        %v1974 = vshrl.u32 %v1973, 7
        %v1975 = vsub.s32 %v1972, %v1974
        %v1976 = vrot.slane %v1969, %v1975
        %v1977 = vcombine.high %v1976, 0
        %v1980 = vpack.i.b16 %v1976, %v1951
        %v1981 = vshrl.u32 %v1951, 16
        %v1982 = vshrl.u32 %v1976, 16
        %v1983 = vpack.i.b16 %v1982, %v1981
        %v1986 = vpack.i.b16 %v1977, %v1952
        %v1987 = vshrl.u32 %v1952, 16
        %v1988 = vshrl.u32 %v1977, 16
        %v1989 = vpack.i.b16 %v1988, %v1987
        %1990 = vrot.lane.b32.xlu0 %v1983, 8
        %v1991 = vpop.permute.xlu0 %1990
        %1992 = vrot.lane.b32.xlu0 %v1986, 16
        %v1993 = vpop.permute.xlu0 %1992
        %1994 = vrot.lane.b32.xlu0 %v1989, 24
        %v1995 = vpop.permute.xlu0 %1994
        %v1998 = vsel %vm1401, %v1980, %v1991
        %vm1999 = vcmask 130048
        %v2001 = vsel %vm1999, %v1998, %v1993
        %vm2002 = vcmask 195584
        %v2004 = vsel %vm2002, %v2001, %v1995
        %v2005 = vld [vmem:[#allocation9] sm:$0xf]
        %v2006 = vld [vmem:[#allocation9 + $0x4] sm:$0xf]
        %v2007 = vld [vmem:[#allocation9 + $0x8] sm:$0xf]
        %v2008 = vld [vmem:[#allocation9 + $0xc] sm:$0xf]
        %v2009 = vld [vmem:[#allocation10] sm:$0x1]
        %v2011 = vlaneseq
        %v2012 = vshrl.u32 %v2011, 7
        %v2013 = vsub.s32 0, %v2012
        %v2014 = vrot.slane %v2009, %v2013
        %v2020 = vunpack.c.l.b16 %v2005
        %v2021 = vunpack.c.l.b16 %v2006
        %v2022 = vunpack.c.l.b16 %v2007
        %v2023 = vunpack.c.l.b16 %v2008
        %v2024 = vpack.c.b16 %v2021, %v2020
        %v2025 = vpack.c.b16 %v2023, %v2022
        %v2028 = vsel %vm1184, %v2004, 0
        %2030 = vmatprep.subr.bf16.mxu0 0
        %2031 = vmatpush1.bf16.msra.mxu0 %v2024
        %2032 = vmatprep.subr.bf16.mxu0 0
        %2033 = vmatpush1.bf16.msra.mxu0 %v2025
        %2034 = vmatprep.subr.bf16.mxu0 0
        %2035 = vmatpush1.bf16.msra.mxu0 0
        %2036 = vmatprep.subr.bf16.mxu0 0
        %2037 = vmatpush1.bf16.msra.mxu0 0
        %2038 = vmatprep.subr.bf16.mxu0 0
        %2039 = vmatpush1.bf16.msra.mxu0 0
        %2040 = vmatprep.subr.bf16.mxu0 0
        %2041 = vmatpush1.bf16.msra.mxu0 0
        %2042 = vmatprep.subr.bf16.mxu0 0
        %2043 = vmatpush1.bf16.msra.mxu0 0
        %2044 = vmatprep.subr.bf16.mxu0 0
        %2045 = vmatpush1.bf16.msra.mxu0 0
        %2046 = vmatprep.subr.bf16.mxu0 0
        %2047 = vmatpush1.bf16.msra.mxu0 0
        %2048 = vmatprep.subr.bf16.mxu0 0
        %2049 = vmatpush1.bf16.msra.mxu0 0
        %2050 = vmatprep.subr.bf16.mxu0 0
        %2051 = vmatpush1.bf16.msra.mxu0 0
        %2052 = vmatprep.subr.bf16.mxu0 0
        %2053 = vmatpush1.bf16.msra.mxu0 0
        %2054 = vmatprep.subr.bf16.mxu0 0
        %2055 = vmatpush1.bf16.msra.mxu0 0
        %2056 = vmatprep.subr.bf16.mxu0 0
        %2057 = vmatpush1.bf16.msra.mxu0 0
        %2058 = vmatprep.subr.bf16.mxu0 0
        %2059 = vmatpush1.bf16.msra.mxu0 0
        %2060 = vmatprep.subr.bf16.mxu0 0
        %2061 = vmatpush1.bf16.msra.mxu0 0
        %2062 = vmatprep.mubr.bf16.mxu0 0
        %2063 = vmatmul.mubr.bf16.gmra.mrb[0].mxu0 %v2028
        %v2064 = vpop.f32.mrb[0].mxu0
        %v2065 = vadd.f32 %v2014, %v2064
        %v2066 = vpop.f32.mrb[0].mxu0
        %v2067 = vpop.f32.mrb[0].mxu0
        %v2068 = vpop.f32.mrb[0].mxu0
        %2069 = vdwg.mxu0
        %v2070 = vadd.f32 %v1159, %v2065
        %v2071 = vld [vmem:[#allocation12] sm:$0x1]
        %v2072 = vld [vmem:[%s10] sm:$0x1]
        %v2073 = vsel %vm1184, %v2070, 0.0
        %2074 = vadd.xlane.f32.xlu0 %v2073
        %v2075 = vpop.xlane.xlu0 %2074
        %v2076 = vrcp.pop 32.0
        %v2077 = vmul.f32 %v2075, %v2076
        %v2078 = vsub.f32 %v2070, %v2077
        %v2079 = vmul.f32 %v2078, %v2078
        %v2080 = vsel %vm1184, %v2079, 0.0
        %2081 = vadd.xlane.f32.xlu0 %v2080
        %v2082 = vpop.xlane.xlu0 %2081
        %v2083 = vmul.f32 %v2082, %v2076
        %v2084 = vadd.f32 %v2083, 1e-05
        %v2085 = vrsqrt.pop %v2084
        %v2086 = vmul.f32 %v2078, %v2085
        %v2088 = vlaneseq
        %v2089 = vshrl.u32 %v2088, 7
        %v2090 = vsub.s32 0, %v2089
        %v2091 = vrot.slane %v2071, %v2090
        %v2093 = vmul.f32 %v2086, %v2091
        %v2095 = vlaneseq
        %v2096 = vshrl.u32 %v2095, 7
        %v2097 = vsub.s32 0, %v2096
        %v2098 = vrot.slane %v2072, %v2097
        %v2100 = vadd.f32 %v2093, %v2098
        %v2101 = vpack.c.bf16 %v2100, %v2100
        %v2102 = vld [vmem:[%s11] sm:$0xf]
        %v2103 = vld [vmem:[%s11 + $0x4] sm:$0xf]
        %v2104 = vld [vmem:[%s11 + $0x8] sm:$0xf]
        %v2105 = vld [vmem:[%s11 + $0xc] sm:$0xf]
        %v2106 = vld [vmem:[%s12] sm:$0x1]
        %v2108 = vlaneseq
        %v2109 = vshrl.u32 %v2108, 7
        %v2110 = vsub.s32 0, %v2109
        %v2111 = vrot.slane %v2106, %v2110
        %v2117 = vunpack.c.l.b16 %v2102
        %v2118 = vunpack.c.l.b16 %v2103
        %v2119 = vunpack.c.l.b16 %v2104
        %v2120 = vunpack.c.l.b16 %v2105
        %v2121 = vpack.c.b16 %v2118, %v2117
        %v2122 = vpack.c.b16 %v2120, %v2119
        %v2126 = vsel %vm1184, %v2101, 0
        %2128 = vmatprep.subr.bf16.mxu0 0
        %2129 = vmatpush1.bf16.msra.mxu0 %v2121
        %2130 = vmatprep.subr.bf16.mxu0 0
        %2131 = vmatpush1.bf16.msra.mxu0 %v2122
        %2132 = vmatprep.subr.bf16.mxu0 0
        %2133 = vmatpush1.bf16.msra.mxu0 0
        %2134 = vmatprep.subr.bf16.mxu0 0
        %2135 = vmatpush1.bf16.msra.mxu0 0
        %2136 = vmatprep.subr.bf16.mxu0 0
        %2137 = vmatpush1.bf16.msra.mxu0 0
        %2138 = vmatprep.subr.bf16.mxu0 0
        %2139 = vmatpush1.bf16.msra.mxu0 0
        %2140 = vmatprep.subr.bf16.mxu0 0
        %2141 = vmatpush1.bf16.msra.mxu0 0
        %2142 = vmatprep.subr.bf16.mxu0 0
        %2143 = vmatpush1.bf16.msra.mxu0 0
        %2144 = vmatprep.subr.bf16.mxu0 0
        %2145 = vmatpush1.bf16.msra.mxu0 0
        %2146 = vmatprep.subr.bf16.mxu0 0
        %2147 = vmatpush1.bf16.msra.mxu0 0
        %2148 = vmatprep.subr.bf16.mxu0 0
        %2149 = vmatpush1.bf16.msra.mxu0 0
        %2150 = vmatprep.subr.bf16.mxu0 0
        %2151 = vmatpush1.bf16.msra.mxu0 0
        %2152 = vmatprep.subr.bf16.mxu0 0
        %2153 = vmatpush1.bf16.msra.mxu0 0
        %2154 = vmatprep.subr.bf16.mxu0 0
        %2155 = vmatpush1.bf16.msra.mxu0 0
        %2156 = vmatprep.subr.bf16.mxu0 0
        %2157 = vmatpush1.bf16.msra.mxu0 0
        %2158 = vmatprep.subr.bf16.mxu0 0
        %2159 = vmatpush1.bf16.msra.mxu0 0
        %2160 = vmatprep.mubr.bf16.mxu0 0
        %2161 = vmatmul.mubr.bf16.gmra.mrb[0].mxu0 %v2126
        %v2162 = vpop.f32.mrb[0].mxu0
        %v2163 = vadd.f32 %v2111, %v2162
        %v2164 = vpop.f32.mrb[0].mxu0
        %v2165 = vpop.f32.mrb[0].mxu0
        %v2166 = vpop.f32.mrb[0].mxu0
        %2167 = vdwg.mxu0
        %v2168 = vmul.f32 %v2163, %v2163
        %v2169 = vmul.f32 %v2163, %v2168
        %v2170 = vmul.f32 %v2169, 0.044715
        %v2171 = vadd.f32 %v2163, %v2170
        %v2172 = vmul.f32 %v2171, 0.7978846
        %v2173 = vtanh.pop %v2172
        %v2174 = vadd.f32 %v2173, 1.0
        %v2175 = vmul.f32 %v2174, 0.5
        %v2176 = vmul.f32 %v2163, %v2175
        %v2177 = vpack.c.bf16 %v2176, %v2176
        %v2178 = vld [vmem:[%s13] sm:$0xf]
        %v2179 = vld [vmem:[%s13 + $0x4] sm:$0xf]
        %v2180 = vld [vmem:[%s13 + $0x8] sm:$0xf]
        %v2181 = vld [vmem:[%s13 + $0xc] sm:$0xf]
        %v2182 = vld [vmem:[%s13 + $0x10] sm:$0xf]
        %v2183 = vld [vmem:[%s13 + $0x14] sm:$0xf]
        %v2184 = vld [vmem:[%s13 + $0x18] sm:$0xf]
        %v2185 = vld [vmem:[%s13 + $0x1c] sm:$0xf]
        %v2186 = vld [vmem:[%s14] sm:$0x1]
        %v2188 = vlaneseq
        %v2189 = vshrl.u32 %v2188, 7
        %v2190 = vsub.s32 0, %v2189
        %v2191 = vrot.slane %v2186, %v2190
        %v2201 = vunpack.c.l.b16 %v2178
        %v2202 = vunpack.c.l.b16 %v2179
        %v2203 = vunpack.c.l.b16 %v2180
        %v2204 = vunpack.c.l.b16 %v2181
        %v2205 = vunpack.c.l.b16 %v2182
        %v2206 = vunpack.c.l.b16 %v2183
        %v2207 = vunpack.c.l.b16 %v2184
        %v2208 = vunpack.c.l.b16 %v2185
        %v2209 = vpack.c.b16 %v2202, %v2201
        %v2210 = vpack.c.b16 %v2204, %v2203
        %v2211 = vpack.c.b16 %v2206, %v2205
        %v2212 = vpack.c.b16 %v2208, %v2207
        %vm2217 = vcmask 523264
        %v2219 = vsel %vm2217, %v2177, 0
        %2221 = vmatprep.subr.bf16.mxu0 0
        %2222 = vmatpush1.bf16.msra.mxu0 %v2209
        %2223 = vmatprep.subr.bf16.mxu0 0
        %2224 = vmatpush1.bf16.msra.mxu0 %v2210
        %2225 = vmatprep.subr.bf16.mxu0 0
        %2226 = vmatpush1.bf16.msra.mxu0 %v2211
        %2227 = vmatprep.subr.bf16.mxu0 0
        %2228 = vmatpush1.bf16.msra.mxu0 %v2212
        %2229 = vmatprep.subr.bf16.mxu0 0
        %2230 = vmatpush1.bf16.msra.mxu0 0
        %2231 = vmatprep.subr.bf16.mxu0 0
        %2232 = vmatpush1.bf16.msra.mxu0 0
        %2233 = vmatprep.subr.bf16.mxu0 0
        %2234 = vmatpush1.bf16.msra.mxu0 0
        %2235 = vmatprep.subr.bf16.mxu0 0
        %2236 = vmatpush1.bf16.msra.mxu0 0
        %2237 = vmatprep.subr.bf16.mxu0 0
        %2238 = vmatpush1.bf16.msra.mxu0 0
        %2239 = vmatprep.subr.bf16.mxu0 0
        %2240 = vmatpush1.bf16.msra.mxu0 0
        %2241 = vmatprep.subr.bf16.mxu0 0
        %2242 = vmatpush1.bf16.msra.mxu0 0
        %2243 = vmatprep.subr.bf16.mxu0 0
        %2244 = vmatpush1.bf16.msra.mxu0 0
        %2245 = vmatprep.subr.bf16.mxu0 0
        %2246 = vmatpush1.bf16.msra.mxu0 0
        %2247 = vmatprep.subr.bf16.mxu0 0
        %2248 = vmatpush1.bf16.msra.mxu0 0
        %2249 = vmatprep.subr.bf16.mxu0 0
        %2250 = vmatpush1.bf16.msra.mxu0 0
        %2251 = vmatprep.subr.bf16.mxu0 0
        %2252 = vmatpush1.bf16.msra.mxu0 0
        %2253 = vmatprep.mubr.bf16.mxu0 0
        %2254 = vmatmul.mubr.bf16.gmra.mrb[0].mxu0 %v2219
        %v2255 = vpop.f32.mrb[0].mxu0
        %v2256 = vadd.f32 %v2191, %v2255
        %v2257 = vpop.f32.mrb[0].mxu0
        %v2258 = vpop.f32.mrb[0].mxu0
        %v2259 = vpop.f32.mrb[0].mxu0
        %2260 = vdwg.mxu0
        %v2261 = vadd.f32 %v2100, %v2256
        %v2262 = vld [vmem:[%s15] sm:$0x1]
        %v2263 = vld [vmem:[%s16] sm:$0x1]
        %v2264 = vsel %vm1184, %v2261, 0.0
        %2265 = vadd.xlane.f32.xlu0 %v2264
        %v2266 = vpop.xlane.xlu0 %2265
        %v2267 = vmul.f32 %v2266, %v2076
        %v2268 = vsub.f32 %v2261, %v2267
        %v2269 = vmul.f32 %v2268, %v2268
        %v2270 = vsel %vm1184, %v2269, 0.0
        %2271 = vadd.xlane.f32.xlu0 %v2270
        %v2272 = vpop.xlane.xlu0 %2271
        %v2273 = vmul.f32 %v2272, %v2076
        %v2274 = vadd.f32 %v2273, 1e-05
        %v2275 = vrsqrt.pop %v2274
        %v2276 = vmul.f32 %v2268, %v2275
        %v2278 = vlaneseq
        %v2279 = vshrl.u32 %v2278, 7
        %v2280 = vsub.s32 0, %v2279
        %v2281 = vrot.slane %v2262, %v2280
        %v2283 = vmul.f32 %v2276, %v2281
        %v2285 = vlaneseq
        %v2286 = vshrl.u32 %v2285, 7
        %v2287 = vsub.s32 0, %v2286
        %v2288 = vrot.slane %v2263, %v2287
        %v2290 = vadd.f32 %v2283, %v2288
        %2291 = vst.msk [vmem:[%s653] sm:$0xff] %vm1184, %v2290
        %s2292 = sand.u32 %s423, 1
        %s2293 = scalar_lea.sflag [#allocation6], %s2292
        %s2294 = sand.u32 %s423, 1
        %s2295 = smul.addr %s2294, 8
        %s2296 = scalar_lea.vmem [#allocation13], %s2295
        %s2297 = sand.u32 %s451, 1
        %s2298 = scalar_lea.sflag [#allocation15], %s2297
        %s2299 = sand.u32 %s451, 1
        %s2300 = smul.addr %s2299, 16
        %s2301 = scalar_lea.vmem [#allocation14], %s2300
        // Predicated region
        $region113: #{tpu_custom_call.1} parent=87 // pred_check
          %p2302 = pneg %p433
        $region114: #{tpu_custom_call.1} parent=87 // pred_check_branch
          %2304 = sbr.rel (%p2302) target = $region116
        $region115: #{tpu_custom_call.1} parent=87 // pred_region
          %s2306 = ssub.s32 128, 128
          %2307 = vsyncadd %s2293, %s2306
          %s2308 = sadd.s32 %s44, %s43
          %s2309 = smul.addr %s2308, 128
          %s2310 = scalar_lea.hbm %s17, %s2309
          %s2312 = sshll.u32 %s2296, 4
          %s2313 = int_to_ptr.vmem [resolvable:$true] %s2312
          %2315 = dma.vmem_to_hbm [thread:$0]  %s2313, 128, %s2310, %s2293
        $region116: #{tpu_custom_call.1} parent=87 // pred_fallthru
          _
        // Predicated region
        $region117: #{tpu_custom_call.1} parent=87 // pred_check
          %p2316 = pneg %p461
        $region118: #{tpu_custom_call.1} parent=87 // pred_check_branch
          %2318 = sbr.rel (%p2316) target = $region120
        $region119: #{tpu_custom_call.1} parent=87 // pred_region
          %s2320 = ssub.s32 256, 256
          %2321 = vsyncadd %s2298, %s2320
          %s2322 = smul.addr %s43, 4
          %s2323 = sadd.s32 %s44, %s2322
          %s2324 = smul.addr %s2323, 64
          %s2325 = scalar_lea.hbm %s18, %s2324
          %s2326 = sshll.u32 %s2301, 4
          %s2327 = int_to_ptr.vmem [resolvable:$true] %s2326
          %2332 = dma.vmem_to_hbm [thread:$0]  %s2327, 256, %s2325, %s2298, 64, 64, 4
        $region120: #{tpu_custom_call.1} parent=87 // pred_fallthru
          _
      $region88: #{tpu_custom_call.1} parent=5 // pred_fallthru
        _
      %p2333 = scmp.le.s32.totalorder 2, %s34
      // Predicated region
      $region121: #{tpu_custom_call.1} parent=5 // pred_check
        %p2334 = pneg %p2333
      $region122: #{tpu_custom_call.1} parent=5 // pred_check_branch
        %2336 = sbr.rel (%p2334) target = $region124
      $region123: #{tpu_custom_call.1} parent=5 // pred_region
        %s2337 = ssub.s32 %s34, 2
        // Predicated region
        $region125: #{tpu_custom_call.1} parent=123 // pred_check
          %p2338 = pneg %p439
        $region126: #{tpu_custom_call.1} parent=123 // pred_check_branch
          %2340 = sbr.rel (%p2338) target = $region128
        $region127: #{tpu_custom_call.1} parent=123 // pred_region
          %s2341 = sand.u32 %s424, 1
          %s2342 = scalar_lea.sflag [#allocation6], %s2341
          %s2343 = sand.u32 %s424, 1
          %s2344 = smul.addr %s2343, 8
          %s2345 = scalar_lea.vmem [#allocation13], %s2344
          %2346 = dma.done %s2342, 128
        $region128: #{tpu_custom_call.1} parent=123 // pred_fallthru
          _
        // Predicated region
        $region129: #{tpu_custom_call.1} parent=123 // pred_check
          %p2347 = pneg %p467
        $region130: #{tpu_custom_call.1} parent=123 // pred_check_branch
          %2349 = sbr.rel (%p2347) target = $region132
        $region131: #{tpu_custom_call.1} parent=123 // pred_region
          %s2350 = sand.u32 %s452, 1
          %s2351 = scalar_lea.sflag [#allocation15], %s2350
          %s2352 = sand.u32 %s452, 1
          %s2353 = smul.addr %s2352, 16
          %s2354 = scalar_lea.vmem [#allocation14], %s2353
          %2355 = dma.done %s2351, 256
        $region132: #{tpu_custom_call.1} parent=123 // pred_fallthru
          _
      $region124: #{tpu_custom_call.1} parent=5 // pred_fallthru
        _
    $region6: #{tpu_custom_call.1} parent=1 // loop_footer
      %s38 = sadd.s32 1, %s34
    $region7: #{tpu_custom_call.1} parent=1 // loop_footer_branch
      %33 = sbr.rel target = $region3
    $region8: #{tpu_custom_call.1} parent=1 // loop_exit
      _
    %2356 = vsyncpa [#allocation5], 1
    %s2357 = scalar_lea.sflag [#allocation5], 1
    %2358 = vsyncpa %s2357, 1
    %2359 = vsyncpa [#allocation8], 1
    %2360 = vsyncpa [#allocation11], 1
    %2361 = vsyncpa [#allocation6], 1
    %s2362 = scalar_lea.sflag [#allocation6], 1
    %2363 = vsyncpa %s2362, 1
    %2364 = vsyncpa [#allocation15], 1
    %s2365 = scalar_lea.sflag [#allocation15], 1
    %2366 = vsyncpa %s2365, 1

</llo_original>
